<compile_context>
chip_gen: v7x
topology: tpu7x:2x2x1
jax: 0.10.0
libtpu: 0.0.40
codegen_flags: <defaults>
</compile_context>

<pallas_src>
from typing import NamedTuple

import jax
import jax.numpy as jnp
from jax.experimental import pallas as pl
from jax.experimental.pallas import tpu as pltpu


# ----------------------------------------------------------------------------
# Static geometry of the conv stack (all Python ints, computed once).
# ----------------------------------------------------------------------------
def _round_up(x, m):
    return ((x + m - 1) // m) * m


def _conv_out(size, k, s):
    return (size - k) // s + 1


class _Geom(NamedTuple):
    C0: int
    Hs1: int
    Ws1: int
    OH1: int
    OW1: int
    Hs2: int
    Ws2: int
    OH2: int
    OW2: int
    OH3: int
    OW3: int
    K1: int
    L1: int
    L1p: int
    R1: int
    L2: int
    L2p: int
    R2: int
    R2e: int
    R3: int
    feat: int
    Keff: int


def _geometry(in_channels: int, H: int, W: int) -> _Geom:
    assert H % 4 == 0 and W % 4 == 0, "H and W must be multiples of 4"
    Hs1, Ws1 = H // 4, W // 4
    OH1, OW1 = _conv_out(H, 8, 4), _conv_out(W, 8, 4)      # == Hs1-1, Ws1-1
    assert OH1 % 2 == 0 and OW1 % 2 == 0, "conv1 output H/W must be even"
    Hs2, Ws2 = OH1 // 2, OW1 // 2
    OH2, OW2 = _conv_out(OH1, 4, 2), _conv_out(OW1, 4, 2)  # == Hs2-1, Ws2-1
    OH3, OW3 = OH2 - 2, OW2 - 2
    assert OH3 >= 1 and OW3 >= 1, "input spatial size too small"
    K1 = 16 * in_channels
    L1 = Hs1 * Ws1
    R1 = OH1 * Ws1                        # full-width conv1 output rows / image
    L1p = _round_up(R1 + Ws1 + 2, 8)      # covers the furthest tap read
    L2 = Hs2 * Ws2
    R2 = OH2 * Ws2                        # full-width conv2 output rows / image
    R2e = _round_up(R2 + 2, 8)            # margin so conv3 taps stay in range
    L2p = _round_up(R2e + Ws2 + 2, 8)
    R3 = OH3 * Ws2                        # full-width conv3 output rows / image
    feat = 64 * OH3 * OW3
    Keff = R3 * 64
    return _Geom(in_channels, Hs1, Ws1, OH1, OW1, Hs2, Ws2, OH2, OW2,
                 OH3, OW3, K1, L1, L1p, R1, L2, L2p, R2, R2e, R3, feat, Keff)


# ----------------------------------------------------------------------------
# Parameters: PyTorch-layout init (mirrors AtariBodyAC.__init__) + a one-time
# preparation step that builds the kernel-ready (bf16, pre-permuted) weights.
# ----------------------------------------------------------------------------
def init_params(key, in_channels, feat_size, body_out=512):
    gain = 2.0 ** 0.5                     # nn.init.calculate_gain('relu')
    ortho = jax.nn.initializers.orthogonal(scale=gain)
    k1, k2, k3, k4 = jax.random.split(key, 4)
    return {
        "conv1_w": ortho(k1, (32, in_channels, 8, 8), jnp.float32),
        "conv1_b": jnp.zeros((32,), jnp.float32),
        "conv2_w": ortho(k2, (64, 32, 4, 4), jnp.float32),
        "conv2_b": jnp.zeros((64,), jnp.float32),
        "conv3_w": ortho(k3, (64, 64, 3, 3), jnp.float32),
        "conv3_b": jnp.zeros((64,), jnp.float32),
        "fc1_w": ortho(k4, (body_out, feat_size), jnp.float32),  # (out, feat)
        "fc1_b": jnp.zeros((body_out,), jnp.float32),
    }


def prepare_params(params, input_shape):
    """One-time weight re-layout (review item: no per-forward transposes)."""
    C0, H, W = input_shape
    g = _geometry(C0, H, W)

    # conv1: k=8,s=4 over NHWC  ->  2x2 stride-1 taps over the s2d(4) input.
    w1 = jnp.transpose(params["conv1_w"], (2, 3, 1, 0))      # (8, 8, C0, 32)
    w1 = w1.reshape(2, 4, 2, 4, C0, 32)                      # (ah,rh,aw,rw,c,o)
    w1 = jnp.transpose(w1, (0, 2, 1, 3, 4, 5))               # (ah,aw,rh,rw,c,o)
    w1m = w1.reshape(4, 16 * C0, 32).astype(jnp.bfloat16)

    # conv2: k=4,s=2  ->  2x2 stride-1 taps over the s2d(2) conv1 output.
    w2 = jnp.transpose(params["conv2_w"], (2, 3, 1, 0))      # (4, 4, 32, 64)
    w2 = w2.reshape(2, 2, 2, 2, 32, 64)
    w2 = jnp.transpose(w2, (0, 2, 1, 3, 4, 5))
    w2m = w2.reshape(4, 128, 64).astype(jnp.bfloat16)

    # conv3: k=3,s=1  ->  9 taps.
    w3m = jnp.transpose(params["conv3_w"], (2, 3, 1, 0)).reshape(9, 64, 64)
    w3m = w3m.astype(jnp.bfloat16)

    # fc1: fold the PyTorch NCHW flatten order and the garbage-column mask of
    # the flat (full-width) conv3 output into the weight, once.
    Wfc = params["fc1_w"]                                    # (out, feat)
    body_out = Wfc.shape[0]
    assert Wfc.shape[1] == g.feat, (Wfc.shape, g.feat)
    Wr = Wfc.reshape(body_out, 64, g.OH3, g.OW3)             # (u, c, oh, ow)
    Wr = jnp.transpose(Wr, (2, 3, 1, 0))                     # (oh, ow, c, u)
    Wr = jnp.pad(Wr, ((0, 0), (0, g.Ws2 - g.OW3), (0, 0), (0, 0)))
    wfm = Wr.reshape(g.Keff, body_out).astype(jnp.bfloat16)

    kparams = {
        "w1": w1m, "b1": params["conv1_b"].reshape(1, 32).astype(jnp.float32),
        "w2": w2m, "b2": params["conv2_b"].reshape(1, 64).astype(jnp.float32),
        "w3": w3m, "b3": params["conv3_b"].reshape(1, 64).astype(jnp.float32),
        "wf": wfm, "bf": params["fc1_b"].reshape(1, body_out).astype(jnp.float32),
    }
    return g, kparams


_COMPILER_PARAMS = pltpu.CompilerParams(
    dimension_semantics=("parallel",),            # use both TCs on v7x
    vmem_limit_bytes=32 * 1024 * 1024,            # explicit, fits all gens
)


# ----------------------------------------------------------------------------
# Kernel A: conv1 + bias + ReLU.  Input is the space-to-depth(4), spatially
# flattened image; the 4 taps of the resulting 2x2 stride-1 conv are
# accumulated from VMEM slices (no im2col materialization anywhere).
# ----------------------------------------------------------------------------
def _conv1_call(x1, w1, b1, g, TB):
    N = x1.shape[0]
    R1, K1, L1p, Ws1 = g.R1, g.K1, g.L1p, g.Ws1
    taps = (0, 1, Ws1, Ws1 + 1)

    def kernel(x_ref, w_ref, b_ref, o_ref):
        bias = b_ref[...]                                    # (1, 32) f32
        for img in range(TB):                                # static unroll
            acc = jnp.zeros((R1, 32), jnp.float32)
            for t, d in enumerate(taps):
                acc = acc + jnp.dot(x_ref[img, d:d + R1, :], w_ref[t],
                                    preferred_element_type=jnp.float32)
            o_ref[img] = jnp.maximum(acc + bias, 0.0).astype(o_ref.dtype)

    return pl.pallas_call(
        kernel,
        out_shape=jax.ShapeDtypeStruct((N, R1, 32), jnp.bfloat16),
        grid=(N // TB,),
        in_specs=[
            pl.BlockSpec((TB, L1p, K1), lambda i: (i, 0, 0)),
            pl.BlockSpec((4, K1, 32), lambda i: (0, 0, 0)),
            pl.BlockSpec((1, 32), lambda i: (0, 0)),
        ],
        out_specs=pl.BlockSpec((TB, R1, 32), lambda i: (i, 0, 0)),
        compiler_params=_COMPILER_PARAMS,
    )(x1, w1, b1)


# ----------------------------------------------------------------------------
# Kernel B: conv2 + conv3 fused (both stride-1 after the wrapper s2d(2)); the
# conv2 activation never leaves VMEM (scratch buffer).
# ----------------------------------------------------------------------------
def _conv23_call(x2, w2, b2, w3, b3, g, TB):
    N = x2.shape[0]
    Ws2, R2e, R3, L2p = g.Ws2, g.R2e, g.R3, g.L2p
    taps2 = (0, 1, Ws2, Ws2 + 1)
    taps3 = tuple(jh * Ws2 + jw for jh in range(3) for jw in range(3))

    def kernel(x_ref, w2_ref, b2_ref, w3_ref, b3_ref, o_ref, y2_ref):
        bias2 = b2_ref[...]                                  # (1, 64) f32
        bias3 = b3_ref[...]                                  # (1, 64) f32
        for img in range(TB):                                # static unroll
            acc2 = jnp.zeros((R2e, 64), jnp.float32)
            for t, d in enumerate(taps2):
                acc2 = acc2 + jnp.dot(x_ref[img, d:d + R2e, :], w2_ref[t],
                                      preferred_element_type=jnp.float32)
            # conv2 activation stays in VMEM (never written to HBM).
            y2_ref[...] = jnp.maximum(acc2 + bias2, 0.0).astype(y2_ref.dtype)

            acc3 = jnp.zeros((R3, 64), jnp.float32)
            for t, d in enumerate(taps3):
                acc3 = acc3 + jnp.dot(y2_ref[d:d + R3, :], w3_ref[t],
                                      preferred_element_type=jnp.float32)
            o_ref[img] = jnp.maximum(acc3 + bias3, 0.0).astype(o_ref.dtype)

    return pl.pallas_call(
        kernel,
        out_shape=jax.ShapeDtypeStruct((N, R3, 64), jnp.bfloat16),
        grid=(N // TB,),
        in_specs=[
            pl.BlockSpec((TB, L2p, 128), lambda i: (i, 0, 0)),
            pl.BlockSpec((4, 128, 64), lambda i: (0, 0, 0)),
            pl.BlockSpec((1, 64), lambda i: (0, 0)),
            pl.BlockSpec((9, 64, 64), lambda i: (0, 0, 0)),
            pl.BlockSpec((1, 64), lambda i: (0, 0)),
        ],
        out_specs=pl.BlockSpec((TB, R3, 64), lambda i: (i, 0, 0)),
        scratch_shapes=[pltpu.VMEM((R2e, 64), jnp.bfloat16)],
        compiler_params=_COMPILER_PARAMS,
    )(x2, w2, b2, w3, b3)


# ----------------------------------------------------------------------------
# Kernel C: fc1 as a lane-dense (N, 512) tiled GEMM over batch tiles.
# ----------------------------------------------------------------------------
def _fc1_call(x3, wf, bf, TM):
    N, Keff = x3.shape
    body_out = wf.shape[1]

    def kernel(x_ref, w_ref, b_ref, o_ref):
        acc = jnp.dot(x_ref[...], w_ref[...],
                      preferred_element_type=jnp.float32)
        o_ref[...] = jnp.maximum(acc + b_ref[...], 0.0).astype(o_ref.dtype)

    return pl.pallas_call(
        kernel,
        out_shape=jax.ShapeDtypeStruct((N, body_out), jnp.float32),
        grid=(N // TM,),
        in_specs=[
            pl.BlockSpec((TM, Keff), lambda i: (i, 0)),
            pl.BlockSpec((Keff, body_out), lambda i: (0, 0)),
            pl.BlockSpec((1, body_out), lambda i: (0, 0)),
        ],
        out_specs=pl.BlockSpec((TM, body_out), lambda i: (i, 0)),
        compiler_params=_COMPILER_PARAMS,
    )(x3, wf, bf)


# ----------------------------------------------------------------------------
# Forward pass (matches AtariBodyAC.forward; input is NCHW like PyTorch).
# ----------------------------------------------------------------------------
def atari_body_ac_forward(geom: _Geom, kparams, x_nchw, batch_tile=8):
    g = geom
    N, C0, H, W = x_nchw.shape
    assert C0 == g.C0 and H // 4 == g.Hs1 and W // 4 == g.Ws1
    TB = min(batch_tile, N)
    assert N % TB == 0, "batch must be divisible by the batch tile"
    TM = min(128, N)
    assert N % TM == 0, "batch must be divisible by the fc1 M tile"

    # XLA glue: NCHW -> NHWC -> space-to-depth(4) -> flat rows.  Pure layout
    # permutation, no data expansion (replaces the old HBM im2col).
    x = x_nchw.astype(jnp.bfloat16)
    x = jnp.transpose(x, (0, 2, 3, 1))                        # (N, H, W, C0)
    x = x.reshape(N, g.Hs1, 4, g.Ws1, 4, C0)
    x = jnp.transpose(x, (0, 1, 3, 2, 4, 5))                  # (N,Hs1,Ws1,4,4,C0)
    x = x.reshape(N, g.L1, g.K1)
    x1 = jnp.pad(x, ((0, 0), (0, g.L1p - g.L1), (0, 0)))

    # conv1 (+ bias + ReLU)
    y1 = _conv1_call(x1, kparams["w1"], kparams["b1"], g, TB)  # (N, R1, 32)

    # XLA glue: drop full-width garbage columns, space-to-depth(2), flat rows.
    y1 = y1.reshape(N, g.OH1, g.Ws1, 32)[:, :, : g.OW1, :]
    y1 = y1.reshape(N, g.Hs2, 2, g.Ws2, 2, 32)
    y1 = jnp.transpose(y1, (0, 1, 3, 2, 4, 5))
    x2 = y1.reshape(N, g.L2, 128)
    x2 = jnp.pad(x2, ((0, 0), (0, g.L2p - g.L2), (0, 0)))

    # conv2 + conv3 fused (conv2 activation VMEM-resident)
    y3 = _conv23_call(x2, kparams["w2"], kparams["b2"],
                      kparams["w3"], kparams["b3"], g, TB)     # (N, R3, 64)

    # fc1: the flatten is a free row-major reshape; the PyTorch NCHW view order
    # and the garbage-column mask are folded into the pre-permuted weight.
    x3 = y3.reshape(N, g.Keff)
    return _fc1_call(x3, kparams["wf"], kparams["bf"], TM)     # (N, 512) f32


# ----------------------------------------------------------------------------
# Pure-JAX/XLA reference of the PyTorch forward (for validation only).
# ----------------------------------------------------------------------------
def _reference_forward(params, x):
    def conv(z, w, b, s):
        y = jax.lax.conv_general_dilated(
            z, w, window_strides=(s, s), padding="VALID",
            dimension_numbers=("NCHW", "OIHW", "NCHW"))
        return jax.nn.relu(y + b.reshape(1, -1, 1, 1))

    y = conv(x, params["conv1_w"], params["conv1_b"], 4)
    y = conv(y, params["conv2_w"], params["conv2_b"], 2)
    y = conv(y, params["conv3_w"], params["conv3_b"], 1)
    y = y.reshape(y.shape[0], -1)                              # NCHW flatten
    return jax.nn.relu(y @ params["fc1_w"].T + params["fc1_b"])


if __name__ == "__main__":
    # Small-but-valid shapes: batch=2, channels=4, spatial 36x36.
    # conv chain: 36 -(8,s4)-> 8 -(4,s2)-> 3 -(3,s1)-> 1  => feat = 64*1*1 = 64
    batch, in_ch, H, W = 2, 4, 36, 36
    body_out = 512

    geom0 = _geometry(in_ch, H, W)
    key = jax.random.PRNGKey(0)
    pkey, xkey = jax.random.split(key)
    params = init_params(pkey, in_ch, geom0.feat, body_out)
    geom, kparams = prepare_params(params, (in_ch, H, W))
    x = jax.random.normal(xkey, (batch, in_ch, H, W), jnp.float32)

    fwd = jax.jit(lambda kp, xx: atari_body_ac_forward(geom, kp, xx))
    out = jax.block_until_ready(fwd(kparams, x))

    assert out.shape == (batch, body_out), out.shape
    assert bool(jnp.all(out >= 0.0)), "ReLU output must be non-negative"

    # Validate against the f32 XLA reference (bf16 MXU path => loose tolerance).
    ref = _reference_forward(params, x)
    err = float(jnp.max(jnp.abs(out - ref)) / (jnp.max(jnp.abs(ref)) + 1e-8))
    assert err < 0.08, f"mismatch vs reference (rel-max err {err:.4f})"
    print("KERNEL_OK")
</pallas_src>

<mosaic_0001>
module attributes {stable_mosaic.version = 11 : i64} {
  func.func @kernel(%arg0: i32, %arg1: memref<2x88x64xbf16, #tpu.memory_space<vmem>>, %arg2: memref<4x64x32xbf16, #tpu.memory_space<vmem>>, %arg3: memref<1x32xf32, #tpu.memory_space<vmem>>, %arg4: memref<2x72x32xbf16, #tpu.memory_space<vmem>>) attributes {dimension_semantics = [#tpu.dimension_semantics<parallel>], iteration_bounds = array<i64: 1>, scalar_prefetch = 0 : i64, scratch_operands = 0 : i64, tpu.core_type = #tpu.core_type<tc>, window_params = [{transform_indices = @transform_0, window_bounds = array<i64: 2, 88, 64>}, {pipeline_mode = #tpu.pipeline_mode<synchronous>, transform_indices = @transform_1, window_bounds = array<i64: 4, 64, 32>}, {pipeline_mode = #tpu.pipeline_mode<synchronous>, transform_indices = @transform_2, window_bounds = array<i64: 1, 32>}, {transform_indices = @transform_3, window_bounds = array<i64: 2, 72, 32>}]} {
    %c0 = arith.constant 0 : index
    %c0_0 = arith.constant 0 : index
    %0 = vector.load %arg3[%c0, %c0_0] : memref<1x32xf32, #tpu.memory_space<vmem>>, vector<1x32xf32>
    %cst = arith.constant 0.000000e+00 : f32
    %1 = vector.broadcast %cst : f32 to vector<72x32xf32>
    %c0_1 = arith.constant 0 : index
    %c0_2 = arith.constant 0 : index
    %c0_3 = arith.constant 0 : index
    %2 = vector.load %arg1[%c0_1, %c0_2, %c0_3] : memref<2x88x64xbf16, #tpu.memory_space<vmem>>, vector<1x72x64xbf16>
    %3 = vector.shape_cast %2 : vector<1x72x64xbf16> to vector<72x64xbf16>
    %c0_4 = arith.constant 0 : index
    %c0_5 = arith.constant 0 : index
    %c0_6 = arith.constant 0 : index
    %4 = vector.load %arg2[%c0_4, %c0_5, %c0_6] : memref<4x64x32xbf16, #tpu.memory_space<vmem>>, vector<1x64x32xbf16>
    %5 = vector.shape_cast %4 : vector<1x64x32xbf16> to vector<64x32xbf16>
    %cst_7 = arith.constant dense<0.000000e+00> : vector<72x32xf32>
    %6 = tpu.matmul %3, %5, %cst_7 {dimension_numbers = #tpu.dot_dimension_numbers<[1], [0], [0], [1], [0, 0, 1, 1], [], []>} : vector<72x64xbf16>, vector<64x32xbf16>, vector<72x32xf32> -> vector<72x32xf32>
    %7 = arith.addf %1, %6 : vector<72x32xf32>
    %c0_8 = arith.constant 0 : index
    %c1 = arith.constant 1 : index
    %c0_9 = arith.constant 0 : index
    %8 = vector.load %arg1[%c0_8, %c1, %c0_9] : memref<2x88x64xbf16, #tpu.memory_space<vmem>>, vector<1x72x64xbf16>
    %9 = vector.shape_cast %8 : vector<1x72x64xbf16> to vector<72x64xbf16>
    %c1_10 = arith.constant 1 : index
    %c0_11 = arith.constant 0 : index
    %c0_12 = arith.constant 0 : index
    %10 = vector.load %arg2[%c1_10, %c0_11, %c0_12] : memref<4x64x32xbf16, #tpu.memory_space<vmem>>, vector<1x64x32xbf16>
    %11 = vector.shape_cast %10 : vector<1x64x32xbf16> to vector<64x32xbf16>
    %cst_13 = arith.constant dense<0.000000e+00> : vector<72x32xf32>
    %12 = tpu.matmul %9, %11, %cst_13 {dimension_numbers = #tpu.dot_dimension_numbers<[1], [0], [0], [1], [0, 0, 1, 1], [], []>} : vector<72x64xbf16>, vector<64x32xbf16>, vector<72x32xf32> -> vector<72x32xf32>
    %13 = arith.addf %7, %12 : vector<72x32xf32>
    %c0_14 = arith.constant 0 : index
    %c9 = arith.constant 9 : index
    %c0_15 = arith.constant 0 : index
    %14 = vector.load %arg1[%c0_14, %c9, %c0_15] : memref<2x88x64xbf16, #tpu.memory_space<vmem>>, vector<1x72x64xbf16>
    %15 = vector.shape_cast %14 : vector<1x72x64xbf16> to vector<72x64xbf16>
    %c2 = arith.constant 2 : index
    %c0_16 = arith.constant 0 : index
    %c0_17 = arith.constant 0 : index
    %16 = vector.load %arg2[%c2, %c0_16, %c0_17] : memref<4x64x32xbf16, #tpu.memory_space<vmem>>, vector<1x64x32xbf16>
    %17 = vector.shape_cast %16 : vector<1x64x32xbf16> to vector<64x32xbf16>
    %cst_18 = arith.constant dense<0.000000e+00> : vector<72x32xf32>
    %18 = tpu.matmul %15, %17, %cst_18 {dimension_numbers = #tpu.dot_dimension_numbers<[1], [0], [0], [1], [0, 0, 1, 1], [], []>} : vector<72x64xbf16>, vector<64x32xbf16>, vector<72x32xf32> -> vector<72x32xf32>
    %19 = arith.addf %13, %18 : vector<72x32xf32>
    %c0_19 = arith.constant 0 : index
    %c10 = arith.constant 10 : index
    %c0_20 = arith.constant 0 : index
    %20 = vector.load %arg1[%c0_19, %c10, %c0_20] : memref<2x88x64xbf16, #tpu.memory_space<vmem>>, vector<1x72x64xbf16>
    %21 = vector.shape_cast %20 : vector<1x72x64xbf16> to vector<72x64xbf16>
    %c3 = arith.constant 3 : index
    %c0_21 = arith.constant 0 : index
    %c0_22 = arith.constant 0 : index
    %22 = vector.load %arg2[%c3, %c0_21, %c0_22] : memref<4x64x32xbf16, #tpu.memory_space<vmem>>, vector<1x64x32xbf16>
    %23 = vector.shape_cast %22 : vector<1x64x32xbf16> to vector<64x32xbf16>
    %cst_23 = arith.constant dense<0.000000e+00> : vector<72x32xf32>
    %24 = tpu.matmul %21, %23, %cst_23 {dimension_numbers = #tpu.dot_dimension_numbers<[1], [0], [0], [1], [0, 0, 1, 1], [], []>} : vector<72x64xbf16>, vector<64x32xbf16>, vector<72x32xf32> -> vector<72x32xf32>
    %25 = arith.addf %19, %24 : vector<72x32xf32>
    %26 = vector.broadcast %0 : vector<1x32xf32> to vector<72x32xf32>
    %27 = arith.addf %25, %26 : vector<72x32xf32>
    %cst_24 = arith.constant 0.000000e+00 : f32
    %28 = vector.broadcast %cst_24 : f32 to vector<72x32xf32>
    %29 = arith.maximumf %27, %28 : vector<72x32xf32>
    %30 = arith.truncf %29 : vector<72x32xf32> to vector<72x32xbf16>
    %c0_25 = arith.constant 0 : index
    %c0_26 = arith.constant 0 : index
    %c0_27 = arith.constant 0 : index
    %31 = vector.load %arg4[%c0_25, %c0_26, %c0_27] : memref<2x72x32xbf16, #tpu.memory_space<vmem>>, vector<1x72x32xbf16>
    %32 = vector.shape_cast %31 : vector<1x72x32xbf16> to vector<72x32xbf16>
    %33 = vector.shape_cast %30 : vector<72x32xbf16> to vector<1x72x32xbf16>
    tpu.vector_store %arg4[%c0_25, %c0_26, %c0_27], %33 {strides = array<i32>} : memref<2x72x32xbf16, #tpu.memory_space<vmem>>, vector<1x72x32xbf16>,
    %cst_28 = arith.constant 0.000000e+00 : f32
    %34 = vector.broadcast %cst_28 : f32 to vector<72x32xf32>
    %c1_29 = arith.constant 1 : index
    %c0_30 = arith.constant 0 : index
    %c0_31 = arith.constant 0 : index
    %35 = vector.load %arg1[%c1_29, %c0_30, %c0_31] : memref<2x88x64xbf16, #tpu.memory_space<vmem>>, vector<1x72x64xbf16>
    %36 = vector.shape_cast %35 : vector<1x72x64xbf16> to vector<72x64xbf16>
    %c0_32 = arith.constant 0 : index
    %c0_33 = arith.constant 0 : index
    %c0_34 = arith.constant 0 : index
    %37 = vector.load %arg2[%c0_32, %c0_33, %c0_34] : memref<4x64x32xbf16, #tpu.memory_space<vmem>>, vector<1x64x32xbf16>
    %38 = vector.shape_cast %37 : vector<1x64x32xbf16> to vector<64x32xbf16>
    %cst_35 = arith.constant dense<0.000000e+00> : vector<72x32xf32>
    %39 = tpu.matmul %36, %38, %cst_35 {dimension_numbers = #tpu.dot_dimension_numbers<[1], [0], [0], [1], [0, 0, 1, 1], [], []>} : vector<72x64xbf16>, vector<64x32xbf16>, vector<72x32xf32> -> vector<72x32xf32>
    %40 = arith.addf %34, %39 : vector<72x32xf32>
    %c1_36 = arith.constant 1 : index
    %c1_37 = arith.constant 1 : index
    %c0_38 = arith.constant 0 : index
    %41 = vector.load %arg1[%c1_36, %c1_37, %c0_38] : memref<2x88x64xbf16, #tpu.memory_space<vmem>>, vector<1x72x64xbf16>
    %42 = vector.shape_cast %41 : vector<1x72x64xbf16> to vector<72x64xbf16>
    %c1_39 = arith.constant 1 : index
    %c0_40 = arith.constant 0 : index
    %c0_41 = arith.constant 0 : index
    %43 = vector.load %arg2[%c1_39, %c0_40, %c0_41] : memref<4x64x32xbf16, #tpu.memory_space<vmem>>, vector<1x64x32xbf16>
    %44 = vector.shape_cast %43 : vector<1x64x32xbf16> to vector<64x32xbf16>
    %cst_42 = arith.constant dense<0.000000e+00> : vector<72x32xf32>
    %45 = tpu.matmul %42, %44, %cst_42 {dimension_numbers = #tpu.dot_dimension_numbers<[1], [0], [0], [1], [0, 0, 1, 1], [], []>} : vector<72x64xbf16>, vector<64x32xbf16>, vector<72x32xf32> -> vector<72x32xf32>
    %46 = arith.addf %40, %45 : vector<72x32xf32>
    %c1_43 = arith.constant 1 : index
    %c9_44 = arith.constant 9 : index
    %c0_45 = arith.constant 0 : index
    %47 = vector.load %arg1[%c1_43, %c9_44, %c0_45] : memref<2x88x64xbf16, #tpu.memory_space<vmem>>, vector<1x72x64xbf16>
    %48 = vector.shape_cast %47 : vector<1x72x64xbf16> to vector<72x64xbf16>
    %c2_46 = arith.constant 2 : index
    %c0_47 = arith.constant 0 : index
    %c0_48 = arith.constant 0 : index
    %49 = vector.load %arg2[%c2_46, %c0_47, %c0_48] : memref<4x64x32xbf16, #tpu.memory_space<vmem>>, vector<1x64x32xbf16>
    %50 = vector.shape_cast %49 : vector<1x64x32xbf16> to vector<64x32xbf16>
    %cst_49 = arith.constant dense<0.000000e+00> : vector<72x32xf32>
    %51 = tpu.matmul %48, %50, %cst_49 {dimension_numbers = #tpu.dot_dimension_numbers<[1], [0], [0], [1], [0, 0, 1, 1], [], []>} : vector<72x64xbf16>, vector<64x32xbf16>, vector<72x32xf32> -> vector<72x32xf32>
    %52 = arith.addf %46, %51 : vector<72x32xf32>
    %c1_50 = arith.constant 1 : index
    %c10_51 = arith.constant 10 : index
    %c0_52 = arith.constant 0 : index
    %53 = vector.load %arg1[%c1_50, %c10_51, %c0_52] : memref<2x88x64xbf16, #tpu.memory_space<vmem>>, vector<1x72x64xbf16>
    %54 = vector.shape_cast %53 : vector<1x72x64xbf16> to vector<72x64xbf16>
    %c3_53 = arith.constant 3 : index
    %c0_54 = arith.constant 0 : index
    %c0_55 = arith.constant 0 : index
    %55 = vector.load %arg2[%c3_53, %c0_54, %c0_55] : memref<4x64x32xbf16, #tpu.memory_space<vmem>>, vector<1x64x32xbf16>
    %56 = vector.shape_cast %55 : vector<1x64x32xbf16> to vector<64x32xbf16>
    %cst_56 = arith.constant dense<0.000000e+00> : vector<72x32xf32>
    %57 = tpu.matmul %54, %56, %cst_56 {dimension_numbers = #tpu.dot_dimension_numbers<[1], [0], [0], [1], [0, 0, 1, 1], [], []>} : vector<72x64xbf16>, vector<64x32xbf16>, vector<72x32xf32> -> vector<72x32xf32>
    %58 = arith.addf %52, %57 : vector<72x32xf32>
    %59 = vector.broadcast %0 : vector<1x32xf32> to vector<72x32xf32>
    %60 = arith.addf %58, %59 : vector<72x32xf32>
    %cst_57 = arith.constant 0.000000e+00 : f32
    %61 = vector.broadcast %cst_57 : f32 to vector<72x32xf32>
    %62 = arith.maximumf %60, %61 : vector<72x32xf32>
    %63 = arith.truncf %62 : vector<72x32xf32> to vector<72x32xbf16>
    %c1_58 = arith.constant 1 : index
    %c0_59 = arith.constant 0 : index
    %c0_60 = arith.constant 0 : index
    %64 = vector.load %arg4[%c1_58, %c0_59, %c0_60] : memref<2x72x32xbf16, #tpu.memory_space<vmem>>, vector<1x72x32xbf16>
    %65 = vector.shape_cast %64 : vector<1x72x32xbf16> to vector<72x32xbf16>
    %66 = vector.shape_cast %63 : vector<72x32xbf16> to vector<1x72x32xbf16>
    tpu.vector_store %arg4[%c1_58, %c0_59, %c0_60], %66 {strides = array<i32>} : memref<2x72x32xbf16, #tpu.memory_space<vmem>>, vector<1x72x32xbf16>,
    return
  }
  func.func @transform_0(%arg0: i32) -> (i32, i32, i32) {
    %c0_i32 = arith.constant 0 : i32
    %c0_i32_0 = arith.constant 0 : i32
    %c0_i32_1 = arith.constant 0 : i32
    return %arg0, %c0_i32, %c0_i32_0 : i32, i32, i32
  }
  func.func @transform_1(%arg0: i32) -> (i32, i32, i32) {
    %c0_i32 = arith.constant 0 : i32
    %c0_i32_0 = arith.constant 0 : i32
    %c0_i32_1 = arith.constant 0 : i32
    %c0_i32_2 = arith.constant 0 : i32
    return %c0_i32, %c0_i32_0, %c0_i32_1 : i32, i32, i32
  }
  func.func @transform_2(%arg0: i32) -> (i32, i32) {
    %c0_i32 = arith.constant 0 : i32
    %c0_i32_0 = arith.constant 0 : i32
    %c0_i32_1 = arith.constant 0 : i32
    return %c0_i32, %c0_i32_0 : i32, i32
  }
  func.func @transform_3(%arg0: i32) -> (i32, i32, i32) {
    %c0_i32 = arith.constant 0 : i32
    %c0_i32_0 = arith.constant 0 : i32
    %c0_i32_1 = arith.constant 0 : i32
    return %arg0, %c0_i32, %c0_i32_0 : i32, i32, i32
  }
}

module attributes {stable_mosaic.version = 11 : i64} {
  func.func @kernel(%arg0: i32, %arg1: memref<2x24x128xbf16, #tpu.memory_space<vmem>>, %arg2: memref<4x128x64xbf16, #tpu.memory_space<vmem>>, %arg3: memref<1x64xf32, #tpu.memory_space<vmem>>, %arg4: memref<9x64x64xbf16, #tpu.memory_space<vmem>>, %arg5: memref<1x64xf32, #tpu.memory_space<vmem>>, %arg6: memref<2x4x64xbf16, #tpu.memory_space<vmem>>, %arg7: memref<16x64xbf16, #tpu.memory_space<vmem>>) attributes {dimension_semantics = [#tpu.dimension_semantics<parallel>], iteration_bounds = array<i64: 1>, scalar_prefetch = 0 : i64, scratch_operands = 1 : i64, tpu.core_type = #tpu.core_type<tc>, window_params = [{transform_indices = @transform_0, window_bounds = array<i64: 2, 24, 128>}, {pipeline_mode = #tpu.pipeline_mode<synchronous>, transform_indices = @transform_1, window_bounds = array<i64: 4, 128, 64>}, {pipeline_mode = #tpu.pipeline_mode<synchronous>, transform_indices = @transform_2, window_bounds = array<i64: 1, 64>}, {pipeline_mode = #tpu.pipeline_mode<synchronous>, transform_indices = @transform_3, window_bounds = array<i64: 9, 64, 64>}, {pipeline_mode = #tpu.pipeline_mode<synchronous>, transform_indices = @transform_4, window_bounds = array<i64: 1, 64>}, {transform_indices = @transform_5, window_bounds = array<i64: 2, 4, 64>}]} {
    %c0 = arith.constant 0 : index
    %c0_0 = arith.constant 0 : index
    %0 = vector.load %arg3[%c0, %c0_0] : memref<1x64xf32, #tpu.memory_space<vmem>>, vector<1x64xf32>
    %c0_1 = arith.constant 0 : index
    %c0_2 = arith.constant 0 : index
    %1 = vector.load %arg5[%c0_1, %c0_2] : memref<1x64xf32, #tpu.memory_space<vmem>>, vector<1x64xf32>
    %cst = arith.constant 0.000000e+00 : f32
    %2 = vector.broadcast %cst : f32 to vector<16x64xf32>
    %c0_3 = arith.constant 0 : index
    %c0_4 = arith.constant 0 : index
    %c0_5 = arith.constant 0 : index
    %3 = vector.load %arg1[%c0_3, %c0_4, %c0_5] : memref<2x24x128xbf16, #tpu.memory_space<vmem>>, vector<1x16x128xbf16>
    %4 = vector.shape_cast %3 : vector<1x16x128xbf16> to vector<16x128xbf16>
    %c0_6 = arith.constant 0 : index
    %c0_7 = arith.constant 0 : index
    %c0_8 = arith.constant 0 : index
    %5 = vector.load %arg2[%c0_6, %c0_7, %c0_8] : memref<4x128x64xbf16, #tpu.memory_space<vmem>>, vector<1x128x64xbf16>
    %6 = vector.shape_cast %5 : vector<1x128x64xbf16> to vector<128x64xbf16>
    %cst_9 = arith.constant dense<0.000000e+00> : vector<16x64xf32>
    %7 = tpu.matmul %4, %6, %cst_9 {dimension_numbers = #tpu.dot_dimension_numbers<[1], [0], [0], [1], [0, 0, 1, 1], [], []>} : vector<16x128xbf16>, vector<128x64xbf16>, vector<16x64xf32> -> vector<16x64xf32>
    %8 = arith.addf %2, %7 : vector<16x64xf32>
    %c0_10 = arith.constant 0 : index
    %c1 = arith.constant 1 : index
    %c0_11 = arith.constant 0 : index
    %9 = vector.load %arg1[%c0_10, %c1, %c0_11] : memref<2x24x128xbf16, #tpu.memory_space<vmem>>, vector<1x16x128xbf16>
    %10 = vector.shape_cast %9 : vector<1x16x128xbf16> to vector<16x128xbf16>
    %c1_12 = arith.constant 1 : index
    %c0_13 = arith.constant 0 : index
    %c0_14 = arith.constant 0 : index
    %11 = vector.load %arg2[%c1_12, %c0_13, %c0_14] : memref<4x128x64xbf16, #tpu.memory_space<vmem>>, vector<1x128x64xbf16>
    %12 = vector.shape_cast %11 : vector<1x128x64xbf16> to vector<128x64xbf16>
    %cst_15 = arith.constant dense<0.000000e+00> : vector<16x64xf32>
    %13 = tpu.matmul %10, %12, %cst_15 {dimension_numbers = #tpu.dot_dimension_numbers<[1], [0], [0], [1], [0, 0, 1, 1], [], []>} : vector<16x128xbf16>, vector<128x64xbf16>, vector<16x64xf32> -> vector<16x64xf32>
    %14 = arith.addf %8, %13 : vector<16x64xf32>
    %c0_16 = arith.constant 0 : index
    %c4 = arith.constant 4 : index
    %c0_17 = arith.constant 0 : index
    %15 = vector.load %arg1[%c0_16, %c4, %c0_17] : memref<2x24x128xbf16, #tpu.memory_space<vmem>>, vector<1x16x128xbf16>
    %16 = vector.shape_cast %15 : vector<1x16x128xbf16> to vector<16x128xbf16>
    %c2 = arith.constant 2 : index
    %c0_18 = arith.constant 0 : index
    %c0_19 = arith.constant 0 : index
    %17 = vector.load %arg2[%c2, %c0_18, %c0_19] : memref<4x128x64xbf16, #tpu.memory_space<vmem>>, vector<1x128x64xbf16>
    %18 = vector.shape_cast %17 : vector<1x128x64xbf16> to vector<128x64xbf16>
    %cst_20 = arith.constant dense<0.000000e+00> : vector<16x64xf32>
    %19 = tpu.matmul %16, %18, %cst_20 {dimension_numbers = #tpu.dot_dimension_numbers<[1], [0], [0], [1], [0, 0, 1, 1], [], []>} : vector<16x128xbf16>, vector<128x64xbf16>, vector<16x64xf32> -> vector<16x64xf32>
    %20 = arith.addf %14, %19 : vector<16x64xf32>
    %c0_21 = arith.constant 0 : index
    %c5 = arith.constant 5 : index
    %c0_22 = arith.constant 0 : index
    %21 = vector.load %arg1[%c0_21, %c5, %c0_22] : memref<2x24x128xbf16, #tpu.memory_space<vmem>>, vector<1x16x128xbf16>
    %22 = vector.shape_cast %21 : vector<1x16x128xbf16> to vector<16x128xbf16>
    %c3 = arith.constant 3 : index
    %c0_23 = arith.constant 0 : index
    %c0_24 = arith.constant 0 : index
    %23 = vector.load %arg2[%c3, %c0_23, %c0_24] : memref<4x128x64xbf16, #tpu.memory_space<vmem>>, vector<1x128x64xbf16>
    %24 = vector.shape_cast %23 : vector<1x128x64xbf16> to vector<128x64xbf16>
    %cst_25 = arith.constant dense<0.000000e+00> : vector<16x64xf32>
    %25 = tpu.matmul %22, %24, %cst_25 {dimension_numbers = #tpu.dot_dimension_numbers<[1], [0], [0], [1], [0, 0, 1, 1], [], []>} : vector<16x128xbf16>, vector<128x64xbf16>, vector<16x64xf32> -> vector<16x64xf32>
    %26 = arith.addf %20, %25 : vector<16x64xf32>
    %27 = vector.broadcast %0 : vector<1x64xf32> to vector<16x64xf32>
    %28 = arith.addf %26, %27 : vector<16x64xf32>
    %cst_26 = arith.constant 0.000000e+00 : f32
    %29 = vector.broadcast %cst_26 : f32 to vector<16x64xf32>
    %30 = arith.maximumf %28, %29 : vector<16x64xf32>
    %31 = arith.truncf %30 : vector<16x64xf32> to vector<16x64xbf16>
    %c0_27 = arith.constant 0 : index
    %c0_28 = arith.constant 0 : index
    %32 = vector.load %arg7[%c0_27, %c0_28] : memref<16x64xbf16, #tpu.memory_space<vmem>>, vector<16x64xbf16>
    tpu.vector_store %arg7[%c0_27, %c0_28], %31 {strides = array<i32>} : memref<16x64xbf16, #tpu.memory_space<vmem>>, vector<16x64xbf16>,
    %cst_29 = arith.constant 0.000000e+00 : f32
    %33 = vector.broadcast %cst_29 : f32 to vector<4x64xf32>
    %c0_30 = arith.constant 0 : index
    %c0_31 = arith.constant 0 : index
    %34 = vector.load %arg7[%c0_30, %c0_31] : memref<16x64xbf16, #tpu.memory_space<vmem>>, vector<4x64xbf16>
    %c0_32 = arith.constant 0 : index
    %c0_33 = arith.constant 0 : index
    %c0_34 = arith.constant 0 : index
    %35 = vector.load %arg4[%c0_32, %c0_33, %c0_34] : memref<9x64x64xbf16, #tpu.memory_space<vmem>>, vector<1x64x64xbf16>
    %36 = vector.shape_cast %35 : vector<1x64x64xbf16> to vector<64x64xbf16>
    %cst_35 = arith.constant dense<0.000000e+00> : vector<4x64xf32>
    %37 = tpu.matmul %34, %36, %cst_35 {dimension_numbers = #tpu.dot_dimension_numbers<[1], [0], [0], [1], [0, 0, 1, 1], [], []>} : vector<4x64xbf16>, vector<64x64xbf16>, vector<4x64xf32> -> vector<4x64xf32>
    %38 = arith.addf %33, %37 : vector<4x64xf32>
    %c1_36 = arith.constant 1 : index
    %c0_37 = arith.constant 0 : index
    %39 = vector.load %arg7[%c1_36, %c0_37] : memref<16x64xbf16, #tpu.memory_space<vmem>>, vector<4x64xbf16>
    %c1_38 = arith.constant 1 : index
    %c0_39 = arith.constant 0 : index
    %c0_40 = arith.constant 0 : index
    %40 = vector.load %arg4[%c1_38, %c0_39, %c0_40] : memref<9x64x64xbf16, #tpu.memory_space<vmem>>, vector<1x64x64xbf16>
    %41 = vector.shape_cast %40 : vector<1x64x64xbf16> to vector<64x64xbf16>
    %cst_41 = arith.constant dense<0.000000e+00> : vector<4x64xf32>
    %42 = tpu.matmul %39, %41, %cst_41 {dimension_numbers = #tpu.dot_dimension_numbers<[1], [0], [0], [1], [0, 0, 1, 1], [], []>} : vector<4x64xbf16>, vector<64x64xbf16>, vector<4x64xf32> -> vector<4x64xf32>
    %43 = arith.addf %38, %42 : vector<4x64xf32>
    %c2_42 = arith.constant 2 : index
    %c0_43 = arith.constant 0 : index
    %44 = vector.load %arg7[%c2_42, %c0_43] : memref<16x64xbf16, #tpu.memory_space<vmem>>, vector<4x64xbf16>
    %c2_44 = arith.constant 2 : index
    %c0_45 = arith.constant 0 : index
    %c0_46 = arith.constant 0 : index
    %45 = vector.load %arg4[%c2_44, %c0_45, %c0_46] : memref<9x64x64xbf16, #tpu.memory_space<vmem>>, vector<1x64x64xbf16>
    %46 = vector.shape_cast %45 : vector<1x64x64xbf16> to vector<64x64xbf16>
    %cst_47 = arith.constant dense<0.000000e+00> : vector<4x64xf32>
    %47 = tpu.matmul %44, %46, %cst_47 {dimension_numbers = #tpu.dot_dimension_numbers<[1], [0], [0], [1], [0, 0, 1, 1], [], []>} : vector<4x64xbf16>, vector<64x64xbf16>, vector<4x64xf32> -> vector<4x64xf32>
    %48 = arith.addf %43, %47 : vector<4x64xf32>
    %c4_48 = arith.constant 4 : index
    %c0_49 = arith.constant 0 : index
    %49 = vector.load %arg7[%c4_48, %c0_49] : memref<16x64xbf16, #tpu.memory_space<vmem>>, vector<4x64xbf16>
    %c3_50 = arith.constant 3 : index
    %c0_51 = arith.constant 0 : index
    %c0_52 = arith.constant 0 : index
    %50 = vector.load %arg4[%c3_50, %c0_51, %c0_52] : memref<9x64x64xbf16, #tpu.memory_space<vmem>>, vector<1x64x64xbf16>
    %51 = vector.shape_cast %50 : vector<1x64x64xbf16> to vector<64x64xbf16>
    %cst_53 = arith.constant dense<0.000000e+00> : vector<4x64xf32>
    %52 = tpu.matmul %49, %51, %cst_53 {dimension_numbers = #tpu.dot_dimension_numbers<[1], [0], [0], [1], [0, 0, 1, 1], [], []>} : vector<4x64xbf16>, vector<64x64xbf16>, vector<4x64xf32> -> vector<4x64xf32>
    %53 = arith.addf %48, %52 : vector<4x64xf32>
    %c5_54 = arith.constant 5 : index
    %c0_55 = arith.constant 0 : index
    %54 = vector.load %arg7[%c5_54, %c0_55] : memref<16x64xbf16, #tpu.memory_space<vmem>>, vector<4x64xbf16>
    %c4_56 = arith.constant 4 : index
    %c0_57 = arith.constant 0 : index
    %c0_58 = arith.constant 0 : index
    %55 = vector.load %arg4[%c4_56, %c0_57, %c0_58] : memref<9x64x64xbf16, #tpu.memory_space<vmem>>, vector<1x64x64xbf16>
    %56 = vector.shape_cast %55 : vector<1x64x64xbf16> to vector<64x64xbf16>
    %cst_59 = arith.constant dense<0.000000e+00> : vector<4x64xf32>
    %57 = tpu.matmul %54, %56, %cst_59 {dimension_numbers = #tpu.dot_dimension_numbers<[1], [0], [0], [1], [0, 0, 1, 1], [], []>} : vector<4x64xbf16>, vector<64x64xbf16>, vector<4x64xf32> -> vector<4x64xf32>
    %58 = arith.addf %53, %57 : vector<4x64xf32>
    %c6 = arith.constant 6 : index
    %c0_60 = arith.constant 0 : index
    %59 = vector.load %arg7[%c6, %c0_60] : memref<16x64xbf16, #tpu.memory_space<vmem>>, vector<4x64xbf16>
    %c5_61 = arith.constant 5 : index
    %c0_62 = arith.constant 0 : index
    %c0_63 = arith.constant 0 : index
    %60 = vector.load %arg4[%c5_61, %c0_62, %c0_63] : memref<9x64x64xbf16, #tpu.memory_space<vmem>>, vector<1x64x64xbf16>
    %61 = vector.shape_cast %60 : vector<1x64x64xbf16> to vector<64x64xbf16>
    %cst_64 = arith.constant dense<0.000000e+00> : vector<4x64xf32>
    %62 = tpu.matmul %59, %61, %cst_64 {dimension_numbers = #tpu.dot_dimension_numbers<[1], [0], [0], [1], [0, 0, 1, 1], [], []>} : vector<4x64xbf16>, vector<64x64xbf16>, vector<4x64xf32> -> vector<4x64xf32>
    %63 = arith.addf %58, %62 : vector<4x64xf32>
    %c8 = arith.constant 8 : index
    %c0_65 = arith.constant 0 : index
    %64 = vector.load %arg7[%c8, %c0_65] : memref<16x64xbf16, #tpu.memory_space<vmem>>, vector<4x64xbf16>
    %c6_66 = arith.constant 6 : index
    %c0_67 = arith.constant 0 : index
    %c0_68 = arith.constant 0 : index
    %65 = vector.load %arg4[%c6_66, %c0_67, %c0_68] : memref<9x64x64xbf16, #tpu.memory_space<vmem>>, vector<1x64x64xbf16>
    %66 = vector.shape_cast %65 : vector<1x64x64xbf16> to vector<64x64xbf16>
    %cst_69 = arith.constant dense<0.000000e+00> : vector<4x64xf32>
    %67 = tpu.matmul %64, %66, %cst_69 {dimension_numbers = #tpu.dot_dimension_numbers<[1], [0], [0], [1], [0, 0, 1, 1], [], []>} : vector<4x64xbf16>, vector<64x64xbf16>, vector<4x64xf32> -> vector<4x64xf32>
    %68 = arith.addf %63, %67 : vector<4x64xf32>
    %c9 = arith.constant 9 : index
    %c0_70 = arith.constant 0 : index
    %69 = vector.load %arg7[%c9, %c0_70] : memref<16x64xbf16, #tpu.memory_space<vmem>>, vector<4x64xbf16>
    %c7 = arith.constant 7 : index
    %c0_71 = arith.constant 0 : index
    %c0_72 = arith.constant 0 : index
    %70 = vector.load %arg4[%c7, %c0_71, %c0_72] : memref<9x64x64xbf16, #tpu.memory_space<vmem>>, vector<1x64x64xbf16>
    %71 = vector.shape_cast %70 : vector<1x64x64xbf16> to vector<64x64xbf16>
    %cst_73 = arith.constant dense<0.000000e+00> : vector<4x64xf32>
    %72 = tpu.matmul %69, %71, %cst_73 {dimension_numbers = #tpu.dot_dimension_numbers<[1], [0], [0], [1], [0, 0, 1, 1], [], []>} : vector<4x64xbf16>, vector<64x64xbf16>, vector<4x64xf32> -> vector<4x64xf32>
    %73 = arith.addf %68, %72 : vector<4x64xf32>
    %c10 = arith.constant 10 : index
    %c0_74 = arith.constant 0 : index
    %74 = vector.load %arg7[%c10, %c0_74] : memref<16x64xbf16, #tpu.memory_space<vmem>>, vector<4x64xbf16>
    %c8_75 = arith.constant 8 : index
    %c0_76 = arith.constant 0 : index
    %c0_77 = arith.constant 0 : index
    %75 = vector.load %arg4[%c8_75, %c0_76, %c0_77] : memref<9x64x64xbf16, #tpu.memory_space<vmem>>, vector<1x64x64xbf16>
    %76 = vector.shape_cast %75 : vector<1x64x64xbf16> to vector<64x64xbf16>
    %cst_78 = arith.constant dense<0.000000e+00> : vector<4x64xf32>
    %77 = tpu.matmul %74, %76, %cst_78 {dimension_numbers = #tpu.dot_dimension_numbers<[1], [0], [0], [1], [0, 0, 1, 1], [], []>} : vector<4x64xbf16>, vector<64x64xbf16>, vector<4x64xf32> -> vector<4x64xf32>
    %78 = arith.addf %73, %77 : vector<4x64xf32>
    %79 = vector.broadcast %1 : vector<1x64xf32> to vector<4x64xf32>
    %80 = arith.addf %78, %79 : vector<4x64xf32>
    %cst_79 = arith.constant 0.000000e+00 : f32
    %81 = vector.broadcast %cst_79 : f32 to vector<4x64xf32>
    %82 = arith.maximumf %80, %81 : vector<4x64xf32>
    %83 = arith.truncf %82 : vector<4x64xf32> to vector<4x64xbf16>
    %c0_80 = arith.constant 0 : index
    %c0_81 = arith.constant 0 : index
    %c0_82 = arith.constant 0 : index
    %84 = vector.load %arg6[%c0_80, %c0_81, %c0_82] : memref<2x4x64xbf16, #tpu.memory_space<vmem>>, vector<1x4x64xbf16>
    %85 = vector.shape_cast %84 : vector<1x4x64xbf16> to vector<4x64xbf16>
    %86 = vector.shape_cast %83 : vector<4x64xbf16> to vector<1x4x64xbf16>
    tpu.vector_store %arg6[%c0_80, %c0_81, %c0_82], %86 {strides = array<i32>} : memref<2x4x64xbf16, #tpu.memory_space<vmem>>, vector<1x4x64xbf16>,
    %cst_83 = arith.constant 0.000000e+00 : f32
    %87 = vector.broadcast %cst_83 : f32 to vector<16x64xf32>
    %c1_84 = arith.constant 1 : index
    %c0_85 = arith.constant 0 : index
    %c0_86 = arith.constant 0 : index
    %88 = vector.load %arg1[%c1_84, %c0_85, %c0_86] : memref<2x24x128xbf16, #tpu.memory_space<vmem>>, vector<1x16x128xbf16>
    %89 = vector.shape_cast %88 : vector<1x16x128xbf16> to vector<16x128xbf16>
    %c0_87 = arith.constant 0 : index
    %c0_88 = arith.constant 0 : index
    %c0_89 = arith.constant 0 : index
    %90 = vector.load %arg2[%c0_87, %c0_88, %c0_89] : memref<4x128x64xbf16, #tpu.memory_space<vmem>>, vector<1x128x64xbf16>
    %91 = vector.shape_cast %90 : vector<1x128x64xbf16> to vector<128x64xbf16>
    %cst_90 = arith.constant dense<0.000000e+00> : vector<16x64xf32>
    %92 = tpu.matmul %89, %91, %cst_90 {dimension_numbers = #tpu.dot_dimension_numbers<[1], [0], [0], [1], [0, 0, 1, 1], [], []>} : vector<16x128xbf16>, vector<128x64xbf16>, vector<16x64xf32> -> vector<16x64xf32>
    %93 = arith.addf %87, %92 : vector<16x64xf32>
    %c1_91 = arith.constant 1 : index
    %c1_92 = arith.constant 1 : index
    %c0_93 = arith.constant 0 : index
    %94 = vector.load %arg1[%c1_91, %c1_92, %c0_93] : memref<2x24x128xbf16, #tpu.memory_space<vmem>>, vector<1x16x128xbf16>
    %95 = vector.shape_cast %94 : vector<1x16x128xbf16> to vector<16x128xbf16>
    %c1_94 = arith.constant 1 : index
    %c0_95 = arith.constant 0 : index
    %c0_96 = arith.constant 0 : index
    %96 = vector.load %arg2[%c1_94, %c0_95, %c0_96] : memref<4x128x64xbf16, #tpu.memory_space<vmem>>, vector<1x128x64xbf16>
    %97 = vector.shape_cast %96 : vector<1x128x64xbf16> to vector<128x64xbf16>
    %cst_97 = arith.constant dense<0.000000e+00> : vector<16x64xf32>
    %98 = tpu.matmul %95, %97, %cst_97 {dimension_numbers = #tpu.dot_dimension_numbers<[1], [0], [0], [1], [0, 0, 1, 1], [], []>} : vector<16x128xbf16>, vector<128x64xbf16>, vector<16x64xf32> -> vector<16x64xf32>
    %99 = arith.addf %93, %98 : vector<16x64xf32>
    %c1_98 = arith.constant 1 : index
    %c4_99 = arith.constant 4 : index
    %c0_100 = arith.constant 0 : index
    %100 = vector.load %arg1[%c1_98, %c4_99, %c0_100] : memref<2x24x128xbf16, #tpu.memory_space<vmem>>, vector<1x16x128xbf16>
    %101 = vector.shape_cast %100 : vector<1x16x128xbf16> to vector<16x128xbf16>
    %c2_101 = arith.constant 2 : index
    %c0_102 = arith.constant 0 : index
    %c0_103 = arith.constant 0 : index
    %102 = vector.load %arg2[%c2_101, %c0_102, %c0_103] : memref<4x128x64xbf16, #tpu.memory_space<vmem>>, vector<1x128x64xbf16>
    %103 = vector.shape_cast %102 : vector<1x128x64xbf16> to vector<128x64xbf16>
    %cst_104 = arith.constant dense<0.000000e+00> : vector<16x64xf32>
    %104 = tpu.matmul %101, %103, %cst_104 {dimension_numbers = #tpu.dot_dimension_numbers<[1], [0], [0], [1], [0, 0, 1, 1], [], []>} : vector<16x128xbf16>, vector<128x64xbf16>, vector<16x64xf32> -> vector<16x64xf32>
    %105 = arith.addf %99, %104 : vector<16x64xf32>
    %c1_105 = arith.constant 1 : index
    %c5_106 = arith.constant 5 : index
    %c0_107 = arith.constant 0 : index
    %106 = vector.load %arg1[%c1_105, %c5_106, %c0_107] : memref<2x24x128xbf16, #tpu.memory_space<vmem>>, vector<1x16x128xbf16>
    %107 = vector.shape_cast %106 : vector<1x16x128xbf16> to vector<16x128xbf16>
    %c3_108 = arith.constant 3 : index
    %c0_109 = arith.constant 0 : index
    %c0_110 = arith.constant 0 : index
    %108 = vector.load %arg2[%c3_108, %c0_109, %c0_110] : memref<4x128x64xbf16, #tpu.memory_space<vmem>>, vector<1x128x64xbf16>
    %109 = vector.shape_cast %108 : vector<1x128x64xbf16> to vector<128x64xbf16>
    %cst_111 = arith.constant dense<0.000000e+00> : vector<16x64xf32>
    %110 = tpu.matmul %107, %109, %cst_111 {dimension_numbers = #tpu.dot_dimension_numbers<[1], [0], [0], [1], [0, 0, 1, 1], [], []>} : vector<16x128xbf16>, vector<128x64xbf16>, vector<16x64xf32> -> vector<16x64xf32>
    %111 = arith.addf %105, %110 : vector<16x64xf32>
    %112 = vector.broadcast %0 : vector<1x64xf32> to vector<16x64xf32>
    %113 = arith.addf %111, %112 : vector<16x64xf32>
    %cst_112 = arith.constant 0.000000e+00 : f32
    %114 = vector.broadcast %cst_112 : f32 to vector<16x64xf32>
    %115 = arith.maximumf %113, %114 : vector<16x64xf32>
    %116 = arith.truncf %115 : vector<16x64xf32> to vector<16x64xbf16>
    %c0_113 = arith.constant 0 : index
    %c0_114 = arith.constant 0 : index
    %117 = vector.load %arg7[%c0_113, %c0_114] : memref<16x64xbf16, #tpu.memory_space<vmem>>, vector<16x64xbf16>
    tpu.vector_store %arg7[%c0_113, %c0_114], %116 {strides = array<i32>} : memref<16x64xbf16, #tpu.memory_space<vmem>>, vector<16x64xbf16>,
    %cst_115 = arith.constant 0.000000e+00 : f32
    %118 = vector.broadcast %cst_115 : f32 to vector<4x64xf32>
    %c0_116 = arith.constant 0 : index
    %c0_117 = arith.constant 0 : index
    %119 = vector.load %arg7[%c0_116, %c0_117] : memref<16x64xbf16, #tpu.memory_space<vmem>>, vector<4x64xbf16>
    %c0_118 = arith.constant 0 : index
    %c0_119 = arith.constant 0 : index
    %c0_120 = arith.constant 0 : index
    %120 = vector.load %arg4[%c0_118, %c0_119, %c0_120] : memref<9x64x64xbf16, #tpu.memory_space<vmem>>, vector<1x64x64xbf16>
    %121 = vector.shape_cast %120 : vector<1x64x64xbf16> to vector<64x64xbf16>
    %cst_121 = arith.constant dense<0.000000e+00> : vector<4x64xf32>
    %122 = tpu.matmul %119, %121, %cst_121 {dimension_numbers = #tpu.dot_dimension_numbers<[1], [0], [0], [1], [0, 0, 1, 1], [], []>} : vector<4x64xbf16>, vector<64x64xbf16>, vector<4x64xf32> -> vector<4x64xf32>
    %123 = arith.addf %118, %122 : vector<4x64xf32>
    %c1_122 = arith.constant 1 : index
    %c0_123 = arith.constant 0 : index
    %124 = vector.load %arg7[%c1_122, %c0_123] : memref<16x64xbf16, #tpu.memory_space<vmem>>, vector<4x64xbf16>
    %c1_124 = arith.constant 1 : index
    %c0_125 = arith.constant 0 : index
    %c0_126 = arith.constant 0 : index
    %125 = vector.load %arg4[%c1_124, %c0_125, %c0_126] : memref<9x64x64xbf16, #tpu.memory_space<vmem>>, vector<1x64x64xbf16>
    %126 = vector.shape_cast %125 : vector<1x64x64xbf16> to vector<64x64xbf16>
    %cst_127 = arith.constant dense<0.000000e+00> : vector<4x64xf32>
    %127 = tpu.matmul %124, %126, %cst_127 {dimension_numbers = #tpu.dot_dimension_numbers<[1], [0], [0], [1], [0, 0, 1, 1], [], []>} : vector<4x64xbf16>, vector<64x64xbf16>, vector<4x64xf32> -> vector<4x64xf32>
    %128 = arith.addf %123, %127 : vector<4x64xf32>
    %c2_128 = arith.constant 2 : index
    %c0_129 = arith.constant 0 : index
    %129 = vector.load %arg7[%c2_128, %c0_129] : memref<16x64xbf16, #tpu.memory_space<vmem>>, vector<4x64xbf16>
    %c2_130 = arith.constant 2 : index
    %c0_131 = arith.constant 0 : index
    %c0_132 = arith.constant 0 : index
    %130 = vector.load %arg4[%c2_130, %c0_131, %c0_132] : memref<9x64x64xbf16, #tpu.memory_space<vmem>>, vector<1x64x64xbf16>
    %131 = vector.shape_cast %130 : vector<1x64x64xbf16> to vector<64x64xbf16>
    %cst_133 = arith.constant dense<0.000000e+00> : vector<4x64xf32>
    %132 = tpu.matmul %129, %131, %cst_133 {dimension_numbers = #tpu.dot_dimension_numbers<[1], [0], [0], [1], [0, 0, 1, 1], [], []>} : vector<4x64xbf16>, vector<64x64xbf16>, vector<4x64xf32> -> vector<4x64xf32>
    %133 = arith.addf %128, %132 : vector<4x64xf32>
    %c4_134 = arith.constant 4 : index
    %c0_135 = arith.constant 0 : index
    %134 = vector.load %arg7[%c4_134, %c0_135] : memref<16x64xbf16, #tpu.memory_space<vmem>>, vector<4x64xbf16>
    %c3_136 = arith.constant 3 : index
    %c0_137 = arith.constant 0 : index
    %c0_138 = arith.constant 0 : index
    %135 = vector.load %arg4[%c3_136, %c0_137, %c0_138] : memref<9x64x64xbf16, #tpu.memory_space<vmem>>, vector<1x64x64xbf16>
    %136 = vector.shape_cast %135 : vector<1x64x64xbf16> to vector<64x64xbf16>
    %cst_139 = arith.constant dense<0.000000e+00> : vector<4x64xf32>
    %137 = tpu.matmul %134, %136, %cst_139 {dimension_numbers = #tpu.dot_dimension_numbers<[1], [0], [0], [1], [0, 0, 1, 1], [], []>} : vector<4x64xbf16>, vector<64x64xbf16>, vector<4x64xf32> -> vector<4x64xf32>
    %138 = arith.addf %133, %137 : vector<4x64xf32>
    %c5_140 = arith.constant 5 : index
    %c0_141 = arith.constant 0 : index
    %139 = vector.load %arg7[%c5_140, %c0_141] : memref<16x64xbf16, #tpu.memory_space<vmem>>, vector<4x64xbf16>
    %c4_142 = arith.constant 4 : index
    %c0_143 = arith.constant 0 : index
    %c0_144 = arith.constant 0 : index
    %140 = vector.load %arg4[%c4_142, %c0_143, %c0_144] : memref<9x64x64xbf16, #tpu.memory_space<vmem>>, vector<1x64x64xbf16>
    %141 = vector.shape_cast %140 : vector<1x64x64xbf16> to vector<64x64xbf16>
    %cst_145 = arith.constant dense<0.000000e+00> : vector<4x64xf32>
    %142 = tpu.matmul %139, %141, %cst_145 {dimension_numbers = #tpu.dot_dimension_numbers<[1], [0], [0], [1], [0, 0, 1, 1], [], []>} : vector<4x64xbf16>, vector<64x64xbf16>, vector<4x64xf32> -> vector<4x64xf32>
    %143 = arith.addf %138, %142 : vector<4x64xf32>
    %c6_146 = arith.constant 6 : index
    %c0_147 = arith.constant 0 : index
    %144 = vector.load %arg7[%c6_146, %c0_147] : memref<16x64xbf16, #tpu.memory_space<vmem>>, vector<4x64xbf16>
    %c5_148 = arith.constant 5 : index
    %c0_149 = arith.constant 0 : index
    %c0_150 = arith.constant 0 : index
    %145 = vector.load %arg4[%c5_148, %c0_149, %c0_150] : memref<9x64x64xbf16, #tpu.memory_space<vmem>>, vector<1x64x64xbf16>
    %146 = vector.shape_cast %145 : vector<1x64x64xbf16> to vector<64x64xbf16>
    %cst_151 = arith.constant dense<0.000000e+00> : vector<4x64xf32>
    %147 = tpu.matmul %144, %146, %cst_151 {dimension_numbers = #tpu.dot_dimension_numbers<[1], [0], [0], [1], [0, 0, 1, 1], [], []>} : vector<4x64xbf16>, vector<64x64xbf16>, vector<4x64xf32> -> vector<4x64xf32>
    %148 = arith.addf %143, %147 : vector<4x64xf32>
    %c8_152 = arith.constant 8 : index
    %c0_153 = arith.constant 0 : index
    %149 = vector.load %arg7[%c8_152, %c0_153] : memref<16x64xbf16, #tpu.memory_space<vmem>>, vector<4x64xbf16>
    %c6_154 = arith.constant 6 : index
    %c0_155 = arith.constant 0 : index
    %c0_156 = arith.constant 0 : index
    %150 = vector.load %arg4[%c6_154, %c0_155, %c0_156] : memref<9x64x64xbf16, #tpu.memory_space<vmem>>, vector<1x64x64xbf16>
    %151 = vector.shape_cast %150 : vector<1x64x64xbf16> to vector<64x64xbf16>
    %cst_157 = arith.constant dense<0.000000e+00> : vector<4x64xf32>
    %152 = tpu.matmul %149, %151, %cst_157 {dimension_numbers = #tpu.dot_dimension_numbers<[1], [0], [0], [1], [0, 0, 1, 1], [], []>} : vector<4x64xbf16>, vector<64x64xbf16>, vector<4x64xf32> -> vector<4x64xf32>
    %153 = arith.addf %148, %152 : vector<4x64xf32>
    %c9_158 = arith.constant 9 : index
    %c0_159 = arith.constant 0 : index
    %154 = vector.load %arg7[%c9_158, %c0_159] : memref<16x64xbf16, #tpu.memory_space<vmem>>, vector<4x64xbf16>
    %c7_160 = arith.constant 7 : index
    %c0_161 = arith.constant 0 : index
    %c0_162 = arith.constant 0 : index
    %155 = vector.load %arg4[%c7_160, %c0_161, %c0_162] : memref<9x64x64xbf16, #tpu.memory_space<vmem>>, vector<1x64x64xbf16>
    %156 = vector.shape_cast %155 : vector<1x64x64xbf16> to vector<64x64xbf16>
    %cst_163 = arith.constant dense<0.000000e+00> : vector<4x64xf32>
    %157 = tpu.matmul %154, %156, %cst_163 {dimension_numbers = #tpu.dot_dimension_numbers<[1], [0], [0], [1], [0, 0, 1, 1], [], []>} : vector<4x64xbf16>, vector<64x64xbf16>, vector<4x64xf32> -> vector<4x64xf32>
    %158 = arith.addf %153, %157 : vector<4x64xf32>
    %c10_164 = arith.constant 10 : index
    %c0_165 = arith.constant 0 : index
    %159 = vector.load %arg7[%c10_164, %c0_165] : memref<16x64xbf16, #tpu.memory_space<vmem>>, vector<4x64xbf16>
    %c8_166 = arith.constant 8 : index
    %c0_167 = arith.constant 0 : index
    %c0_168 = arith.constant 0 : index
    %160 = vector.load %arg4[%c8_166, %c0_167, %c0_168] : memref<9x64x64xbf16, #tpu.memory_space<vmem>>, vector<1x64x64xbf16>
    %161 = vector.shape_cast %160 : vector<1x64x64xbf16> to vector<64x64xbf16>
    %cst_169 = arith.constant dense<0.000000e+00> : vector<4x64xf32>
    %162 = tpu.matmul %159, %161, %cst_169 {dimension_numbers = #tpu.dot_dimension_numbers<[1], [0], [0], [1], [0, 0, 1, 1], [], []>} : vector<4x64xbf16>, vector<64x64xbf16>, vector<4x64xf32> -> vector<4x64xf32>
    %163 = arith.addf %158, %162 : vector<4x64xf32>
    %164 = vector.broadcast %1 : vector<1x64xf32> to vector<4x64xf32>
    %165 = arith.addf %163, %164 : vector<4x64xf32>
    %cst_170 = arith.constant 0.000000e+00 : f32
    %166 = vector.broadcast %cst_170 : f32 to vector<4x64xf32>
    %167 = arith.maximumf %165, %166 : vector<4x64xf32>
    %168 = arith.truncf %167 : vector<4x64xf32> to vector<4x64xbf16>
    %c1_171 = arith.constant 1 : index
    %c0_172 = arith.constant 0 : index
    %c0_173 = arith.constant 0 : index
    %169 = vector.load %arg6[%c1_171, %c0_172, %c0_173] : memref<2x4x64xbf16, #tpu.memory_space<vmem>>, vector<1x4x64xbf16>
    %170 = vector.shape_cast %169 : vector<1x4x64xbf16> to vector<4x64xbf16>
    %171 = vector.shape_cast %168 : vector<4x64xbf16> to vector<1x4x64xbf16>
    tpu.vector_store %arg6[%c1_171, %c0_172, %c0_173], %171 {strides = array<i32>} : memref<2x4x64xbf16, #tpu.memory_space<vmem>>, vector<1x4x64xbf16>,
    return
  }
  func.func @transform_0(%arg0: i32) -> (i32, i32, i32) {
    %c0_i32 = arith.constant 0 : i32
    %c0_i32_0 = arith.constant 0 : i32
    %c0_i32_1 = arith.constant 0 : i32
    return %arg0, %c0_i32, %c0_i32_0 : i32, i32, i32
  }
  func.func @transform_1(%arg0: i32) -> (i32, i32, i32) {
    %c0_i32 = arith.constant 0 : i32
    %c0_i32_0 = arith.constant 0 : i32
    %c0_i32_1 = arith.constant 0 : i32
    %c0_i32_2 = arith.constant 0 : i32
    return %c0_i32, %c0_i32_0, %c0_i32_1 : i32, i32, i32
  }
  func.func @transform_2(%arg0: i32) -> (i32, i32) {
    %c0_i32 = arith.constant 0 : i32
    %c0_i32_0 = arith.constant 0 : i32
    %c0_i32_1 = arith.constant 0 : i32
    return %c0_i32, %c0_i32_0 : i32, i32
  }
  func.func @transform_3(%arg0: i32) -> (i32, i32, i32) {
    %c0_i32 = arith.constant 0 : i32
    %c0_i32_0 = arith.constant 0 : i32
    %c0_i32_1 = arith.constant 0 : i32
    %c0_i32_2 = arith.constant 0 : i32
    return %c0_i32, %c0_i32_0, %c0_i32_1 : i32, i32, i32
  }
  func.func @transform_4(%arg0: i32) -> (i32, i32) {
    %c0_i32 = arith.constant 0 : i32
    %c0_i32_0 = arith.constant 0 : i32
    %c0_i32_1 = arith.constant 0 : i32
    return %c0_i32, %c0_i32_0 : i32, i32
  }
  func.func @transform_5(%arg0: i32) -> (i32, i32, i32) {
    %c0_i32 = arith.constant 0 : i32
    %c0_i32_0 = arith.constant 0 : i32
    %c0_i32_1 = arith.constant 0 : i32
    return %arg0, %c0_i32, %c0_i32_0 : i32, i32, i32
  }
}

module attributes {stable_mosaic.version = 11 : i64} {
  func.func @kernel(%arg0: i32, %arg1: memref<2x256xbf16, #tpu.memory_space<vmem>>, %arg2: memref<256x512xbf16, #tpu.memory_space<vmem>>, %arg3: memref<1x512xf32, #tpu.memory_space<vmem>>, %arg4: memref<2x512xf32, #tpu.memory_space<vmem>>) attributes {dimension_semantics = [#tpu.dimension_semantics<parallel>], iteration_bounds = array<i64: 1>, scalar_prefetch = 0 : i64, scratch_operands = 0 : i64, tpu.core_type = #tpu.core_type<tc>, window_params = [{transform_indices = @transform_0, window_bounds = array<i64: 2, 256>}, {pipeline_mode = #tpu.pipeline_mode<synchronous>, transform_indices = @transform_1, window_bounds = array<i64: 256, 512>}, {pipeline_mode = #tpu.pipeline_mode<synchronous>, transform_indices = @transform_2, window_bounds = array<i64: 1, 512>}, {transform_indices = @transform_3, window_bounds = array<i64: 2, 512>}]} {
    %c0 = arith.constant 0 : index
    %c0_0 = arith.constant 0 : index
    %0 = vector.load %arg1[%c0, %c0_0] : memref<2x256xbf16, #tpu.memory_space<vmem>>, vector<2x256xbf16>
    %c0_1 = arith.constant 0 : index
    %c0_2 = arith.constant 0 : index
    %1 = vector.load %arg2[%c0_1, %c0_2] : memref<256x512xbf16, #tpu.memory_space<vmem>>, vector<256x512xbf16>
    %cst = arith.constant dense<0.000000e+00> : vector<2x512xf32>
    %2 = tpu.matmul %0, %1, %cst {dimension_numbers = #tpu.dot_dimension_numbers<[1], [0], [0], [1], [0, 0, 1, 1], [], []>} : vector<2x256xbf16>, vector<256x512xbf16>, vector<2x512xf32> -> vector<2x512xf32>
    %c0_3 = arith.constant 0 : index
    %c0_4 = arith.constant 0 : index
    %3 = vector.load %arg3[%c0_3, %c0_4] : memref<1x512xf32, #tpu.memory_space<vmem>>, vector<1x512xf32>
    %4 = vector.broadcast %3 : vector<1x512xf32> to vector<2x512xf32>
    %5 = arith.addf %2, %4 : vector<2x512xf32>
    %cst_5 = arith.constant 0.000000e+00 : f32
    %6 = vector.broadcast %cst_5 : f32 to vector<2x512xf32>
    %7 = arith.maximumf %5, %6 : vector<2x512xf32>
    %c0_6 = arith.constant 0 : index
    %c0_7 = arith.constant 0 : index
    %8 = vector.load %arg4[%c0_6, %c0_7] : memref<2x512xf32, #tpu.memory_space<vmem>>, vector<2x512xf32>
    tpu.vector_store %arg4[%c0_6, %c0_7], %7 {strides = array<i32>} : memref<2x512xf32, #tpu.memory_space<vmem>>, vector<2x512xf32>,
    return
  }
  func.func @transform_0(%arg0: i32) -> (i32, i32) {
    %c0_i32 = arith.constant 0 : i32
    %c0_i32_0 = arith.constant 0 : i32
    return %arg0, %c0_i32 : i32, i32
  }
  func.func @transform_1(%arg0: i32) -> (i32, i32) {
    %c0_i32 = arith.constant 0 : i32
    %c0_i32_0 = arith.constant 0 : i32
    %c0_i32_1 = arith.constant 0 : i32
    return %c0_i32, %c0_i32_0 : i32, i32
  }
  func.func @transform_2(%arg0: i32) -> (i32, i32) {
    %c0_i32 = arith.constant 0 : i32
    %c0_i32_0 = arith.constant 0 : i32
    %c0_i32_1 = arith.constant 0 : i32
    return %c0_i32, %c0_i32_0 : i32, i32
  }
  func.func @transform_3(%arg0: i32) -> (i32, i32) {
    %c0_i32 = arith.constant 0 : i32
    %c0_i32_0 = arith.constant 0 : i32
    return %arg0, %c0_i32 : i32, i32
  }
}

</mosaic_0001>

<llo_original>
// kernel: _lambda_.3
$region0: #{_lambda_.3}
  #allocation0 [shape = 'u32[]', space=smem, size = 0x4, offset = 0x4, fixed_abs, tag = 'smem constant byte address 0x4 - core index']
  #allocation1 [shape = 'u32[144,128]{1,0:T(1,128)}', space=vmem, size = 0x12000, scoped, tag = 'internal scratch']
  %s0 = inlined_call_operand.vmem [shape: bf16[2,88,64], index: 0, kind: input, shape index: {}]
  %s1 = inlined_call_operand.vmem [shape: bf16[4,64,32], index: 1, kind: input, shape index: {}]
  %s2 = inlined_call_operand.vmem [shape: f32[1,32], index: 2, kind: input, shape index: {}]
  %s3 = inlined_call_operand.vmem [shape: bf16[2,72,32], index: 3, kind: output, shape index: {}]
  %s4 = sld [smem:[#allocation0]]
  $region22: #{_lambda_.3} parent=0
    _
  %s6 = ssub.s32 1, %s4
  %s7 = scalar_select 0, %s6, %s4
  // Predicated region
  $region2: #{_lambda_.3} parent=0 // pred_check
    _
  $region3: #{_lambda_.3} parent=0 // pred_check_branch
    %9 = sbr.rel (0) target = $region5
  $region4: #{_lambda_.3} parent=0 // pred_region
    _
  $region5: #{_lambda_.3} parent=0 // pred_fallthru
    _
  // Predicated region
  $region6: #{_lambda_.3} parent=0 // pred_check
    _
  $region7: #{_lambda_.3} parent=0 // pred_check_branch
    %11 = sbr.rel (0) target = $region9
  $region8: #{_lambda_.3} parent=0 // pred_region
    _
  $region9: #{_lambda_.3} parent=0 // pred_fallthru
    _
  // Predicated region
  $region10: #{_lambda_.3} parent=0 // pred_check
    _
  $region11: #{_lambda_.3} parent=0 // pred_check_branch
    %13 = sbr.rel (0) target = $region13
  $region12: #{_lambda_.3} parent=0 // pred_region
    _
  $region13: #{_lambda_.3} parent=0 // pred_fallthru
    _
  %v15 = vld [vmem:[%s2] sm:$0x1]
  %v16 = vld [vmem:[%s0] sm:$0xf]
  %v17 = vld [vmem:[%s0 + $0x4] sm:$0xf]
  %v18 = vld [vmem:[%s0 + $0x8] sm:$0xf]
  %v19 = vld [vmem:[%s0 + $0xc] sm:$0xf]
  %v20 = vld [vmem:[%s0 + $0x10] sm:$0xf]
  %v21 = vld [vmem:[%s0 + $0x14] sm:$0xf]
  %v22 = vld [vmem:[%s0 + $0x18] sm:$0xf]
  %v23 = vld [vmem:[%s0 + $0x1c] sm:$0xf]
  %v24 = vld [vmem:[%s0 + $0x20] sm:$0xf]
  %v25 = vld [vmem:[%s1] sm:$0xf]
  %v26 = vld [vmem:[%s1 + $0x4] sm:$0xf]
  %v27 = vld [vmem:[%s1 + $0x8] sm:$0xf]
  %v28 = vld [vmem:[%s1 + $0xc] sm:$0xf]
  %v29 = vld [vmem:[%s1 + $0x10] sm:$0xf]
  %v30 = vld [vmem:[%s1 + $0x14] sm:$0xf]
  %v31 = vld [vmem:[%s1 + $0x18] sm:$0xf]
  %v32 = vld [vmem:[%s1 + $0x1c] sm:$0xf]
  %v33 = vld [vmem:[%s0 + $0x24] sm:$0x1]
  %s34 = scalar_lea.vmem %s1, 32
  %v35 = vld [vmem:[%s34] sm:$0xf]
  %v36 = vld [vmem:[%s34 + $0x4] sm:$0xf]
  %v37 = vld [vmem:[%s34 + $0x8] sm:$0xf]
  %v38 = vld [vmem:[%s34 + $0xc] sm:$0xf]
  %v39 = vld [vmem:[%s34 + $0x10] sm:$0xf]
  %v40 = vld [vmem:[%s34 + $0x14] sm:$0xf]
  %v41 = vld [vmem:[%s34 + $0x18] sm:$0xf]
  %v42 = vld [vmem:[%s34 + $0x1c] sm:$0xf]
  %v53 = vunpack.c.l.b16 %v16
  %v54 = vunpack.c.l.b16 %v17
  %v55 = vunpack.c.l.b16 %v18
  %v56 = vunpack.c.l.b16 %v19
  %v57 = vunpack.c.l.b16 %v20
  %v58 = vunpack.c.l.b16 %v21
  %v59 = vunpack.c.l.b16 %v22
  %v60 = vunpack.c.l.b16 %v23
  %v61 = vunpack.c.l.b16 %v24
  %v62 = vunpack.c.l.b16 %v33
  %v63 = vpack.c.b16 %v54, %v53
  %v64 = vpack.c.b16 %v56, %v55
  %v65 = vpack.c.b16 %v58, %v57
  %v66 = vpack.c.b16 %v60, %v59
  %v67 = vpack.c.b16 %v62, %v61
  %vm68 = vsmask.f32 7424
  %v70 = vshrl.u32 %v63, 16
  %v72 = vshll.u32 %v63, 16
  %v74 = vrot.slane %v72, 1
  %v75 = vor.u32 %v70, %v74
  %v77 = vshll.u32 %v64, 16
  %v79 = vrot.slane %v77, 1
  %v80 = vsel %vm68, %v75, %v79
  %v81 = vshrl.u32 %v64, 16
  %v83 = vor.u32 %v81, %v79
  %v85 = vshll.u32 %v65, 16
  %v87 = vrot.slane %v85, 1
  %v88 = vsel %vm68, %v83, %v87
  %v89 = vshrl.u32 %v65, 16
  %v91 = vor.u32 %v89, %v87
  %v93 = vshll.u32 %v66, 16
  %v95 = vrot.slane %v93, 1
  %v96 = vsel %vm68, %v91, %v95
  %v97 = vshrl.u32 %v66, 16
  %v99 = vor.u32 %v97, %v95
  %v101 = vshll.u32 %v67, 16
  %v103 = vrot.slane %v101, 1
  %v104 = vsel %vm68, %v99, %v103
  %v105 = vshrl.u32 %v67, 16
  %v107 = vor.u32 %v105, %v103
  %v116 = vunpack.c.l.b16 %v35
  %v117 = vunpack.c.l.b16 %v36
  %v118 = vunpack.c.l.b16 %v37
  %v119 = vunpack.c.l.b16 %v38
  %v120 = vunpack.c.l.b16 %v39
  %v121 = vunpack.c.l.b16 %v40
  %v122 = vunpack.c.l.b16 %v41
  %v123 = vunpack.c.l.b16 %v42
  %v124 = vpack.c.b16 %v117, %v116
  %v125 = vpack.c.b16 %v119, %v118
  %v126 = vpack.c.b16 %v121, %v120
  %v127 = vpack.c.b16 %v123, %v122
  %vm132 = vcmask 523264
  %v134 = vsel %vm132, %v80, 0
  %v137 = vsel %vm132, %v88, 0
  %v140 = vsel %vm132, %v96, 0
  %v143 = vsel %vm132, %v104, 0
  %v146 = vsel %vm132, %v107, 0
  %148 = vmatprep.subr.bf16.mxu0 0
  %149 = vmatpush1.bf16.msra.mxu0 %v124
  %150 = vmatprep.subr.bf16.mxu0 0
  %151 = vmatpush1.bf16.msra.mxu0 %v125
  %152 = vmatprep.subr.bf16.mxu0 0
  %153 = vmatpush1.bf16.msra.mxu0 %v126
  %154 = vmatprep.subr.bf16.mxu0 0
  %155 = vmatpush1.bf16.msra.mxu0 %v127
  %156 = vmatprep.subr.bf16.mxu0 0
  %157 = vmatpush1.bf16.msra.mxu0 0
  %158 = vmatprep.subr.bf16.mxu0 0
  %159 = vmatpush1.bf16.msra.mxu0 0
  %160 = vmatprep.subr.bf16.mxu0 0
  %161 = vmatpush1.bf16.msra.mxu0 0
  %162 = vmatprep.subr.bf16.mxu0 0
  %163 = vmatpush1.bf16.msra.mxu0 0
  %164 = vmatprep.subr.bf16.mxu0 0
  %165 = vmatpush1.bf16.msra.mxu0 0
  %166 = vmatprep.subr.bf16.mxu0 0
  %167 = vmatpush1.bf16.msra.mxu0 0
  %168 = vmatprep.subr.bf16.mxu0 0
  %169 = vmatpush1.bf16.msra.mxu0 0
  %170 = vmatprep.subr.bf16.mxu0 0
  %171 = vmatpush1.bf16.msra.mxu0 0
  %172 = vmatprep.subr.bf16.mxu0 0
  %173 = vmatpush1.bf16.msra.mxu0 0
  %174 = vmatprep.subr.bf16.mxu0 0
  %175 = vmatpush1.bf16.msra.mxu0 0
  %176 = vmatprep.subr.bf16.mxu0 0
  %177 = vmatpush1.bf16.msra.mxu0 0
  %178 = vmatprep.subr.bf16.mxu0 0
  %179 = vmatpush1.bf16.msra.mxu0 0
  %180 = vmatprep.mubr.bf16.mxu0 0
  %181 = vmatmul.mubr.bf16.gmra.mrb[0].mxu0 %v134
  %v182 = vpop.f32.mrb[0].mxu0
  %v183 = vadd.f32 0.0, %v182
  %v184 = vpop.f32.mrb[0].mxu0
  %v185 = vpop.f32.mrb[0].mxu0
  %v186 = vadd.f32 0.0, %v185
  %v187 = vpop.f32.mrb[0].mxu0
  %188 = vmatprep.mubr.bf16.mxu0 0
  %189 = vmatmul.mubr.bf16.gmra.mrb[0].mxu0 %v137
  %v190 = vpop.f32.mrb[0].mxu0
  %v191 = vadd.f32 0.0, %v190
  %v192 = vpop.f32.mrb[0].mxu0
  %v193 = vpop.f32.mrb[0].mxu0
  %v194 = vadd.f32 0.0, %v193
  %v195 = vpop.f32.mrb[0].mxu0
  %196 = vmatprep.mubr.bf16.mxu0 0
  %197 = vmatmul.mubr.bf16.gmra.mrb[0].mxu0 %v140
  %v198 = vpop.f32.mrb[0].mxu0
  %v199 = vadd.f32 0.0, %v198
  %v200 = vpop.f32.mrb[0].mxu0
  %v201 = vpop.f32.mrb[0].mxu0
  %v202 = vadd.f32 0.0, %v201
  %v203 = vpop.f32.mrb[0].mxu0
  %204 = vmatprep.mubr.bf16.mxu0 0
  %205 = vmatmul.mubr.bf16.gmra.mrb[0].mxu0 %v143
  %v206 = vpop.f32.mrb[0].mxu0
  %v207 = vadd.f32 0.0, %v206
  %v208 = vpop.f32.mrb[0].mxu0
  %v209 = vpop.f32.mrb[0].mxu0
  %v210 = vadd.f32 0.0, %v209
  %v211 = vpop.f32.mrb[0].mxu0
  %212 = vmatprep.mubr.bf16.mxu0 0
  %213 = vmatmul.mubr.bf16.gmra.mrb[0].mxu0 %v146
  %v214 = vpop.f32.mrb[0].mxu0
  %v215 = vadd.f32 0.0, %v214
  %v216 = vpop.f32.mrb[0].mxu0
  %v217 = vpop.f32.mrb[0].mxu0
  %v218 = vpop.f32.mrb[0].mxu0
  %219 = vdwg.mxu0
  %v220 = vpack.c.b16 %v61, %v61
  %v229 = vunpack.c.l.b16 %v25
  %v230 = vunpack.c.l.b16 %v26
  %v231 = vunpack.c.l.b16 %v27
  %v232 = vunpack.c.l.b16 %v28
  %v233 = vunpack.c.l.b16 %v29
  %v234 = vunpack.c.l.b16 %v30
  %v235 = vunpack.c.l.b16 %v31
  %v236 = vunpack.c.l.b16 %v32
  %v237 = vpack.c.b16 %v230, %v229
  %v238 = vpack.c.b16 %v232, %v231
  %v239 = vpack.c.b16 %v234, %v233
  %v240 = vpack.c.b16 %v236, %v235
  %v245 = vsel %vm132, %v63, 0
  %v247 = vsel %vm132, %v64, 0
  %v249 = vsel %vm132, %v65, 0
  %v251 = vsel %vm132, %v66, 0
  %v254 = vsel %vm132, %v220, 0
  %256 = vmatprep.subr.bf16.mxu0 0
  %257 = vmatpush1.bf16.msra.mxu0 %v237
  %258 = vmatprep.subr.bf16.mxu0 0
  %259 = vmatpush1.bf16.msra.mxu0 %v238
  %260 = vmatprep.subr.bf16.mxu0 0
  %261 = vmatpush1.bf16.msra.mxu0 %v239
  %262 = vmatprep.subr.bf16.mxu0 0
  %263 = vmatpush1.bf16.msra.mxu0 %v240
  %264 = vmatprep.subr.bf16.mxu0 0
  %265 = vmatpush1.bf16.msra.mxu0 0
  %266 = vmatprep.subr.bf16.mxu0 0
  %267 = vmatpush1.bf16.msra.mxu0 0
  %268 = vmatprep.subr.bf16.mxu0 0
  %269 = vmatpush1.bf16.msra.mxu0 0
  %270 = vmatprep.subr.bf16.mxu0 0
  %271 = vmatpush1.bf16.msra.mxu0 0
  %272 = vmatprep.subr.bf16.mxu0 0
  %273 = vmatpush1.bf16.msra.mxu0 0
  %274 = vmatprep.subr.bf16.mxu0 0
  %275 = vmatpush1.bf16.msra.mxu0 0
  %276 = vmatprep.subr.bf16.mxu0 0
  %277 = vmatpush1.bf16.msra.mxu0 0
  %278 = vmatprep.subr.bf16.mxu0 0
  %279 = vmatpush1.bf16.msra.mxu0 0
  %280 = vmatprep.subr.bf16.mxu0 0
  %281 = vmatpush1.bf16.msra.mxu0 0
  %282 = vmatprep.subr.bf16.mxu0 0
  %283 = vmatpush1.bf16.msra.mxu0 0
  %284 = vmatprep.subr.bf16.mxu0 0
  %285 = vmatpush1.bf16.msra.mxu0 0
  %286 = vmatprep.subr.bf16.mxu0 0
  %287 = vmatpush1.bf16.msra.mxu0 0
  %288 = vmatprep.mubr.bf16.mxu0 0
  %289 = vmatmul.mubr.bf16.gmra.mrb[0].mxu0 %v245
  %v290 = vpop.f32.mrb[0].mxu0
  %v291 = vadd.f32 %v183, %v290
  %v292 = vpop.f32.mrb[0].mxu0
  %v293 = vpop.f32.mrb[0].mxu0
  %v294 = vadd.f32 %v186, %v293
  %v295 = vpop.f32.mrb[0].mxu0
  %296 = vmatprep.mubr.bf16.mxu0 0
  %297 = vmatmul.mubr.bf16.gmra.mrb[0].mxu0 %v247
  %v298 = vpop.f32.mrb[0].mxu0
  %v299 = vadd.f32 %v191, %v298
  %v300 = vpop.f32.mrb[0].mxu0
  %v301 = vpop.f32.mrb[0].mxu0
  %v302 = vadd.f32 %v194, %v301
  %v303 = vpop.f32.mrb[0].mxu0
  %304 = vmatprep.mubr.bf16.mxu0 0
  %305 = vmatmul.mubr.bf16.gmra.mrb[0].mxu0 %v249
  %v306 = vpop.f32.mrb[0].mxu0
  %v307 = vadd.f32 %v199, %v306
  %v308 = vpop.f32.mrb[0].mxu0
  %v309 = vpop.f32.mrb[0].mxu0
  %v310 = vadd.f32 %v202, %v309
  %v311 = vpop.f32.mrb[0].mxu0
  %312 = vmatprep.mubr.bf16.mxu0 0
  %313 = vmatmul.mubr.bf16.gmra.mrb[0].mxu0 %v251
  %v314 = vpop.f32.mrb[0].mxu0
  %v315 = vadd.f32 %v207, %v314
  %v316 = vpop.f32.mrb[0].mxu0
  %v317 = vpop.f32.mrb[0].mxu0
  %v318 = vadd.f32 %v210, %v317
  %v319 = vpop.f32.mrb[0].mxu0
  %320 = vmatprep.mubr.bf16.mxu0 0
  %321 = vmatmul.mubr.bf16.gmra.mrb[0].mxu0 %v254
  %v322 = vpop.f32.mrb[0].mxu0
  %v323 = vadd.f32 %v215, %v322
  %v324 = vpop.f32.mrb[0].mxu0
  %v325 = vpop.f32.mrb[0].mxu0
  %v326 = vpop.f32.mrb[0].mxu0
  %327 = vdwg.mxu0
  %v328 = vld [vmem:[%s0 + $0x4] sm:$0xf]
  %v329 = vld [vmem:[%s0 + $0x8] sm:$0xf]
  %v330 = vld [vmem:[%s0 + $0xc] sm:$0xf]
  %v331 = vld [vmem:[%s0 + $0x10] sm:$0xf]
  %v332 = vld [vmem:[%s0 + $0x14] sm:$0xf]
  %v333 = vld [vmem:[%s0 + $0x18] sm:$0xf]
  %v334 = vld [vmem:[%s0 + $0x1c] sm:$0xf]
  %v335 = vld [vmem:[%s0 + $0x20] sm:$0xf]
  %v336 = vld [vmem:[%s0 + $0x24] sm:$0xf]
  %v337 = vld [vmem:[%s0 + $0x28] sm:$0x1]
  %s338 = scalar_lea.vmem %s1, 64
  %v339 = vld [vmem:[%s338] sm:$0xf]
  %v340 = vld [vmem:[%s338 + $0x4] sm:$0xf]
  %v341 = vld [vmem:[%s338 + $0x8] sm:$0xf]
  %v342 = vld [vmem:[%s338 + $0xc] sm:$0xf]
  %v343 = vld [vmem:[%s338 + $0x10] sm:$0xf]
  %v344 = vld [vmem:[%s338 + $0x14] sm:$0xf]
  %v345 = vld [vmem:[%s338 + $0x18] sm:$0xf]
  %v346 = vld [vmem:[%s338 + $0x1c] sm:$0xf]
  %v357 = vunpack.c.l.b16 %v328
  %v358 = vunpack.c.l.b16 %v329
  %v359 = vunpack.c.l.b16 %v330
  %v360 = vunpack.c.l.b16 %v331
  %v361 = vunpack.c.l.b16 %v332
  %v362 = vunpack.c.l.b16 %v333
  %v363 = vunpack.c.l.b16 %v334
  %v364 = vunpack.c.l.b16 %v335
  %v365 = vunpack.c.l.b16 %v336
  %v366 = vunpack.c.l.b16 %v337
  %v367 = vpack.c.b16 %v358, %v357
  %v368 = vpack.c.b16 %v360, %v359
  %v369 = vpack.c.b16 %v362, %v361
  %v370 = vpack.c.b16 %v364, %v363
  %v371 = vpack.c.b16 %v366, %v365
  %v373 = vshrl.u32 %v367, 16
  %v375 = vshll.u32 %v367, 16
  %v377 = vrot.slane %v375, 1
  %v378 = vor.u32 %v373, %v377
  %v380 = vshll.u32 %v368, 16
  %v382 = vrot.slane %v380, 1
  %v383 = vsel %vm68, %v378, %v382
  %v384 = vshrl.u32 %v368, 16
  %v386 = vor.u32 %v384, %v382
  %v388 = vshll.u32 %v369, 16
  %v390 = vrot.slane %v388, 1
  %v391 = vsel %vm68, %v386, %v390
  %v392 = vshrl.u32 %v369, 16
  %v394 = vor.u32 %v392, %v390
  %v396 = vshll.u32 %v370, 16
  %v398 = vrot.slane %v396, 1
  %v399 = vsel %vm68, %v394, %v398
  %v400 = vshrl.u32 %v370, 16
  %v402 = vor.u32 %v400, %v398
  %v404 = vshll.u32 %v371, 16
  %v406 = vrot.slane %v404, 1
  %v407 = vsel %vm68, %v402, %v406
  %v408 = vshrl.u32 %v371, 16
  %v410 = vor.u32 %v408, %v406
  %v419 = vunpack.c.l.b16 %v339
  %v420 = vunpack.c.l.b16 %v340
  %v421 = vunpack.c.l.b16 %v341
  %v422 = vunpack.c.l.b16 %v342
  %v423 = vunpack.c.l.b16 %v343
  %v424 = vunpack.c.l.b16 %v344
  %v425 = vunpack.c.l.b16 %v345
  %v426 = vunpack.c.l.b16 %v346
  %v427 = vpack.c.b16 %v420, %v419
  %v428 = vpack.c.b16 %v422, %v421
  %v429 = vpack.c.b16 %v424, %v423
  %v430 = vpack.c.b16 %v426, %v425
  %v436 = vsel %vm132, %v383, 0
  %v439 = vsel %vm132, %v391, 0
  %v442 = vsel %vm132, %v399, 0
  %v445 = vsel %vm132, %v407, 0
  %v448 = vsel %vm132, %v410, 0
  %450 = vmatprep.subr.bf16.mxu0 0
  %451 = vmatpush1.bf16.msra.mxu0 %v427
  %452 = vmatprep.subr.bf16.mxu0 0
  %453 = vmatpush1.bf16.msra.mxu0 %v428
  %454 = vmatprep.subr.bf16.mxu0 0
  %455 = vmatpush1.bf16.msra.mxu0 %v429
  %456 = vmatprep.subr.bf16.mxu0 0
  %457 = vmatpush1.bf16.msra.mxu0 %v430
  %458 = vmatprep.subr.bf16.mxu0 0
  %459 = vmatpush1.bf16.msra.mxu0 0
  %460 = vmatprep.subr.bf16.mxu0 0
  %461 = vmatpush1.bf16.msra.mxu0 0
  %462 = vmatprep.subr.bf16.mxu0 0
  %463 = vmatpush1.bf16.msra.mxu0 0
  %464 = vmatprep.subr.bf16.mxu0 0
  %465 = vmatpush1.bf16.msra.mxu0 0
  %466 = vmatprep.subr.bf16.mxu0 0
  %467 = vmatpush1.bf16.msra.mxu0 0
  %468 = vmatprep.subr.bf16.mxu0 0
  %469 = vmatpush1.bf16.msra.mxu0 0
  %470 = vmatprep.subr.bf16.mxu0 0
  %471 = vmatpush1.bf16.msra.mxu0 0
  %472 = vmatprep.subr.bf16.mxu0 0
  %473 = vmatpush1.bf16.msra.mxu0 0
  %474 = vmatprep.subr.bf16.mxu0 0
  %475 = vmatpush1.bf16.msra.mxu0 0
  %476 = vmatprep.subr.bf16.mxu0 0
  %477 = vmatpush1.bf16.msra.mxu0 0
  %478 = vmatprep.subr.bf16.mxu0 0
  %479 = vmatpush1.bf16.msra.mxu0 0
  %480 = vmatprep.subr.bf16.mxu0 0
  %481 = vmatpush1.bf16.msra.mxu0 0
  %482 = vmatprep.mubr.bf16.mxu0 0
  %483 = vmatmul.mubr.bf16.gmra.mrb[0].mxu0 %v436
  %v484 = vpop.f32.mrb[0].mxu0
  %v485 = vadd.f32 0.0, %v484
  %v486 = vpop.f32.mrb[0].mxu0
  %v487 = vpop.f32.mrb[0].mxu0
  %v488 = vadd.f32 0.0, %v487
  %v489 = vpop.f32.mrb[0].mxu0
  %490 = vmatprep.mubr.bf16.mxu0 0
  %491 = vmatmul.mubr.bf16.gmra.mrb[0].mxu0 %v439
  %v492 = vpop.f32.mrb[0].mxu0
  %v493 = vadd.f32 0.0, %v492
  %v494 = vpop.f32.mrb[0].mxu0
  %v495 = vpop.f32.mrb[0].mxu0
  %v496 = vadd.f32 0.0, %v495
  %v497 = vpop.f32.mrb[0].mxu0
  %498 = vmatprep.mubr.bf16.mxu0 0
  %499 = vmatmul.mubr.bf16.gmra.mrb[0].mxu0 %v442
  %v500 = vpop.f32.mrb[0].mxu0
  %v501 = vadd.f32 0.0, %v500
  %v502 = vpop.f32.mrb[0].mxu0
  %v503 = vpop.f32.mrb[0].mxu0
  %v504 = vadd.f32 0.0, %v503
  %v505 = vpop.f32.mrb[0].mxu0
  %506 = vmatprep.mubr.bf16.mxu0 0
  %507 = vmatmul.mubr.bf16.gmra.mrb[0].mxu0 %v445
  %v508 = vpop.f32.mrb[0].mxu0
  %v509 = vadd.f32 0.0, %v508
  %v510 = vpop.f32.mrb[0].mxu0
  %v511 = vpop.f32.mrb[0].mxu0
  %v512 = vadd.f32 0.0, %v511
  %v513 = vpop.f32.mrb[0].mxu0
  %514 = vmatprep.mubr.bf16.mxu0 0
  %515 = vmatmul.mubr.bf16.gmra.mrb[0].mxu0 %v448
  %v516 = vpop.f32.mrb[0].mxu0
  %v517 = vadd.f32 0.0, %v516
  %v518 = vpop.f32.mrb[0].mxu0
  %v519 = vpop.f32.mrb[0].mxu0
  %v520 = vpop.f32.mrb[0].mxu0
  %521 = vdwg.mxu0
  %v522 = vadd.f32 %v291, %v485
  %v523 = vadd.f32 %v294, %v488
  %v524 = vadd.f32 %v299, %v493
  %v525 = vadd.f32 %v302, %v496
  %v526 = vadd.f32 %v307, %v501
  %v527 = vadd.f32 %v310, %v504
  %v528 = vadd.f32 %v315, %v509
  %v529 = vadd.f32 %v318, %v512
  %v530 = vadd.f32 %v323, %v517
  %v531 = vld [vmem:[%s0 + $0x4] sm:$0xe]
  %s532 = scalar_lea.vmem %s1, 96
  %v533 = vld [vmem:[%s532] sm:$0xf]
  %v534 = vld [vmem:[%s532 + $0x4] sm:$0xf]
  %v535 = vld [vmem:[%s532 + $0x8] sm:$0xf]
  %v536 = vld [vmem:[%s532 + $0xc] sm:$0xf]
  %v537 = vld [vmem:[%s532 + $0x10] sm:$0xf]
  %v538 = vld [vmem:[%s532 + $0x14] sm:$0xf]
  %v539 = vld [vmem:[%s532 + $0x18] sm:$0xf]
  %v540 = vld [vmem:[%s532 + $0x1c] sm:$0xf]
  %v542 = vunpack.c.l.b16 %v531
  %v543 = vpack.c.b16 %v358, %v542
  %vm544 = vcmask 1046528
  %v545 = vrot.slane %v543, 1
  %v546 = vrot.slane %v368, 1
  %v547 = vsel %vm544, %v545, %v546
  %v548 = vrot.slane %v369, 1
  %v549 = vsel %vm544, %v546, %v548
  %v550 = vrot.slane %v370, 1
  %v551 = vsel %vm544, %v548, %v550
  %v552 = vrot.slane %v371, 1
  %v553 = vsel %vm544, %v550, %v552
  %v562 = vunpack.c.l.b16 %v533
  %v563 = vunpack.c.l.b16 %v534
  %v564 = vunpack.c.l.b16 %v535
  %v565 = vunpack.c.l.b16 %v536
  %v566 = vunpack.c.l.b16 %v537
  %v567 = vunpack.c.l.b16 %v538
  %v568 = vunpack.c.l.b16 %v539
  %v569 = vunpack.c.l.b16 %v540
  %v570 = vpack.c.b16 %v563, %v562
  %v571 = vpack.c.b16 %v565, %v564
  %v572 = vpack.c.b16 %v567, %v566
  %v573 = vpack.c.b16 %v569, %v568
  %v579 = vsel %vm132, %v547, 0
  %v582 = vsel %vm132, %v549, 0
  %v585 = vsel %vm132, %v551, 0
  %v588 = vsel %vm132, %v553, 0
  %v591 = vsel %vm132, %v552, 0
  %593 = vmatprep.subr.bf16.mxu0 0
  %594 = vmatpush1.bf16.msra.mxu0 %v570
  %595 = vmatprep.subr.bf16.mxu0 0
  %596 = vmatpush1.bf16.msra.mxu0 %v571
  %597 = vmatprep.subr.bf16.mxu0 0
  %598 = vmatpush1.bf16.msra.mxu0 %v572
  %599 = vmatprep.subr.bf16.mxu0 0
  %600 = vmatpush1.bf16.msra.mxu0 %v573
  %601 = vmatprep.subr.bf16.mxu0 0
  %602 = vmatpush1.bf16.msra.mxu0 0
  %603 = vmatprep.subr.bf16.mxu0 0
  %604 = vmatpush1.bf16.msra.mxu0 0
  %605 = vmatprep.subr.bf16.mxu0 0
  %606 = vmatpush1.bf16.msra.mxu0 0
  %607 = vmatprep.subr.bf16.mxu0 0
  %608 = vmatpush1.bf16.msra.mxu0 0
  %609 = vmatprep.subr.bf16.mxu0 0
  %610 = vmatpush1.bf16.msra.mxu0 0
  %611 = vmatprep.subr.bf16.mxu0 0
  %612 = vmatpush1.bf16.msra.mxu0 0
  %613 = vmatprep.subr.bf16.mxu0 0
  %614 = vmatpush1.bf16.msra.mxu0 0
  %615 = vmatprep.subr.bf16.mxu0 0
  %616 = vmatpush1.bf16.msra.mxu0 0
  %617 = vmatprep.subr.bf16.mxu0 0
  %618 = vmatpush1.bf16.msra.mxu0 0
  %619 = vmatprep.subr.bf16.mxu0 0
  %620 = vmatpush1.bf16.msra.mxu0 0
  %621 = vmatprep.subr.bf16.mxu0 0
  %622 = vmatpush1.bf16.msra.mxu0 0
  %623 = vmatprep.subr.bf16.mxu0 0
  %624 = vmatpush1.bf16.msra.mxu0 0
  %625 = vmatprep.mubr.bf16.mxu0 0
  %626 = vmatmul.mubr.bf16.gmra.mrb[0].mxu0 %v579
  %v627 = vpop.f32.mrb[0].mxu0
  %v628 = vadd.f32 0.0, %v627
  %v629 = vpop.f32.mrb[0].mxu0
  %v630 = vpop.f32.mrb[0].mxu0
  %v631 = vadd.f32 0.0, %v630
  %v632 = vpop.f32.mrb[0].mxu0
  %633 = vmatprep.mubr.bf16.mxu0 0
  %634 = vmatmul.mubr.bf16.gmra.mrb[0].mxu0 %v582
  %v635 = vpop.f32.mrb[0].mxu0
  %v636 = vadd.f32 0.0, %v635
  %v637 = vpop.f32.mrb[0].mxu0
  %v638 = vpop.f32.mrb[0].mxu0
  %v639 = vadd.f32 0.0, %v638
  %v640 = vpop.f32.mrb[0].mxu0
  %641 = vmatprep.mubr.bf16.mxu0 0
  %642 = vmatmul.mubr.bf16.gmra.mrb[0].mxu0 %v585
  %v643 = vpop.f32.mrb[0].mxu0
  %v644 = vadd.f32 0.0, %v643
  %v645 = vpop.f32.mrb[0].mxu0
  %v646 = vpop.f32.mrb[0].mxu0
  %v647 = vadd.f32 0.0, %v646
  %v648 = vpop.f32.mrb[0].mxu0
  %649 = vmatprep.mubr.bf16.mxu0 0
  %650 = vmatmul.mubr.bf16.gmra.mrb[0].mxu0 %v588
  %v651 = vpop.f32.mrb[0].mxu0
  %v652 = vadd.f32 0.0, %v651
  %v653 = vpop.f32.mrb[0].mxu0
  %v654 = vpop.f32.mrb[0].mxu0
  %v655 = vadd.f32 0.0, %v654
  %v656 = vpop.f32.mrb[0].mxu0
  %657 = vmatprep.mubr.bf16.mxu0 0
  %658 = vmatmul.mubr.bf16.gmra.mrb[0].mxu0 %v591
  %v659 = vpop.f32.mrb[0].mxu0
  %v660 = vadd.f32 0.0, %v659
  %v661 = vpop.f32.mrb[0].mxu0
  %v662 = vpop.f32.mrb[0].mxu0
  %v663 = vpop.f32.mrb[0].mxu0
  %664 = vdwg.mxu0
  %v665 = vadd.f32 %v522, %v628
  %v666 = vadd.f32 %v523, %v631
  %v667 = vadd.f32 %v524, %v636
  %v668 = vadd.f32 %v525, %v639
  %v669 = vadd.f32 %v526, %v644
  %v670 = vadd.f32 %v527, %v647
  %v671 = vadd.f32 %v528, %v652
  %v672 = vadd.f32 %v529, %v655
  %v673 = vadd.f32 %v530, %v660
  %v675 = vlaneseq
  %v676 = vshrl.u32 %v675, 7
  %v677 = vsub.s32 0, %v676
  %v678 = vrot.slane %v15, %v677
  %v680 = vadd.f32 %v665, %v678
  %v681 = vadd.f32 %v666, %v678
  %v682 = vadd.f32 %v667, %v678
  %v683 = vadd.f32 %v668, %v678
  %v684 = vadd.f32 %v669, %v678
  %v685 = vadd.f32 %v670, %v678
  %v686 = vadd.f32 %v671, %v678
  %v687 = vadd.f32 %v672, %v678
  %v688 = vadd.f32 %v673, %v678
  %v689 = vmax.f32 %v680, 0.0
  %v690 = vmax.f32 %v681, 0.0
  %v691 = vmax.f32 %v682, 0.0
  %v692 = vmax.f32 %v683, 0.0
  %v693 = vmax.f32 %v684, 0.0
  %v694 = vmax.f32 %v685, 0.0
  %v695 = vmax.f32 %v686, 0.0
  %v696 = vmax.f32 %v687, 0.0
  %v697 = vmax.f32 %v688, 0.0
  %v698 = vpack.c.bf16 %v690, %v689
  %v699 = vpack.c.bf16 %v692, %v691
  %v700 = vpack.c.bf16 %v694, %v693
  %v701 = vpack.c.bf16 %v696, %v695
  %v702 = vpack.c.bf16 %v697, %v697
  %v708 = vunpack.c.l.b16 %v698
  %v709 = vunpack.c.h.b16 %v698
  %v710 = vunpack.c.l.b16 %v699
  %v711 = vunpack.c.h.b16 %v699
  %v712 = vunpack.c.l.b16 %v700
  %v713 = vunpack.c.h.b16 %v700
  %v714 = vunpack.c.l.b16 %v701
  %v715 = vunpack.c.h.b16 %v701
  %v716 = vunpack.c.l.b16 %v702
  %v717 = vpack.c.b16 %v708, %v708
  %v718 = vpack.c.b16 %v709, %v709
  %v719 = vpack.c.b16 %v710, %v710
  %v720 = vpack.c.b16 %v711, %v711
  %v721 = vpack.c.b16 %v712, %v712
  %v722 = vpack.c.b16 %v713, %v713
  %v723 = vpack.c.b16 %v714, %v714
  %v724 = vpack.c.b16 %v715, %v715
  %v725 = vpack.c.b16 %v716, %v716
  %vm735 = vcmask 257024
  %736 = vst.msk [vmem:[%s3] sm:$0xf] %vm735, %v717
  %737 = vst.msk [vmem:[%s3 + $0x4] sm:$0xf] %vm735, %v718
  %738 = vst.msk [vmem:[%s3 + $0x8] sm:$0xf] %vm735, %v719
  %739 = vst.msk [vmem:[%s3 + $0xc] sm:$0xf] %vm735, %v720
  %740 = vst.msk [vmem:[%s3 + $0x10] sm:$0xf] %vm735, %v721
  %741 = vst.msk [vmem:[%s3 + $0x14] sm:$0xf] %vm735, %v722
  %742 = vst.msk [vmem:[%s3 + $0x18] sm:$0xf] %vm735, %v723
  %743 = vst.msk [vmem:[%s3 + $0x1c] sm:$0xf] %vm735, %v724
  %744 = vst.msk [vmem:[%s3 + $0x20] sm:$0xf] %vm735, %v725
  %s745 = scalar_lea.vmem %s0, 44
  %v746 = vld [vmem:[%s745] sm:$0xf]
  %v747 = vld [vmem:[%s745 + $0x4] sm:$0xf]
  %v748 = vld [vmem:[%s745 + $0x8] sm:$0xf]
  %v749 = vld [vmem:[%s745 + $0xc] sm:$0xf]
  %v750 = vld [vmem:[%s745 + $0x10] sm:$0xf]
  %v751 = vld [vmem:[%s745 + $0x14] sm:$0xf]
  %v752 = vld [vmem:[%s745 + $0x18] sm:$0xf]
  %v753 = vld [vmem:[%s745 + $0x1c] sm:$0xf]
  %v754 = vld [vmem:[%s745 + $0x20] sm:$0xf]
  %v755 = vld [vmem:[%s1] sm:$0xf]
  %v756 = vld [vmem:[%s1 + $0x4] sm:$0xf]
  %v757 = vld [vmem:[%s1 + $0x8] sm:$0xf]
  %v758 = vld [vmem:[%s1 + $0xc] sm:$0xf]
  %v759 = vld [vmem:[%s1 + $0x10] sm:$0xf]
  %v760 = vld [vmem:[%s1 + $0x14] sm:$0xf]
  %v761 = vld [vmem:[%s1 + $0x18] sm:$0xf]
  %v762 = vld [vmem:[%s1 + $0x1c] sm:$0xf]
  %v763 = vld [vmem:[%s745 + $0x24] sm:$0x1]
  %v764 = vld [vmem:[%s34] sm:$0xf]
  %v765 = vld [vmem:[%s34 + $0x4] sm:$0xf]
  %v766 = vld [vmem:[%s34 + $0x8] sm:$0xf]
  %v767 = vld [vmem:[%s34 + $0xc] sm:$0xf]
  %v768 = vld [vmem:[%s34 + $0x10] sm:$0xf]
  %v769 = vld [vmem:[%s34 + $0x14] sm:$0xf]
  %v770 = vld [vmem:[%s34 + $0x18] sm:$0xf]
  %v771 = vld [vmem:[%s34 + $0x1c] sm:$0xf]
  %v782 = vunpack.c.l.b16 %v746
  %v783 = vunpack.c.l.b16 %v747
  %v784 = vunpack.c.l.b16 %v748
  %v785 = vunpack.c.l.b16 %v749
  %v786 = vunpack.c.l.b16 %v750
  %v787 = vunpack.c.l.b16 %v751
  %v788 = vunpack.c.l.b16 %v752
  %v789 = vunpack.c.l.b16 %v753
  %v790 = vunpack.c.l.b16 %v754
  %v791 = vunpack.c.l.b16 %v763
  %v792 = vpack.c.b16 %v783, %v782
  %v793 = vpack.c.b16 %v785, %v784
  %v794 = vpack.c.b16 %v787, %v786
  %v795 = vpack.c.b16 %v789, %v788
  %v796 = vpack.c.b16 %v791, %v790
  %v798 = vshrl.u32 %v792, 16
  %v800 = vshll.u32 %v792, 16
  %v802 = vrot.slane %v800, 1
  %v803 = vor.u32 %v798, %v802
  %v805 = vshll.u32 %v793, 16
  %v807 = vrot.slane %v805, 1
  %v808 = vsel %vm68, %v803, %v807
  %v809 = vshrl.u32 %v793, 16
  %v811 = vor.u32 %v809, %v807
  %v813 = vshll.u32 %v794, 16
  %v815 = vrot.slane %v813, 1
  %v816 = vsel %vm68, %v811, %v815
  %v817 = vshrl.u32 %v794, 16
  %v819 = vor.u32 %v817, %v815
  %v821 = vshll.u32 %v795, 16
  %v823 = vrot.slane %v821, 1
  %v824 = vsel %vm68, %v819, %v823
  %v825 = vshrl.u32 %v795, 16
  %v827 = vor.u32 %v825, %v823
  %v829 = vshll.u32 %v796, 16
  %v831 = vrot.slane %v829, 1
  %v832 = vsel %vm68, %v827, %v831
  %v833 = vshrl.u32 %v796, 16
  %v835 = vor.u32 %v833, %v831
  %v844 = vunpack.c.l.b16 %v764
  %v845 = vunpack.c.l.b16 %v765
  %v846 = vunpack.c.l.b16 %v766
  %v847 = vunpack.c.l.b16 %v767
  %v848 = vunpack.c.l.b16 %v768
  %v849 = vunpack.c.l.b16 %v769
  %v850 = vunpack.c.l.b16 %v770
  %v851 = vunpack.c.l.b16 %v771
  %v852 = vpack.c.b16 %v845, %v844
  %v853 = vpack.c.b16 %v847, %v846
  %v854 = vpack.c.b16 %v849, %v848
  %v855 = vpack.c.b16 %v851, %v850
  %v861 = vsel %vm132, %v808, 0
  %v864 = vsel %vm132, %v816, 0
  %v867 = vsel %vm132, %v824, 0
  %v870 = vsel %vm132, %v832, 0
  %v873 = vsel %vm132, %v835, 0
  %875 = vmatprep.subr.bf16.mxu0 0
  %876 = vmatpush1.bf16.msra.mxu0 %v852
  %877 = vmatprep.subr.bf16.mxu0 0
  %878 = vmatpush1.bf16.msra.mxu0 %v853
  %879 = vmatprep.subr.bf16.mxu0 0
  %880 = vmatpush1.bf16.msra.mxu0 %v854
  %881 = vmatprep.subr.bf16.mxu0 0
  %882 = vmatpush1.bf16.msra.mxu0 %v855
  %883 = vmatprep.subr.bf16.mxu0 0
  %884 = vmatpush1.bf16.msra.mxu0 0
  %885 = vmatprep.subr.bf16.mxu0 0
  %886 = vmatpush1.bf16.msra.mxu0 0
  %887 = vmatprep.subr.bf16.mxu0 0
  %888 = vmatpush1.bf16.msra.mxu0 0
  %889 = vmatprep.subr.bf16.mxu0 0
  %890 = vmatpush1.bf16.msra.mxu0 0
  %891 = vmatprep.subr.bf16.mxu0 0
  %892 = vmatpush1.bf16.msra.mxu0 0
  %893 = vmatprep.subr.bf16.mxu0 0
  %894 = vmatpush1.bf16.msra.mxu0 0
  %895 = vmatprep.subr.bf16.mxu0 0
  %896 = vmatpush1.bf16.msra.mxu0 0
  %897 = vmatprep.subr.bf16.mxu0 0
  %898 = vmatpush1.bf16.msra.mxu0 0
  %899 = vmatprep.subr.bf16.mxu0 0
  %900 = vmatpush1.bf16.msra.mxu0 0
  %901 = vmatprep.subr.bf16.mxu0 0
  %902 = vmatpush1.bf16.msra.mxu0 0
  %903 = vmatprep.subr.bf16.mxu0 0
  %904 = vmatpush1.bf16.msra.mxu0 0
  %905 = vmatprep.subr.bf16.mxu0 0
  %906 = vmatpush1.bf16.msra.mxu0 0
  %907 = vmatprep.mubr.bf16.mxu0 0
  %908 = vmatmul.mubr.bf16.gmra.mrb[0].mxu0 %v861
  %v909 = vpop.f32.mrb[0].mxu0
  %v910 = vadd.f32 0.0, %v909
  %v911 = vpop.f32.mrb[0].mxu0
  %v912 = vpop.f32.mrb[0].mxu0
  %v913 = vadd.f32 0.0, %v912
  %v914 = vpop.f32.mrb[0].mxu0
  %915 = vmatprep.mubr.bf16.mxu0 0
  %916 = vmatmul.mubr.bf16.gmra.mrb[0].mxu0 %v864
  %v917 = vpop.f32.mrb[0].mxu0
  %v918 = vadd.f32 0.0, %v917
  %v919 = vpop.f32.mrb[0].mxu0
  %v920 = vpop.f32.mrb[0].mxu0
  %v921 = vadd.f32 0.0, %v920
  %v922 = vpop.f32.mrb[0].mxu0
  %923 = vmatprep.mubr.bf16.mxu0 0
  %924 = vmatmul.mubr.bf16.gmra.mrb[0].mxu0 %v867
  %v925 = vpop.f32.mrb[0].mxu0
  %v926 = vadd.f32 0.0, %v925
  %v927 = vpop.f32.mrb[0].mxu0
  %v928 = vpop.f32.mrb[0].mxu0
  %v929 = vadd.f32 0.0, %v928
  %v930 = vpop.f32.mrb[0].mxu0
  %931 = vmatprep.mubr.bf16.mxu0 0
  %932 = vmatmul.mubr.bf16.gmra.mrb[0].mxu0 %v870
  %v933 = vpop.f32.mrb[0].mxu0
  %v934 = vadd.f32 0.0, %v933
  %v935 = vpop.f32.mrb[0].mxu0
  %v936 = vpop.f32.mrb[0].mxu0
  %v937 = vadd.f32 0.0, %v936
  %v938 = vpop.f32.mrb[0].mxu0
  %939 = vmatprep.mubr.bf16.mxu0 0
  %940 = vmatmul.mubr.bf16.gmra.mrb[0].mxu0 %v873
  %v941 = vpop.f32.mrb[0].mxu0
  %v942 = vadd.f32 0.0, %v941
  %v943 = vpop.f32.mrb[0].mxu0
  %v944 = vpop.f32.mrb[0].mxu0
  %v945 = vpop.f32.mrb[0].mxu0
  %946 = vdwg.mxu0
  %v947 = vpack.c.b16 %v790, %v790
  %v956 = vunpack.c.l.b16 %v755
  %v957 = vunpack.c.l.b16 %v756
  %v958 = vunpack.c.l.b16 %v757
  %v959 = vunpack.c.l.b16 %v758
  %v960 = vunpack.c.l.b16 %v759
  %v961 = vunpack.c.l.b16 %v760
  %v962 = vunpack.c.l.b16 %v761
  %v963 = vunpack.c.l.b16 %v762
  %v964 = vpack.c.b16 %v957, %v956
  %v965 = vpack.c.b16 %v959, %v958
  %v966 = vpack.c.b16 %v961, %v960
  %v967 = vpack.c.b16 %v963, %v962
  %v972 = vsel %vm132, %v792, 0
  %v974 = vsel %vm132, %v793, 0
  %v976 = vsel %vm132, %v794, 0
  %v978 = vsel %vm132, %v795, 0
  %v981 = vsel %vm132, %v947, 0
  %983 = vmatprep.subr.bf16.mxu0 0
  %984 = vmatpush1.bf16.msra.mxu0 %v964
  %985 = vmatprep.subr.bf16.mxu0 0
  %986 = vmatpush1.bf16.msra.mxu0 %v965
  %987 = vmatprep.subr.bf16.mxu0 0
  %988 = vmatpush1.bf16.msra.mxu0 %v966
  %989 = vmatprep.subr.bf16.mxu0 0
  %990 = vmatpush1.bf16.msra.mxu0 %v967
  %991 = vmatprep.subr.bf16.mxu0 0
  %992 = vmatpush1.bf16.msra.mxu0 0
  %993 = vmatprep.subr.bf16.mxu0 0
  %994 = vmatpush1.bf16.msra.mxu0 0
  %995 = vmatprep.subr.bf16.mxu0 0
  %996 = vmatpush1.bf16.msra.mxu0 0
  %997 = vmatprep.subr.bf16.mxu0 0
  %998 = vmatpush1.bf16.msra.mxu0 0
  %999 = vmatprep.subr.bf16.mxu0 0
  %1000 = vmatpush1.bf16.msra.mxu0 0
  %1001 = vmatprep.subr.bf16.mxu0 0
  %1002 = vmatpush1.bf16.msra.mxu0 0
  %1003 = vmatprep.subr.bf16.mxu0 0
  %1004 = vmatpush1.bf16.msra.mxu0 0
  %1005 = vmatprep.subr.bf16.mxu0 0
  %1006 = vmatpush1.bf16.msra.mxu0 0
  %1007 = vmatprep.subr.bf16.mxu0 0
  %1008 = vmatpush1.bf16.msra.mxu0 0
  %1009 = vmatprep.subr.bf16.mxu0 0
  %1010 = vmatpush1.bf16.msra.mxu0 0
  %1011 = vmatprep.subr.bf16.mxu0 0
  %1012 = vmatpush1.bf16.msra.mxu0 0
  %1013 = vmatprep.subr.bf16.mxu0 0
  %1014 = vmatpush1.bf16.msra.mxu0 0
  %1015 = vmatprep.mubr.bf16.mxu0 0
  %1016 = vmatmul.mubr.bf16.gmra.mrb[0].mxu0 %v972
  %v1017 = vpop.f32.mrb[0].mxu0
  %v1018 = vadd.f32 %v910, %v1017
  %v1019 = vpop.f32.mrb[0].mxu0
  %v1020 = vpop.f32.mrb[0].mxu0
  %v1021 = vadd.f32 %v913, %v1020
  %v1022 = vpop.f32.mrb[0].mxu0
  %1023 = vmatprep.mubr.bf16.mxu0 0
  %1024 = vmatmul.mubr.bf16.gmra.mrb[0].mxu0 %v974
  %v1025 = vpop.f32.mrb[0].mxu0
  %v1026 = vadd.f32 %v918, %v1025
  %v1027 = vpop.f32.mrb[0].mxu0
  %v1028 = vpop.f32.mrb[0].mxu0
  %v1029 = vadd.f32 %v921, %v1028
  %v1030 = vpop.f32.mrb[0].mxu0
  %1031 = vmatprep.mubr.bf16.mxu0 0
  %1032 = vmatmul.mubr.bf16.gmra.mrb[0].mxu0 %v976
  %v1033 = vpop.f32.mrb[0].mxu0
  %v1034 = vadd.f32 %v926, %v1033
  %v1035 = vpop.f32.mrb[0].mxu0
  %v1036 = vpop.f32.mrb[0].mxu0
  %v1037 = vadd.f32 %v929, %v1036
  %v1038 = vpop.f32.mrb[0].mxu0
  %1039 = vmatprep.mubr.bf16.mxu0 0
  %1040 = vmatmul.mubr.bf16.gmra.mrb[0].mxu0 %v978
  %v1041 = vpop.f32.mrb[0].mxu0
  %v1042 = vadd.f32 %v934, %v1041
  %v1043 = vpop.f32.mrb[0].mxu0
  %v1044 = vpop.f32.mrb[0].mxu0
  %v1045 = vadd.f32 %v937, %v1044
  %v1046 = vpop.f32.mrb[0].mxu0
  %1047 = vmatprep.mubr.bf16.mxu0 0
  %1048 = vmatmul.mubr.bf16.gmra.mrb[0].mxu0 %v981
  %v1049 = vpop.f32.mrb[0].mxu0
  %v1050 = vadd.f32 %v942, %v1049
  %v1051 = vpop.f32.mrb[0].mxu0
  %v1052 = vpop.f32.mrb[0].mxu0
  %v1053 = vpop.f32.mrb[0].mxu0
  %1054 = vdwg.mxu0
  %v1055 = vld [vmem:[%s745 + $0x4] sm:$0xf]
  %v1056 = vld [vmem:[%s745 + $0x8] sm:$0xf]
  %v1057 = vld [vmem:[%s745 + $0xc] sm:$0xf]
  %v1058 = vld [vmem:[%s745 + $0x10] sm:$0xf]
  %v1059 = vld [vmem:[%s745 + $0x14] sm:$0xf]
  %v1060 = vld [vmem:[%s745 + $0x18] sm:$0xf]
  %v1061 = vld [vmem:[%s745 + $0x1c] sm:$0xf]
  %v1062 = vld [vmem:[%s745 + $0x20] sm:$0xf]
  %v1063 = vld [vmem:[%s745 + $0x24] sm:$0xf]
  %v1064 = vld [vmem:[%s745 + $0x28] sm:$0x1]
  %v1065 = vld [vmem:[%s338] sm:$0xf]
  %v1066 = vld [vmem:[%s338 + $0x4] sm:$0xf]
  %v1067 = vld [vmem:[%s338 + $0x8] sm:$0xf]
  %v1068 = vld [vmem:[%s338 + $0xc] sm:$0xf]
  %v1069 = vld [vmem:[%s338 + $0x10] sm:$0xf]
  %v1070 = vld [vmem:[%s338 + $0x14] sm:$0xf]
  %v1071 = vld [vmem:[%s338 + $0x18] sm:$0xf]
  %v1072 = vld [vmem:[%s338 + $0x1c] sm:$0xf]
  %v1083 = vunpack.c.l.b16 %v1055
  %v1084 = vunpack.c.l.b16 %v1056
  %v1085 = vunpack.c.l.b16 %v1057
  %v1086 = vunpack.c.l.b16 %v1058
  %v1087 = vunpack.c.l.b16 %v1059
  %v1088 = vunpack.c.l.b16 %v1060
  %v1089 = vunpack.c.l.b16 %v1061
  %v1090 = vunpack.c.l.b16 %v1062
  %v1091 = vunpack.c.l.b16 %v1063
  %v1092 = vunpack.c.l.b16 %v1064
  %v1093 = vpack.c.b16 %v1084, %v1083
  %v1094 = vpack.c.b16 %v1086, %v1085
  %v1095 = vpack.c.b16 %v1088, %v1087
  %v1096 = vpack.c.b16 %v1090, %v1089
  %v1097 = vpack.c.b16 %v1092, %v1091
  %v1099 = vshrl.u32 %v1093, 16
  %v1101 = vshll.u32 %v1093, 16
  %v1103 = vrot.slane %v1101, 1
  %v1104 = vor.u32 %v1099, %v1103
  %v1106 = vshll.u32 %v1094, 16
  %v1108 = vrot.slane %v1106, 1
  %v1109 = vsel %vm68, %v1104, %v1108
  %v1110 = vshrl.u32 %v1094, 16
  %v1112 = vor.u32 %v1110, %v1108
  %v1114 = vshll.u32 %v1095, 16
  %v1116 = vrot.slane %v1114, 1
  %v1117 = vsel %vm68, %v1112, %v1116
  %v1118 = vshrl.u32 %v1095, 16
  %v1120 = vor.u32 %v1118, %v1116
  %v1122 = vshll.u32 %v1096, 16
  %v1124 = vrot.slane %v1122, 1
  %v1125 = vsel %vm68, %v1120, %v1124
  %v1126 = vshrl.u32 %v1096, 16
  %v1128 = vor.u32 %v1126, %v1124
  %v1130 = vshll.u32 %v1097, 16
  %v1132 = vrot.slane %v1130, 1
  %v1133 = vsel %vm68, %v1128, %v1132
  %v1134 = vshrl.u32 %v1097, 16
  %v1136 = vor.u32 %v1134, %v1132
  %v1145 = vunpack.c.l.b16 %v1065
  %v1146 = vunpack.c.l.b16 %v1066
  %v1147 = vunpack.c.l.b16 %v1067
  %v1148 = vunpack.c.l.b16 %v1068
  %v1149 = vunpack.c.l.b16 %v1069
  %v1150 = vunpack.c.l.b16 %v1070
  %v1151 = vunpack.c.l.b16 %v1071
  %v1152 = vunpack.c.l.b16 %v1072
  %v1153 = vpack.c.b16 %v1146, %v1145
  %v1154 = vpack.c.b16 %v1148, %v1147
  %v1155 = vpack.c.b16 %v1150, %v1149
  %v1156 = vpack.c.b16 %v1152, %v1151
  %v1162 = vsel %vm132, %v1109, 0
  %v1165 = vsel %vm132, %v1117, 0
  %v1168 = vsel %vm132, %v1125, 0
  %v1171 = vsel %vm132, %v1133, 0
  %v1174 = vsel %vm132, %v1136, 0
  %1176 = vmatprep.subr.bf16.mxu0 0
  %1177 = vmatpush1.bf16.msra.mxu0 %v1153
  %1178 = vmatprep.subr.bf16.mxu0 0
  %1179 = vmatpush1.bf16.msra.mxu0 %v1154
  %1180 = vmatprep.subr.bf16.mxu0 0
  %1181 = vmatpush1.bf16.msra.mxu0 %v1155
  %1182 = vmatprep.subr.bf16.mxu0 0
  %1183 = vmatpush1.bf16.msra.mxu0 %v1156
  %1184 = vmatprep.subr.bf16.mxu0 0
  %1185 = vmatpush1.bf16.msra.mxu0 0
  %1186 = vmatprep.subr.bf16.mxu0 0
  %1187 = vmatpush1.bf16.msra.mxu0 0
  %1188 = vmatprep.subr.bf16.mxu0 0
  %1189 = vmatpush1.bf16.msra.mxu0 0
  %1190 = vmatprep.subr.bf16.mxu0 0
  %1191 = vmatpush1.bf16.msra.mxu0 0
  %1192 = vmatprep.subr.bf16.mxu0 0
  %1193 = vmatpush1.bf16.msra.mxu0 0
  %1194 = vmatprep.subr.bf16.mxu0 0
  %1195 = vmatpush1.bf16.msra.mxu0 0
  %1196 = vmatprep.subr.bf16.mxu0 0
  %1197 = vmatpush1.bf16.msra.mxu0 0
  %1198 = vmatprep.subr.bf16.mxu0 0
  %1199 = vmatpush1.bf16.msra.mxu0 0
  %1200 = vmatprep.subr.bf16.mxu0 0
  %1201 = vmatpush1.bf16.msra.mxu0 0
  %1202 = vmatprep.subr.bf16.mxu0 0
  %1203 = vmatpush1.bf16.msra.mxu0 0
  %1204 = vmatprep.subr.bf16.mxu0 0
  %1205 = vmatpush1.bf16.msra.mxu0 0
  %1206 = vmatprep.subr.bf16.mxu0 0
  %1207 = vmatpush1.bf16.msra.mxu0 0
  %1208 = vmatprep.mubr.bf16.mxu0 0
  %1209 = vmatmul.mubr.bf16.gmra.mrb[0].mxu0 %v1162
  %v1210 = vpop.f32.mrb[0].mxu0
  %v1211 = vadd.f32 0.0, %v1210
  %v1212 = vpop.f32.mrb[0].mxu0
  %v1213 = vpop.f32.mrb[0].mxu0
  %v1214 = vadd.f32 0.0, %v1213
  %v1215 = vpop.f32.mrb[0].mxu0
  %1216 = vmatprep.mubr.bf16.mxu0 0
  %1217 = vmatmul.mubr.bf16.gmra.mrb[0].mxu0 %v1165
  %v1218 = vpop.f32.mrb[0].mxu0
  %v1219 = vadd.f32 0.0, %v1218
  %v1220 = vpop.f32.mrb[0].mxu0
  %v1221 = vpop.f32.mrb[0].mxu0
  %v1222 = vadd.f32 0.0, %v1221
  %v1223 = vpop.f32.mrb[0].mxu0
  %1224 = vmatprep.mubr.bf16.mxu0 0
  %1225 = vmatmul.mubr.bf16.gmra.mrb[0].mxu0 %v1168
  %v1226 = vpop.f32.mrb[0].mxu0
  %v1227 = vadd.f32 0.0, %v1226
  %v1228 = vpop.f32.mrb[0].mxu0
  %v1229 = vpop.f32.mrb[0].mxu0
  %v1230 = vadd.f32 0.0, %v1229
  %v1231 = vpop.f32.mrb[0].mxu0
  %1232 = vmatprep.mubr.bf16.mxu0 0
  %1233 = vmatmul.mubr.bf16.gmra.mrb[0].mxu0 %v1171
  %v1234 = vpop.f32.mrb[0].mxu0
  %v1235 = vadd.f32 0.0, %v1234
  %v1236 = vpop.f32.mrb[0].mxu0
  %v1237 = vpop.f32.mrb[0].mxu0
  %v1238 = vadd.f32 0.0, %v1237
  %v1239 = vpop.f32.mrb[0].mxu0
  %1240 = vmatprep.mubr.bf16.mxu0 0
  %1241 = vmatmul.mubr.bf16.gmra.mrb[0].mxu0 %v1174
  %v1242 = vpop.f32.mrb[0].mxu0
  %v1243 = vadd.f32 0.0, %v1242
  %v1244 = vpop.f32.mrb[0].mxu0
  %v1245 = vpop.f32.mrb[0].mxu0
  %v1246 = vpop.f32.mrb[0].mxu0
  %1247 = vdwg.mxu0
  %v1248 = vadd.f32 %v1018, %v1211
  %v1249 = vadd.f32 %v1021, %v1214
  %v1250 = vadd.f32 %v1026, %v1219
  %v1251 = vadd.f32 %v1029, %v1222
  %v1252 = vadd.f32 %v1034, %v1227
  %v1253 = vadd.f32 %v1037, %v1230
  %v1254 = vadd.f32 %v1042, %v1235
  %v1255 = vadd.f32 %v1045, %v1238
  %v1256 = vadd.f32 %v1050, %v1243
  %v1257 = vld [vmem:[%s745 + $0x4] sm:$0xe]
  %v1258 = vld [vmem:[%s532] sm:$0xf]
  %v1259 = vld [vmem:[%s532 + $0x4] sm:$0xf]
  %v1260 = vld [vmem:[%s532 + $0x8] sm:$0xf]
  %v1261 = vld [vmem:[%s532 + $0xc] sm:$0xf]
  %v1262 = vld [vmem:[%s532 + $0x10] sm:$0xf]
  %v1263 = vld [vmem:[%s532 + $0x14] sm:$0xf]
  %v1264 = vld [vmem:[%s532 + $0x18] sm:$0xf]
  %v1265 = vld [vmem:[%s532 + $0x1c] sm:$0xf]
  %v1267 = vunpack.c.l.b16 %v1257
  %v1268 = vpack.c.b16 %v1084, %v1267
  %v1269 = vrot.slane %v1268, 1
  %v1270 = vrot.slane %v1094, 1
  %v1271 = vsel %vm544, %v1269, %v1270
  %v1272 = vrot.slane %v1095, 1
  %v1273 = vsel %vm544, %v1270, %v1272
  %v1274 = vrot.slane %v1096, 1
  %v1275 = vsel %vm544, %v1272, %v1274
  %v1276 = vrot.slane %v1097, 1
  %v1277 = vsel %vm544, %v1274, %v1276
  %v1286 = vunpack.c.l.b16 %v1258
  %v1287 = vunpack.c.l.b16 %v1259
  %v1288 = vunpack.c.l.b16 %v1260
  %v1289 = vunpack.c.l.b16 %v1261
  %v1290 = vunpack.c.l.b16 %v1262
  %v1291 = vunpack.c.l.b16 %v1263
  %v1292 = vunpack.c.l.b16 %v1264
  %v1293 = vunpack.c.l.b16 %v1265
  %v1294 = vpack.c.b16 %v1287, %v1286
  %v1295 = vpack.c.b16 %v1289, %v1288
  %v1296 = vpack.c.b16 %v1291, %v1290
  %v1297 = vpack.c.b16 %v1293, %v1292
  %v1303 = vsel %vm132, %v1271, 0
  %v1306 = vsel %vm132, %v1273, 0
  %v1309 = vsel %vm132, %v1275, 0
  %v1312 = vsel %vm132, %v1277, 0
  %v1315 = vsel %vm132, %v1276, 0
  %1317 = vmatprep.subr.bf16.mxu0 0
  %1318 = vmatpush1.bf16.msra.mxu0 %v1294
  %1319 = vmatprep.subr.bf16.mxu0 0
  %1320 = vmatpush1.bf16.msra.mxu0 %v1295
  %1321 = vmatprep.subr.bf16.mxu0 0
  %1322 = vmatpush1.bf16.msra.mxu0 %v1296
  %1323 = vmatprep.subr.bf16.mxu0 0
  %1324 = vmatpush1.bf16.msra.mxu0 %v1297
  %1325 = vmatprep.subr.bf16.mxu0 0
  %1326 = vmatpush1.bf16.msra.mxu0 0
  %1327 = vmatprep.subr.bf16.mxu0 0
  %1328 = vmatpush1.bf16.msra.mxu0 0
  %1329 = vmatprep.subr.bf16.mxu0 0
  %1330 = vmatpush1.bf16.msra.mxu0 0
  %1331 = vmatprep.subr.bf16.mxu0 0
  %1332 = vmatpush1.bf16.msra.mxu0 0
  %1333 = vmatprep.subr.bf16.mxu0 0
  %1334 = vmatpush1.bf16.msra.mxu0 0
  %1335 = vmatprep.subr.bf16.mxu0 0
  %1336 = vmatpush1.bf16.msra.mxu0 0
  %1337 = vmatprep.subr.bf16.mxu0 0
  %1338 = vmatpush1.bf16.msra.mxu0 0
  %1339 = vmatprep.subr.bf16.mxu0 0
  %1340 = vmatpush1.bf16.msra.mxu0 0
  %1341 = vmatprep.subr.bf16.mxu0 0
  %1342 = vmatpush1.bf16.msra.mxu0 0
  %1343 = vmatprep.subr.bf16.mxu0 0
  %1344 = vmatpush1.bf16.msra.mxu0 0
  %1345 = vmatprep.subr.bf16.mxu0 0
  %1346 = vmatpush1.bf16.msra.mxu0 0
  %1347 = vmatprep.subr.bf16.mxu0 0
  %1348 = vmatpush1.bf16.msra.mxu0 0
  %1349 = vmatprep.mubr.bf16.mxu0 0
  %1350 = vmatmul.mubr.bf16.gmra.mrb[0].mxu0 %v1303
  %v1351 = vpop.f32.mrb[0].mxu0
  %v1352 = vadd.f32 0.0, %v1351
  %v1353 = vpop.f32.mrb[0].mxu0
  %v1354 = vpop.f32.mrb[0].mxu0
  %v1355 = vadd.f32 0.0, %v1354
  %v1356 = vpop.f32.mrb[0].mxu0
  %1357 = vmatprep.mubr.bf16.mxu0 0
  %1358 = vmatmul.mubr.bf16.gmra.mrb[0].mxu0 %v1306
  %v1359 = vpop.f32.mrb[0].mxu0
  %v1360 = vadd.f32 0.0, %v1359
  %v1361 = vpop.f32.mrb[0].mxu0
  %v1362 = vpop.f32.mrb[0].mxu0
  %v1363 = vadd.f32 0.0, %v1362
  %v1364 = vpop.f32.mrb[0].mxu0
  %1365 = vmatprep.mubr.bf16.mxu0 0
  %1366 = vmatmul.mubr.bf16.gmra.mrb[0].mxu0 %v1309
  %v1367 = vpop.f32.mrb[0].mxu0
  %v1368 = vadd.f32 0.0, %v1367
  %v1369 = vpop.f32.mrb[0].mxu0
  %v1370 = vpop.f32.mrb[0].mxu0
  %v1371 = vadd.f32 0.0, %v1370
  %v1372 = vpop.f32.mrb[0].mxu0
  %1373 = vmatprep.mubr.bf16.mxu0 0
  %1374 = vmatmul.mubr.bf16.gmra.mrb[0].mxu0 %v1312
  %v1375 = vpop.f32.mrb[0].mxu0
  %v1376 = vadd.f32 0.0, %v1375
  %v1377 = vpop.f32.mrb[0].mxu0
  %v1378 = vpop.f32.mrb[0].mxu0
  %v1379 = vadd.f32 0.0, %v1378
  %v1380 = vpop.f32.mrb[0].mxu0
  %1381 = vmatprep.mubr.bf16.mxu0 0
  %1382 = vmatmul.mubr.bf16.gmra.mrb[0].mxu0 %v1315
  %v1383 = vpop.f32.mrb[0].mxu0
  %v1384 = vadd.f32 0.0, %v1383
  %v1385 = vpop.f32.mrb[0].mxu0
  %v1386 = vpop.f32.mrb[0].mxu0
  %v1387 = vpop.f32.mrb[0].mxu0
  %1388 = vdwg.mxu0
  %v1389 = vadd.f32 %v1248, %v1352
  %v1390 = vadd.f32 %v1249, %v1355
  %v1391 = vadd.f32 %v1250, %v1360
  %v1392 = vadd.f32 %v1251, %v1363
  %v1393 = vadd.f32 %v1252, %v1368
  %v1394 = vadd.f32 %v1253, %v1371
  %v1395 = vadd.f32 %v1254, %v1376
  %v1396 = vadd.f32 %v1255, %v1379
  %v1397 = vadd.f32 %v1256, %v1384
  %v1398 = vadd.f32 %v1389, %v678
  %v1399 = vadd.f32 %v1390, %v678
  %v1400 = vadd.f32 %v1391, %v678
  %v1401 = vadd.f32 %v1392, %v678
  %v1402 = vadd.f32 %v1393, %v678
  %v1403 = vadd.f32 %v1394, %v678
  %v1404 = vadd.f32 %v1395, %v678
  %v1405 = vadd.f32 %v1396, %v678
  %v1406 = vadd.f32 %v1397, %v678
  %v1407 = vmax.f32 %v1398, 0.0
  %v1408 = vmax.f32 %v1399, 0.0
  %v1409 = vmax.f32 %v1400, 0.0
  %v1410 = vmax.f32 %v1401, 0.0
  %v1411 = vmax.f32 %v1402, 0.0
  %v1412 = vmax.f32 %v1403, 0.0
  %v1413 = vmax.f32 %v1404, 0.0
  %v1414 = vmax.f32 %v1405, 0.0
  %v1415 = vmax.f32 %v1406, 0.0
  %v1416 = vpack.c.bf16 %v1408, %v1407
  %v1417 = vpack.c.bf16 %v1410, %v1409
  %v1418 = vpack.c.bf16 %v1412, %v1411
  %v1419 = vpack.c.bf16 %v1414, %v1413
  %v1420 = vpack.c.bf16 %v1415, %v1415
  %v1426 = vunpack.c.l.b16 %v1416
  %v1427 = vunpack.c.h.b16 %v1416
  %v1428 = vunpack.c.l.b16 %v1417
  %v1429 = vunpack.c.h.b16 %v1417
  %v1430 = vunpack.c.l.b16 %v1418
  %v1431 = vunpack.c.h.b16 %v1418
  %v1432 = vunpack.c.l.b16 %v1419
  %v1433 = vunpack.c.h.b16 %v1419
  %v1434 = vunpack.c.l.b16 %v1420
  %v1435 = vpack.c.b16 %v1426, %v1426
  %v1436 = vpack.c.b16 %v1427, %v1427
  %v1437 = vpack.c.b16 %v1428, %v1428
  %v1438 = vpack.c.b16 %v1429, %v1429
  %v1439 = vpack.c.b16 %v1430, %v1430
  %v1440 = vpack.c.b16 %v1431, %v1431
  %v1441 = vpack.c.b16 %v1432, %v1432
  %v1442 = vpack.c.b16 %v1433, %v1433
  %v1443 = vpack.c.b16 %v1434, %v1434
  %s1453 = scalar_lea.vmem %s3, 36
  %1454 = vst.msk [vmem:[%s1453] sm:$0xf] %vm735, %v1435
  %1455 = vst.msk [vmem:[%s1453 + $0x4] sm:$0xf] %vm735, %v1436
  %1456 = vst.msk [vmem:[%s1453 + $0x8] sm:$0xf] %vm735, %v1437
  %1457 = vst.msk [vmem:[%s1453 + $0xc] sm:$0xf] %vm735, %v1438
  %1458 = vst.msk [vmem:[%s1453 + $0x10] sm:$0xf] %vm735, %v1439
  %1459 = vst.msk [vmem:[%s1453 + $0x14] sm:$0xf] %vm735, %v1440
  %1460 = vst.msk [vmem:[%s1453 + $0x18] sm:$0xf] %vm735, %v1441
  %1461 = vst.msk [vmem:[%s1453 + $0x1c] sm:$0xf] %vm735, %v1442
  %1462 = vst.msk [vmem:[%s1453 + $0x20] sm:$0xf] %vm735, %v1443
  // Predicated region
  $region14: #{_lambda_.3} parent=0 // pred_check
    _
  $region15: #{_lambda_.3} parent=0 // pred_check_branch
    %1464 = sbr.rel (0) target = $region17
  $region16: #{_lambda_.3} parent=0 // pred_region
    _
  $region17: #{_lambda_.3} parent=0 // pred_fallthru
    _
  // Predicated region
  $region18: #{_lambda_.3} parent=0 // pred_check
    _
  $region19: #{_lambda_.3} parent=0 // pred_check_branch
    %1466 = sbr.rel (0) target = $region21
  $region20: #{_lambda_.3} parent=0 // pred_region
    _
  $region21: #{_lambda_.3} parent=0 // pred_fallthru
    _

// kernel: _lambda_.5
$region0: #{_lambda_.5}
  #allocation0 [shape = 'u32[]', space=smem, size = 0x4, offset = 0x4, fixed_abs, tag = 'smem constant byte address 0x4 - core index']
  #allocation1 [shape = 'u32[144,128]{1,0:T(1,128)}', space=vmem, size = 0x12000, scoped, tag = 'internal scratch']
  %s0 = inlined_call_operand.vmem [shape: bf16[2,256], index: 0, kind: input, shape index: {}]
  %s1 = inlined_call_operand.vmem [shape: bf16[256,512], index: 1, kind: input, shape index: {}]
  %s2 = inlined_call_operand.vmem [shape: f32[1,512], index: 2, kind: input, shape index: {}]
  %s3 = inlined_call_operand.hbm [shape: f32[2,512], index: 3, kind: output, shape index: {}]
  %s4 = sld [smem:[#allocation0]]
  $region22: #{_lambda_.5} parent=0
    _
  %s6 = ssub.s32 1, %s4
  %s7 = scalar_select 0, %s6, %s4
  $region1: #{_lambda_.5} parent=0
    #allocation2 [shape = 'u8[4096]{0}', space=vmem, size = 0x1000, scoped, tag = 'output window, operand 0, single buffered']
    #allocation3 [shape = 's32[1]{0}', space=sflag, size = 0x4, scoped, tag = 'scoped memory for _lambda_.5']
    %8 = vsyncpa [#allocation3], 0
    // Predicated region
    $region2: #{_lambda_.5} parent=1 // pred_check
      _
    $region3: #{_lambda_.5} parent=1 // pred_check_branch
      %10 = sbr.rel (0) target = $region5
    $region4: #{_lambda_.5} parent=1 // pred_region
      _
    $region5: #{_lambda_.5} parent=1 // pred_fallthru
      _
    // Predicated region
    $region6: #{_lambda_.5} parent=1 // pred_check
      _
    $region7: #{_lambda_.5} parent=1 // pred_check_branch
      %12 = sbr.rel (0) target = $region9
    $region8: #{_lambda_.5} parent=1 // pred_region
      _
    $region9: #{_lambda_.5} parent=1 // pred_fallthru
      _
    // Predicated region
    $region10: #{_lambda_.5} parent=1 // pred_check
      _
    $region11: #{_lambda_.5} parent=1 // pred_check_branch
      %14 = sbr.rel (0) target = $region13
    $region12: #{_lambda_.5} parent=1 // pred_region
      _
    $region13: #{_lambda_.5} parent=1 // pred_fallthru
      _
    %v15 = vld [vmem:[%s0] sm:$0x3]
    %v16 = vld [vmem:[%s1] sm:$0xff]
    %v17 = vld [vmem:[%s1 + $0x8] sm:$0xff]
    %v18 = vld [vmem:[%s1 + $0x10] sm:$0xff]
    %v19 = vld [vmem:[%s1 + $0x18] sm:$0xff]
    %v20 = vld [vmem:[%s1 + $0x20] sm:$0xff]
    %v21 = vld [vmem:[%s1 + $0x28] sm:$0xff]
    %v22 = vld [vmem:[%s1 + $0x30] sm:$0xff]
    %v23 = vld [vmem:[%s1 + $0x38] sm:$0xff]
    %v24 = vld [vmem:[%s1 + $0x40] sm:$0xff]
    %v25 = vld [vmem:[%s1 + $0x48] sm:$0xff]
    %v26 = vld [vmem:[%s1 + $0x50] sm:$0xff]
    %v27 = vld [vmem:[%s1 + $0x58] sm:$0xff]
    %v28 = vld [vmem:[%s1 + $0x60] sm:$0xff]
    %v29 = vld [vmem:[%s1 + $0x68] sm:$0xff]
    %v30 = vld [vmem:[%s1 + $0x70] sm:$0xff]
    %v31 = vld [vmem:[%s1 + $0x78] sm:$0xff]
    %v32 = vld [vmem:[%s1 + $0x80] sm:$0xff]
    %v33 = vld [vmem:[%s1 + $0x88] sm:$0xff]
    %v34 = vld [vmem:[%s1 + $0x90] sm:$0xff]
    %v35 = vld [vmem:[%s1 + $0x98] sm:$0xff]
    %v36 = vld [vmem:[%s1 + $0xa0] sm:$0xff]
    %v37 = vld [vmem:[%s1 + $0xa8] sm:$0xff]
    %v38 = vld [vmem:[%s1 + $0xb0] sm:$0xff]
    %v39 = vld [vmem:[%s1 + $0xb8] sm:$0xff]
    %v40 = vld [vmem:[%s1 + $0xc0] sm:$0xff]
    %v41 = vld [vmem:[%s1 + $0xc8] sm:$0xff]
    %v42 = vld [vmem:[%s1 + $0xd0] sm:$0xff]
    %v43 = vld [vmem:[%s1 + $0xd8] sm:$0xff]
    %v44 = vld [vmem:[%s1 + $0xe0] sm:$0xff]
    %v45 = vld [vmem:[%s1 + $0xe8] sm:$0xff]
    %v46 = vld [vmem:[%s1 + $0xf0] sm:$0xff]
    %v47 = vld [vmem:[%s1 + $0xf8] sm:$0xff]
    %v48 = vld [vmem:[%s1 + $0x100] sm:$0xff]
    %v49 = vld [vmem:[%s1 + $0x108] sm:$0xff]
    %v50 = vld [vmem:[%s1 + $0x110] sm:$0xff]
    %v51 = vld [vmem:[%s1 + $0x118] sm:$0xff]
    %v52 = vld [vmem:[%s1 + $0x120] sm:$0xff]
    %v53 = vld [vmem:[%s1 + $0x128] sm:$0xff]
    %v54 = vld [vmem:[%s1 + $0x130] sm:$0xff]
    %v55 = vld [vmem:[%s1 + $0x138] sm:$0xff]
    %v56 = vld [vmem:[%s1 + $0x140] sm:$0xff]
    %v57 = vld [vmem:[%s1 + $0x148] sm:$0xff]
    %v58 = vld [vmem:[%s1 + $0x150] sm:$0xff]
    %v59 = vld [vmem:[%s1 + $0x158] sm:$0xff]
    %v60 = vld [vmem:[%s1 + $0x160] sm:$0xff]
    %v61 = vld [vmem:[%s1 + $0x168] sm:$0xff]
    %v62 = vld [vmem:[%s1 + $0x170] sm:$0xff]
    %v63 = vld [vmem:[%s1 + $0x178] sm:$0xff]
    %v64 = vld [vmem:[%s1 + $0x180] sm:$0xff]
    %v65 = vld [vmem:[%s1 + $0x188] sm:$0xff]
    %v66 = vld [vmem:[%s1 + $0x190] sm:$0xff]
    %v67 = vld [vmem:[%s1 + $0x198] sm:$0xff]
    %v68 = vld [vmem:[%s1 + $0x1a0] sm:$0xff]
    %v69 = vld [vmem:[%s1 + $0x1a8] sm:$0xff]
    %v70 = vld [vmem:[%s1 + $0x1b0] sm:$0xff]
    %v71 = vld [vmem:[%s1 + $0x1b8] sm:$0xff]
    %v72 = vld [vmem:[%s1 + $0x1c0] sm:$0xff]
    %v73 = vld [vmem:[%s1 + $0x1c8] sm:$0xff]
    %v74 = vld [vmem:[%s1 + $0x1d0] sm:$0xff]
    %v75 = vld [vmem:[%s1 + $0x1d8] sm:$0xff]
    %v76 = vld [vmem:[%s1 + $0x1e0] sm:$0xff]
    %v77 = vld [vmem:[%s1 + $0x1e8] sm:$0xff]
    %v78 = vld [vmem:[%s1 + $0x1f0] sm:$0xff]
    %v79 = vld [vmem:[%s1 + $0x1f8] sm:$0xff]
    %v80 = vld [vmem:[%s2] sm:$0xf]
    %v82 = vlaneseq
    %v83 = vshrl.u32 %v82, 7
    %v84 = vsub.s32 0, %v83
    %v85 = vrot.slane %v80, %v84
    %v86 = vlaneseq
    %v87 = vshrl.u32 %v86, 7
    %v88 = vsub.s32 1, %v87
    %v89 = vrot.slane %v80, %v88
    %v90 = vlaneseq
    %v91 = vshrl.u32 %v90, 7
    %v92 = vsub.s32 2, %v91
    %v93 = vrot.slane %v80, %v92
    %v94 = vlaneseq
    %v95 = vshrl.u32 %v94, 7
    %v96 = vsub.s32 3, %v95
    %v97 = vrot.slane %v80, %v96
    %v104 = vunpack.c.l.s4 1966171168
    %v105 = vunpack.c.0.s8 %v104
    %v106 = vlaneseq
    %v107 = vshrl.u32 %v106, 7
    %v108 = vsub.s32 %v105, %v107
    %v109 = vrot.slane %v15, %v108
    %v110 = vcombine.high %v109, %v109
    %v112 = vunpack.c.l.s4 1966171168
    %v113 = vunpack.c.0.s8 %v112
    %v114 = vlaneseq
    %v115 = vshrl.u32 %v114, 7
    %v116 = vsub.s32 %v113, %v115
    %v117 = vrot.slane %v109, %v116
    %v119 = vunpack.c.l.s4 1966171168
    %v120 = vunpack.c.0.s8 %v119
    %v121 = vlaneseq
    %v122 = vshrl.u32 %v121, 7
    %v123 = vsub.s32 %v120, %v122
    %v124 = vrot.slane %v110, %v123
    %v191 = vunpack.c.l.b16 %v16
    %v192 = vunpack.c.h.b16 %v16
    %v193 = vunpack.c.l.b16 %v17
    %v194 = vunpack.c.h.b16 %v17
    %v195 = vunpack.c.l.b16 %v18
    %v196 = vunpack.c.h.b16 %v18
    %v197 = vunpack.c.l.b16 %v19
    %v198 = vunpack.c.h.b16 %v19
    %v199 = vunpack.c.l.b16 %v20
    %v200 = vunpack.c.h.b16 %v20
    %v201 = vunpack.c.l.b16 %v21
    %v202 = vunpack.c.h.b16 %v21
    %v203 = vunpack.c.l.b16 %v22
    %v204 = vunpack.c.h.b16 %v22
    %v205 = vunpack.c.l.b16 %v23
    %v206 = vunpack.c.h.b16 %v23
    %v207 = vunpack.c.l.b16 %v24
    %v208 = vunpack.c.h.b16 %v24
    %v209 = vunpack.c.l.b16 %v25
    %v210 = vunpack.c.h.b16 %v25
    %v211 = vunpack.c.l.b16 %v26
    %v212 = vunpack.c.h.b16 %v26
    %v213 = vunpack.c.l.b16 %v27
    %v214 = vunpack.c.h.b16 %v27
    %v215 = vunpack.c.l.b16 %v28
    %v216 = vunpack.c.h.b16 %v28
    %v217 = vunpack.c.l.b16 %v29
    %v218 = vunpack.c.h.b16 %v29
    %v219 = vunpack.c.l.b16 %v30
    %v220 = vunpack.c.h.b16 %v30
    %v221 = vunpack.c.l.b16 %v31
    %v222 = vunpack.c.h.b16 %v31
    %v223 = vunpack.c.l.b16 %v32
    %v224 = vunpack.c.h.b16 %v32
    %v225 = vunpack.c.l.b16 %v33
    %v226 = vunpack.c.h.b16 %v33
    %v227 = vunpack.c.l.b16 %v34
    %v228 = vunpack.c.h.b16 %v34
    %v229 = vunpack.c.l.b16 %v35
    %v230 = vunpack.c.h.b16 %v35
    %v231 = vunpack.c.l.b16 %v36
    %v232 = vunpack.c.h.b16 %v36
    %v233 = vunpack.c.l.b16 %v37
    %v234 = vunpack.c.h.b16 %v37
    %v235 = vunpack.c.l.b16 %v38
    %v236 = vunpack.c.h.b16 %v38
    %v237 = vunpack.c.l.b16 %v39
    %v238 = vunpack.c.h.b16 %v39
    %v239 = vunpack.c.l.b16 %v40
    %v240 = vunpack.c.h.b16 %v40
    %v241 = vunpack.c.l.b16 %v41
    %v242 = vunpack.c.h.b16 %v41
    %v243 = vunpack.c.l.b16 %v42
    %v244 = vunpack.c.h.b16 %v42
    %v245 = vunpack.c.l.b16 %v43
    %v246 = vunpack.c.h.b16 %v43
    %v247 = vunpack.c.l.b16 %v44
    %v248 = vunpack.c.h.b16 %v44
    %v249 = vunpack.c.l.b16 %v45
    %v250 = vunpack.c.h.b16 %v45
    %v251 = vunpack.c.l.b16 %v46
    %v252 = vunpack.c.h.b16 %v46
    %v253 = vunpack.c.l.b16 %v47
    %v254 = vunpack.c.h.b16 %v47
    %v255 = vunpack.c.l.b16 %v48
    %v256 = vunpack.c.h.b16 %v48
    %v257 = vunpack.c.l.b16 %v49
    %v258 = vunpack.c.h.b16 %v49
    %v259 = vunpack.c.l.b16 %v50
    %v260 = vunpack.c.h.b16 %v50
    %v261 = vunpack.c.l.b16 %v51
    %v262 = vunpack.c.h.b16 %v51
    %v263 = vunpack.c.l.b16 %v52
    %v264 = vunpack.c.h.b16 %v52
    %v265 = vunpack.c.l.b16 %v53
    %v266 = vunpack.c.h.b16 %v53
    %v267 = vunpack.c.l.b16 %v54
    %v268 = vunpack.c.h.b16 %v54
    %v269 = vunpack.c.l.b16 %v55
    %v270 = vunpack.c.h.b16 %v55
    %v271 = vunpack.c.l.b16 %v56
    %v272 = vunpack.c.h.b16 %v56
    %v273 = vunpack.c.l.b16 %v57
    %v274 = vunpack.c.h.b16 %v57
    %v275 = vunpack.c.l.b16 %v58
    %v276 = vunpack.c.h.b16 %v58
    %v277 = vunpack.c.l.b16 %v59
    %v278 = vunpack.c.h.b16 %v59
    %v279 = vunpack.c.l.b16 %v60
    %v280 = vunpack.c.h.b16 %v60
    %v281 = vunpack.c.l.b16 %v61
    %v282 = vunpack.c.h.b16 %v61
    %v283 = vunpack.c.l.b16 %v62
    %v284 = vunpack.c.h.b16 %v62
    %v285 = vunpack.c.l.b16 %v63
    %v286 = vunpack.c.h.b16 %v63
    %v287 = vunpack.c.l.b16 %v64
    %v288 = vunpack.c.h.b16 %v64
    %v289 = vunpack.c.l.b16 %v65
    %v290 = vunpack.c.h.b16 %v65
    %v291 = vunpack.c.l.b16 %v66
    %v292 = vunpack.c.h.b16 %v66
    %v293 = vunpack.c.l.b16 %v67
    %v294 = vunpack.c.h.b16 %v67
    %v295 = vunpack.c.l.b16 %v68
    %v296 = vunpack.c.h.b16 %v68
    %v297 = vunpack.c.l.b16 %v69
    %v298 = vunpack.c.h.b16 %v69
    %v299 = vunpack.c.l.b16 %v70
    %v300 = vunpack.c.h.b16 %v70
    %v301 = vunpack.c.l.b16 %v71
    %v302 = vunpack.c.h.b16 %v71
    %v303 = vunpack.c.l.b16 %v72
    %v304 = vunpack.c.h.b16 %v72
    %v305 = vunpack.c.l.b16 %v73
    %v306 = vunpack.c.h.b16 %v73
    %v307 = vunpack.c.l.b16 %v74
    %v308 = vunpack.c.h.b16 %v74
    %v309 = vunpack.c.l.b16 %v75
    %v310 = vunpack.c.h.b16 %v75
    %v311 = vunpack.c.l.b16 %v76
    %v312 = vunpack.c.h.b16 %v76
    %v313 = vunpack.c.l.b16 %v77
    %v314 = vunpack.c.h.b16 %v77
    %v315 = vunpack.c.l.b16 %v78
    %v316 = vunpack.c.h.b16 %v78
    %v317 = vunpack.c.l.b16 %v79
    %v318 = vunpack.c.h.b16 %v79
    %v319 = vpack.c.b16 %v195, %v191
    %v320 = vpack.c.b16 %v196, %v192
    %v321 = vpack.c.b16 %v197, %v193
    %v322 = vpack.c.b16 %v198, %v194
    %v323 = vpack.c.b16 %v203, %v199
    %v324 = vpack.c.b16 %v204, %v200
    %v325 = vpack.c.b16 %v205, %v201
    %v326 = vpack.c.b16 %v206, %v202
    %v327 = vpack.c.b16 %v211, %v207
    %v328 = vpack.c.b16 %v212, %v208
    %v329 = vpack.c.b16 %v213, %v209
    %v330 = vpack.c.b16 %v214, %v210
    %v331 = vpack.c.b16 %v219, %v215
    %v332 = vpack.c.b16 %v220, %v216
    %v333 = vpack.c.b16 %v221, %v217
    %v334 = vpack.c.b16 %v222, %v218
    %v335 = vpack.c.b16 %v227, %v223
    %v336 = vpack.c.b16 %v228, %v224
    %v337 = vpack.c.b16 %v229, %v225
    %v338 = vpack.c.b16 %v230, %v226
    %v339 = vpack.c.b16 %v235, %v231
    %v340 = vpack.c.b16 %v236, %v232
    %v341 = vpack.c.b16 %v237, %v233
    %v342 = vpack.c.b16 %v238, %v234
    %v343 = vpack.c.b16 %v243, %v239
    %v344 = vpack.c.b16 %v244, %v240
    %v345 = vpack.c.b16 %v245, %v241
    %v346 = vpack.c.b16 %v246, %v242
    %v347 = vpack.c.b16 %v251, %v247
    %v348 = vpack.c.b16 %v252, %v248
    %v349 = vpack.c.b16 %v253, %v249
    %v350 = vpack.c.b16 %v254, %v250
    %v351 = vpack.c.b16 %v259, %v255
    %v352 = vpack.c.b16 %v260, %v256
    %v353 = vpack.c.b16 %v261, %v257
    %v354 = vpack.c.b16 %v262, %v258
    %v355 = vpack.c.b16 %v267, %v263
    %v356 = vpack.c.b16 %v268, %v264
    %v357 = vpack.c.b16 %v269, %v265
    %v358 = vpack.c.b16 %v270, %v266
    %v359 = vpack.c.b16 %v275, %v271
    %v360 = vpack.c.b16 %v276, %v272
    %v361 = vpack.c.b16 %v277, %v273
    %v362 = vpack.c.b16 %v278, %v274
    %v363 = vpack.c.b16 %v283, %v279
    %v364 = vpack.c.b16 %v284, %v280
    %v365 = vpack.c.b16 %v285, %v281
    %v366 = vpack.c.b16 %v286, %v282
    %v367 = vpack.c.b16 %v291, %v287
    %v368 = vpack.c.b16 %v292, %v288
    %v369 = vpack.c.b16 %v293, %v289
    %v370 = vpack.c.b16 %v294, %v290
    %v371 = vpack.c.b16 %v299, %v295
    %v372 = vpack.c.b16 %v300, %v296
    %v373 = vpack.c.b16 %v301, %v297
    %v374 = vpack.c.b16 %v302, %v298
    %v375 = vpack.c.b16 %v307, %v303
    %v376 = vpack.c.b16 %v308, %v304
    %v377 = vpack.c.b16 %v309, %v305
    %v378 = vpack.c.b16 %v310, %v306
    %v379 = vpack.c.b16 %v315, %v311
    %v380 = vpack.c.b16 %v316, %v312
    %v381 = vpack.c.b16 %v317, %v313
    %v382 = vpack.c.b16 %v318, %v314
    %447 = vmatprep.subr.bf16.mxu0 %v320
    %448 = vmatpush1.bf16.msra.mxu0 %v319
    %449 = vmatprep.subr.bf16.mxu0 %v324
    %450 = vmatpush1.bf16.msra.mxu0 %v323
    %451 = vmatprep.subr.bf16.mxu0 %v328
    %452 = vmatpush1.bf16.msra.mxu0 %v327
    %453 = vmatprep.subr.bf16.mxu0 %v332
    %454 = vmatpush1.bf16.msra.mxu0 %v331
    %455 = vmatprep.subr.bf16.mxu0 %v336
    %456 = vmatpush1.bf16.msra.mxu0 %v335
    %457 = vmatprep.subr.bf16.mxu0 %v340
    %458 = vmatpush1.bf16.msra.mxu0 %v339
    %459 = vmatprep.subr.bf16.mxu0 %v344
    %460 = vmatpush1.bf16.msra.mxu0 %v343
    %461 = vmatprep.subr.bf16.mxu0 %v348
    %462 = vmatpush1.bf16.msra.mxu0 %v347
    %463 = vmatprep.subr.bf16.mxu0 %v352
    %464 = vmatpush1.bf16.msra.mxu0 %v351
    %465 = vmatprep.subr.bf16.mxu0 %v356
    %466 = vmatpush1.bf16.msra.mxu0 %v355
    %467 = vmatprep.subr.bf16.mxu0 %v360
    %468 = vmatpush1.bf16.msra.mxu0 %v359
    %469 = vmatprep.subr.bf16.mxu0 %v364
    %470 = vmatpush1.bf16.msra.mxu0 %v363
    %471 = vmatprep.subr.bf16.mxu0 %v368
    %472 = vmatpush1.bf16.msra.mxu0 %v367
    %473 = vmatprep.subr.bf16.mxu0 %v372
    %474 = vmatpush1.bf16.msra.mxu0 %v371
    %475 = vmatprep.subr.bf16.mxu0 %v376
    %476 = vmatpush1.bf16.msra.mxu0 %v375
    %477 = vmatprep.subr.bf16.mxu0 %v380
    %478 = vmatpush1.bf16.msra.mxu0 %v379
    %479 = vmatprep.mubr.bf16.mxu0 %v124
    %480 = vmatmul.mubr.bf16.gmra.mrb[0].mxu0 %v117
    %v481 = vpop.f32.mrb[0].mxu0
    %v482 = vadd.f32 %v85, %v481
    %v483 = vpop.f32.mrb[0].mxu0
    %v484 = vadd.f32 %v89, %v483
    %v485 = vpop.f32.mrb[0].mxu0
    %v486 = vpop.f32.mrb[0].mxu0
    %487 = vdwg.mxu0
    %488 = vmatprep.subr.bf16.mxu0 %v322
    %489 = vmatpush1.bf16.msra.mxu0 %v321
    %490 = vmatprep.subr.bf16.mxu0 %v326
    %491 = vmatpush1.bf16.msra.mxu0 %v325
    %492 = vmatprep.subr.bf16.mxu0 %v330
    %493 = vmatpush1.bf16.msra.mxu0 %v329
    %494 = vmatprep.subr.bf16.mxu0 %v334
    %495 = vmatpush1.bf16.msra.mxu0 %v333
    %496 = vmatprep.subr.bf16.mxu0 %v338
    %497 = vmatpush1.bf16.msra.mxu0 %v337
    %498 = vmatprep.subr.bf16.mxu0 %v342
    %499 = vmatpush1.bf16.msra.mxu0 %v341
    %500 = vmatprep.subr.bf16.mxu0 %v346
    %501 = vmatpush1.bf16.msra.mxu0 %v345
    %502 = vmatprep.subr.bf16.mxu0 %v350
    %503 = vmatpush1.bf16.msra.mxu0 %v349
    %504 = vmatprep.subr.bf16.mxu0 %v354
    %505 = vmatpush1.bf16.msra.mxu0 %v353
    %506 = vmatprep.subr.bf16.mxu0 %v358
    %507 = vmatpush1.bf16.msra.mxu0 %v357
    %508 = vmatprep.subr.bf16.mxu0 %v362
    %509 = vmatpush1.bf16.msra.mxu0 %v361
    %510 = vmatprep.subr.bf16.mxu0 %v366
    %511 = vmatpush1.bf16.msra.mxu0 %v365
    %512 = vmatprep.subr.bf16.mxu0 %v370
    %513 = vmatpush1.bf16.msra.mxu0 %v369
    %514 = vmatprep.subr.bf16.mxu0 %v374
    %515 = vmatpush1.bf16.msra.mxu0 %v373
    %516 = vmatprep.subr.bf16.mxu0 %v378
    %517 = vmatpush1.bf16.msra.mxu0 %v377
    %518 = vmatprep.subr.bf16.mxu0 %v382
    %519 = vmatpush1.bf16.msra.mxu0 %v381
    %520 = vmatprep.mubr.bf16.mxu0 %v124
    %521 = vmatmul.mubr.bf16.gmra.mrb[0].mxu0 %v117
    %v522 = vpop.f32.mrb[0].mxu0
    %v523 = vadd.f32 %v93, %v522
    %v524 = vpop.f32.mrb[0].mxu0
    %v525 = vadd.f32 %v97, %v524
    %v526 = vpop.f32.mrb[0].mxu0
    %v527 = vpop.f32.mrb[0].mxu0
    %528 = vdwg.mxu0
    %v529 = vmax.f32 %v482, 0.0
    %v530 = vmax.f32 %v484, 0.0
    %v531 = vmax.f32 %v523, 0.0
    %v532 = vmax.f32 %v525, 0.0
    %v537 = vcombine.low %v529, %v530
    %v538 = vcombine.low %v531, %v532
    %v540 = vunpack.c.l.s4 1983009808
    %v541 = vunpack.c.0.s8 %v540
    %v542 = vlaneseq
    %v543 = vshrl.u32 %v542, 7
    %v544 = vsub.s32 %v541, %v543
    %v545 = vrot.slane %v537, %v544
    %v547 = vunpack.c.l.s4 1983009808
    %v548 = vunpack.c.0.s8 %v547
    %v549 = vlaneseq
    %v550 = vshrl.u32 %v549, 7
    %v551 = vsub.s32 %v548, %v550
    %v552 = vrot.slane %v538, %v551
    %v553 = vcombine.low %v545, %v552
    %555 = vst [vmem:[#allocation2] sm:$0xff] %v553
    // Predicated region
    $region14: #{_lambda_.5} parent=1 // pred_check
      _
    $region15: #{_lambda_.5} parent=1 // pred_check_branch
      %557 = sbr.rel (0) target = $region17
    $region16: #{_lambda_.5} parent=1 // pred_region
      %s559 = ssub.s32 128, 128
      %560 = vsyncadd [#allocation3], %s559
      %s562 = sshll.u32 [#allocation2], 4
      %s563 = int_to_ptr.vmem [resolvable:$true] %s562
      %565 = dma.vmem_to_hbm [thread:$0]  %s563, 128, %s3, [#allocation3]
    $region17: #{_lambda_.5} parent=1 // pred_fallthru
      _
    // Predicated region
    $region18: #{_lambda_.5} parent=1 // pred_check
      _
    $region19: #{_lambda_.5} parent=1 // pred_check_branch
      %567 = sbr.rel (0) target = $region21
    $region20: #{_lambda_.5} parent=1 // pred_region
      %568 = dma.done [#allocation3], 128
    $region21: #{_lambda_.5} parent=1 // pred_fallthru
      _
    %569 = vsyncpa [#allocation3], 1

// kernel: _lambda_.4
$region0: #{_lambda_.4}
  #allocation0 [shape = 'u32[]', space=smem, size = 0x4, offset = 0x4, fixed_abs, tag = 'smem constant byte address 0x4 - core index']
  #allocation1 [shape = 'u32[144,128]{1,0:T(1,128)}', space=vmem, size = 0x12000, scoped, tag = 'internal scratch']
  #allocation2 [shape = 'bf16[16,64]{1,0:T(16,128)(2,1)}', space=vmem, size = 0x1000, scoped, tag = 'scratch operand']
  %s0 = inlined_call_operand.vmem [shape: bf16[2,24,128], index: 0, kind: input, shape index: {}]
  %s1 = inlined_call_operand.vmem [shape: bf16[4,128,64], index: 1, kind: input, shape index: {}]
  %s2 = inlined_call_operand.vmem [shape: f32[1,64], index: 2, kind: input, shape index: {}]
  %s3 = inlined_call_operand.vmem [shape: bf16[9,64,64], index: 3, kind: input, shape index: {}]
  %s4 = inlined_call_operand.vmem [shape: f32[1,64], index: 4, kind: input, shape index: {}]
  %s5 = inlined_call_operand.vmem [shape: bf16[2,4,64], index: 5, kind: output, shape index: {}]
  %s6 = sld [smem:[#allocation0]]
  $region30: #{_lambda_.4} parent=0
    _
  %s8 = ssub.s32 1, %s6
  %s9 = scalar_select 0, %s8, %s6
  // Predicated region
  $region2: #{_lambda_.4} parent=0 // pred_check
    _
  $region3: #{_lambda_.4} parent=0 // pred_check_branch
    %11 = sbr.rel (0) target = $region5
  $region4: #{_lambda_.4} parent=0 // pred_region
    _
  $region5: #{_lambda_.4} parent=0 // pred_fallthru
    _
  // Predicated region
  $region6: #{_lambda_.4} parent=0 // pred_check
    _
  $region7: #{_lambda_.4} parent=0 // pred_check_branch
    %13 = sbr.rel (0) target = $region9
  $region8: #{_lambda_.4} parent=0 // pred_region
    _
  $region9: #{_lambda_.4} parent=0 // pred_fallthru
    _
  // Predicated region
  $region10: #{_lambda_.4} parent=0 // pred_check
    _
  $region11: #{_lambda_.4} parent=0 // pred_check_branch
    %15 = sbr.rel (0) target = $region13
  $region12: #{_lambda_.4} parent=0 // pred_region
    _
  $region13: #{_lambda_.4} parent=0 // pred_fallthru
    _
  // Predicated region
  $region14: #{_lambda_.4} parent=0 // pred_check
    _
  $region15: #{_lambda_.4} parent=0 // pred_check_branch
    %17 = sbr.rel (0) target = $region17
  $region16: #{_lambda_.4} parent=0 // pred_region
    _
  $region17: #{_lambda_.4} parent=0 // pred_fallthru
    _
  // Predicated region
  $region18: #{_lambda_.4} parent=0 // pred_check
    _
  $region19: #{_lambda_.4} parent=0 // pred_check_branch
    %19 = sbr.rel (0) target = $region21
  $region20: #{_lambda_.4} parent=0 // pred_region
    _
  $region21: #{_lambda_.4} parent=0 // pred_fallthru
    _
  %v21 = vld [vmem:[%s2] sm:$0x1]
  %v22 = vld [vmem:[%s4] sm:$0x1]
  %v23 = vld [vmem:[%s0] sm:$0xf]
  %v24 = vld [vmem:[%s0 + $0x4] sm:$0xf]
  %v25 = vld [vmem:[%s1] sm:$0xf]
  %v26 = vld [vmem:[%s1 + $0x4] sm:$0xf]
  %v27 = vld [vmem:[%s1 + $0x8] sm:$0xf]
  %v28 = vld [vmem:[%s1 + $0xc] sm:$0xf]
  %v29 = vld [vmem:[%s1 + $0x10] sm:$0xf]
  %v30 = vld [vmem:[%s1 + $0x14] sm:$0xf]
  %v31 = vld [vmem:[%s1 + $0x18] sm:$0xf]
  %v32 = vld [vmem:[%s1 + $0x1c] sm:$0xf]
  %v33 = vld [vmem:[%s1 + $0x20] sm:$0xf]
  %v34 = vld [vmem:[%s1 + $0x24] sm:$0xf]
  %v35 = vld [vmem:[%s1 + $0x28] sm:$0xf]
  %v36 = vld [vmem:[%s1 + $0x2c] sm:$0xf]
  %v37 = vld [vmem:[%s1 + $0x30] sm:$0xf]
  %v38 = vld [vmem:[%s1 + $0x34] sm:$0xf]
  %v39 = vld [vmem:[%s1 + $0x38] sm:$0xf]
  %v40 = vld [vmem:[%s1 + $0x3c] sm:$0xf]
  %v41 = vld [vmem:[%s0 + $0x8] sm:$0x1]
  %s42 = scalar_lea.vmem %s1, 64
  %v43 = vld [vmem:[%s42] sm:$0xf]
  %v44 = vld [vmem:[%s42 + $0x4] sm:$0xf]
  %v45 = vld [vmem:[%s42 + $0x8] sm:$0xf]
  %v46 = vld [vmem:[%s42 + $0xc] sm:$0xf]
  %v47 = vld [vmem:[%s42 + $0x10] sm:$0xf]
  %v48 = vld [vmem:[%s42 + $0x14] sm:$0xf]
  %v49 = vld [vmem:[%s42 + $0x18] sm:$0xf]
  %v50 = vld [vmem:[%s42 + $0x1c] sm:$0xf]
  %v51 = vld [vmem:[%s42 + $0x20] sm:$0xf]
  %v52 = vld [vmem:[%s42 + $0x24] sm:$0xf]
  %v53 = vld [vmem:[%s42 + $0x28] sm:$0xf]
  %v54 = vld [vmem:[%s42 + $0x2c] sm:$0xf]
  %v55 = vld [vmem:[%s42 + $0x30] sm:$0xf]
  %v56 = vld [vmem:[%s42 + $0x34] sm:$0xf]
  %v57 = vld [vmem:[%s42 + $0x38] sm:$0xf]
  %v58 = vld [vmem:[%s42 + $0x3c] sm:$0xf]
  %v62 = vunpack.c.l.b16 %v23
  %v63 = vunpack.c.l.b16 %v24
  %v64 = vunpack.c.l.b16 %v41
  %v65 = vpack.c.b16 %v63, %v62
  %v66 = vpack.c.b16 %v64, %v64
  %vm67 = vsmask.f32 7424
  %v69 = vshrl.u32 %v65, 16
  %v71 = vshll.u32 %v65, 16
  %v73 = vrot.slane %v71, 1
  %v74 = vor.u32 %v69, %v73
  %v76 = vshll.u32 %v66, 16
  %v78 = vrot.slane %v76, 1
  %v79 = vsel %vm67, %v74, %v78
  %v97 = vunpack.c.l.b16 %v43
  %v98 = vunpack.c.l.b16 %v44
  %v99 = vunpack.c.l.b16 %v45
  %v100 = vunpack.c.l.b16 %v46
  %v101 = vunpack.c.l.b16 %v47
  %v102 = vunpack.c.l.b16 %v48
  %v103 = vunpack.c.l.b16 %v49
  %v104 = vunpack.c.l.b16 %v50
  %v105 = vunpack.c.l.b16 %v51
  %v106 = vunpack.c.l.b16 %v52
  %v107 = vunpack.c.l.b16 %v53
  %v108 = vunpack.c.l.b16 %v54
  %v109 = vunpack.c.l.b16 %v55
  %v110 = vunpack.c.l.b16 %v56
  %v111 = vunpack.c.l.b16 %v57
  %v112 = vunpack.c.l.b16 %v58
  %v113 = vpack.c.b16 %v98, %v97
  %v114 = vpack.c.b16 %v100, %v99
  %v115 = vpack.c.b16 %v102, %v101
  %v116 = vpack.c.b16 %v104, %v103
  %v117 = vpack.c.b16 %v106, %v105
  %v118 = vpack.c.b16 %v108, %v107
  %v119 = vpack.c.b16 %v110, %v109
  %v120 = vpack.c.b16 %v112, %v111
  %129 = vmatprep.subr.bf16.mxu0 0
  %130 = vmatpush1.bf16.msra.mxu0 %v113
  %131 = vmatprep.subr.bf16.mxu0 0
  %132 = vmatpush1.bf16.msra.mxu0 %v114
  %133 = vmatprep.subr.bf16.mxu0 0
  %134 = vmatpush1.bf16.msra.mxu0 %v115
  %135 = vmatprep.subr.bf16.mxu0 0
  %136 = vmatpush1.bf16.msra.mxu0 %v116
  %137 = vmatprep.subr.bf16.mxu0 0
  %138 = vmatpush1.bf16.msra.mxu0 %v117
  %139 = vmatprep.subr.bf16.mxu0 0
  %140 = vmatpush1.bf16.msra.mxu0 %v118
  %141 = vmatprep.subr.bf16.mxu0 0
  %142 = vmatpush1.bf16.msra.mxu0 %v119
  %143 = vmatprep.subr.bf16.mxu0 0
  %144 = vmatpush1.bf16.msra.mxu0 %v120
  %145 = vmatprep.subr.bf16.mxu0 0
  %146 = vmatpush1.bf16.msra.mxu0 0
  %147 = vmatprep.subr.bf16.mxu0 0
  %148 = vmatpush1.bf16.msra.mxu0 0
  %149 = vmatprep.subr.bf16.mxu0 0
  %150 = vmatpush1.bf16.msra.mxu0 0
  %151 = vmatprep.subr.bf16.mxu0 0
  %152 = vmatpush1.bf16.msra.mxu0 0
  %153 = vmatprep.subr.bf16.mxu0 0
  %154 = vmatpush1.bf16.msra.mxu0 0
  %155 = vmatprep.subr.bf16.mxu0 0
  %156 = vmatpush1.bf16.msra.mxu0 0
  %157 = vmatprep.subr.bf16.mxu0 0
  %158 = vmatpush1.bf16.msra.mxu0 0
  %159 = vmatprep.subr.bf16.mxu0 0
  %160 = vmatpush1.bf16.msra.mxu0 0
  %161 = vmatprep.mubr.bf16.mxu0 0
  %162 = vmatmul.mubr.bf16.gmra.mrb[0].mxu0 %v79
  %v163 = vpop.f32.mrb[0].mxu0
  %v164 = vadd.f32 0.0, %v163
  %v165 = vpop.f32.mrb[0].mxu0
  %v166 = vpop.f32.mrb[0].mxu0
  %v167 = vadd.f32 0.0, %v166
  %v168 = vpop.f32.mrb[0].mxu0
  %169 = vdwg.mxu0
  %v187 = vunpack.c.l.b16 %v25
  %v188 = vunpack.c.l.b16 %v26
  %v189 = vunpack.c.l.b16 %v27
  %v190 = vunpack.c.l.b16 %v28
  %v191 = vunpack.c.l.b16 %v29
  %v192 = vunpack.c.l.b16 %v30
  %v193 = vunpack.c.l.b16 %v31
  %v194 = vunpack.c.l.b16 %v32
  %v195 = vunpack.c.l.b16 %v33
  %v196 = vunpack.c.l.b16 %v34
  %v197 = vunpack.c.l.b16 %v35
  %v198 = vunpack.c.l.b16 %v36
  %v199 = vunpack.c.l.b16 %v37
  %v200 = vunpack.c.l.b16 %v38
  %v201 = vunpack.c.l.b16 %v39
  %v202 = vunpack.c.l.b16 %v40
  %v203 = vpack.c.b16 %v188, %v187
  %v204 = vpack.c.b16 %v190, %v189
  %v205 = vpack.c.b16 %v192, %v191
  %v206 = vpack.c.b16 %v194, %v193
  %v207 = vpack.c.b16 %v196, %v195
  %v208 = vpack.c.b16 %v198, %v197
  %v209 = vpack.c.b16 %v200, %v199
  %v210 = vpack.c.b16 %v202, %v201
  %219 = vmatprep.subr.bf16.mxu0 0
  %220 = vmatpush1.bf16.msra.mxu0 %v203
  %221 = vmatprep.subr.bf16.mxu0 0
  %222 = vmatpush1.bf16.msra.mxu0 %v204
  %223 = vmatprep.subr.bf16.mxu0 0
  %224 = vmatpush1.bf16.msra.mxu0 %v205
  %225 = vmatprep.subr.bf16.mxu0 0
  %226 = vmatpush1.bf16.msra.mxu0 %v206
  %227 = vmatprep.subr.bf16.mxu0 0
  %228 = vmatpush1.bf16.msra.mxu0 %v207
  %229 = vmatprep.subr.bf16.mxu0 0
  %230 = vmatpush1.bf16.msra.mxu0 %v208
  %231 = vmatprep.subr.bf16.mxu0 0
  %232 = vmatpush1.bf16.msra.mxu0 %v209
  %233 = vmatprep.subr.bf16.mxu0 0
  %234 = vmatpush1.bf16.msra.mxu0 %v210
  %235 = vmatprep.subr.bf16.mxu0 0
  %236 = vmatpush1.bf16.msra.mxu0 0
  %237 = vmatprep.subr.bf16.mxu0 0
  %238 = vmatpush1.bf16.msra.mxu0 0
  %239 = vmatprep.subr.bf16.mxu0 0
  %240 = vmatpush1.bf16.msra.mxu0 0
  %241 = vmatprep.subr.bf16.mxu0 0
  %242 = vmatpush1.bf16.msra.mxu0 0
  %243 = vmatprep.subr.bf16.mxu0 0
  %244 = vmatpush1.bf16.msra.mxu0 0
  %245 = vmatprep.subr.bf16.mxu0 0
  %246 = vmatpush1.bf16.msra.mxu0 0
  %247 = vmatprep.subr.bf16.mxu0 0
  %248 = vmatpush1.bf16.msra.mxu0 0
  %249 = vmatprep.subr.bf16.mxu0 0
  %250 = vmatpush1.bf16.msra.mxu0 0
  %251 = vmatprep.mubr.bf16.mxu0 0
  %252 = vmatmul.mubr.bf16.gmra.mrb[0].mxu0 %v65
  %v253 = vpop.f32.mrb[0].mxu0
  %v254 = vadd.f32 %v164, %v253
  %v255 = vpop.f32.mrb[0].mxu0
  %v256 = vpop.f32.mrb[0].mxu0
  %v257 = vadd.f32 %v167, %v256
  %v258 = vpop.f32.mrb[0].mxu0
  %259 = vdwg.mxu0
  %v260 = vld [vmem:[%s0] sm:$0xc]
  %v261 = vld [vmem:[%s0 + $0x8] sm:$0x3]
  %s262 = scalar_lea.vmem %s1, 128
  %v263 = vld [vmem:[%s262] sm:$0xf]
  %v264 = vld [vmem:[%s262 + $0x4] sm:$0xf]
  %v265 = vld [vmem:[%s262 + $0x8] sm:$0xf]
  %v266 = vld [vmem:[%s262 + $0xc] sm:$0xf]
  %v267 = vld [vmem:[%s262 + $0x10] sm:$0xf]
  %v268 = vld [vmem:[%s262 + $0x14] sm:$0xf]
  %v269 = vld [vmem:[%s262 + $0x18] sm:$0xf]
  %v270 = vld [vmem:[%s262 + $0x1c] sm:$0xf]
  %v271 = vld [vmem:[%s262 + $0x20] sm:$0xf]
  %v272 = vld [vmem:[%s262 + $0x24] sm:$0xf]
  %v273 = vld [vmem:[%s262 + $0x28] sm:$0xf]
  %v274 = vld [vmem:[%s262 + $0x2c] sm:$0xf]
  %v275 = vld [vmem:[%s262 + $0x30] sm:$0xf]
  %v276 = vld [vmem:[%s262 + $0x34] sm:$0xf]
  %v277 = vld [vmem:[%s262 + $0x38] sm:$0xf]
  %v278 = vld [vmem:[%s262 + $0x3c] sm:$0xf]
  %v281 = vunpack.c.l.b16 %v260
  %v282 = vunpack.c.l.b16 %v261
  %v283 = vpack.c.b16 %v63, %v281
  %v284 = vpack.c.b16 %v282, %v282
  %vm285 = vcmask 1045504
  %v286 = vrot.slane %v283, 2
  %v287 = vrot.slane %v284, 2
  %v288 = vsel %vm285, %v286, %v287
  %v306 = vunpack.c.l.b16 %v263
  %v307 = vunpack.c.l.b16 %v264
  %v308 = vunpack.c.l.b16 %v265
  %v309 = vunpack.c.l.b16 %v266
  %v310 = vunpack.c.l.b16 %v267
  %v311 = vunpack.c.l.b16 %v268
  %v312 = vunpack.c.l.b16 %v269
  %v313 = vunpack.c.l.b16 %v270
  %v314 = vunpack.c.l.b16 %v271
  %v315 = vunpack.c.l.b16 %v272
  %v316 = vunpack.c.l.b16 %v273
  %v317 = vunpack.c.l.b16 %v274
  %v318 = vunpack.c.l.b16 %v275
  %v319 = vunpack.c.l.b16 %v276
  %v320 = vunpack.c.l.b16 %v277
  %v321 = vunpack.c.l.b16 %v278
  %v322 = vpack.c.b16 %v307, %v306
  %v323 = vpack.c.b16 %v309, %v308
  %v324 = vpack.c.b16 %v311, %v310
  %v325 = vpack.c.b16 %v313, %v312
  %v326 = vpack.c.b16 %v315, %v314
  %v327 = vpack.c.b16 %v317, %v316
  %v328 = vpack.c.b16 %v319, %v318
  %v329 = vpack.c.b16 %v321, %v320
  %338 = vmatprep.subr.bf16.mxu0 0
  %339 = vmatpush1.bf16.msra.mxu0 %v322
  %340 = vmatprep.subr.bf16.mxu0 0
  %341 = vmatpush1.bf16.msra.mxu0 %v323
  %342 = vmatprep.subr.bf16.mxu0 0
  %343 = vmatpush1.bf16.msra.mxu0 %v324
  %344 = vmatprep.subr.bf16.mxu0 0
  %345 = vmatpush1.bf16.msra.mxu0 %v325
  %346 = vmatprep.subr.bf16.mxu0 0
  %347 = vmatpush1.bf16.msra.mxu0 %v326
  %348 = vmatprep.subr.bf16.mxu0 0
  %349 = vmatpush1.bf16.msra.mxu0 %v327
  %350 = vmatprep.subr.bf16.mxu0 0
  %351 = vmatpush1.bf16.msra.mxu0 %v328
  %352 = vmatprep.subr.bf16.mxu0 0
  %353 = vmatpush1.bf16.msra.mxu0 %v329
  %354 = vmatprep.subr.bf16.mxu0 0
  %355 = vmatpush1.bf16.msra.mxu0 0
  %356 = vmatprep.subr.bf16.mxu0 0
  %357 = vmatpush1.bf16.msra.mxu0 0
  %358 = vmatprep.subr.bf16.mxu0 0
  %359 = vmatpush1.bf16.msra.mxu0 0
  %360 = vmatprep.subr.bf16.mxu0 0
  %361 = vmatpush1.bf16.msra.mxu0 0
  %362 = vmatprep.subr.bf16.mxu0 0
  %363 = vmatpush1.bf16.msra.mxu0 0
  %364 = vmatprep.subr.bf16.mxu0 0
  %365 = vmatpush1.bf16.msra.mxu0 0
  %366 = vmatprep.subr.bf16.mxu0 0
  %367 = vmatpush1.bf16.msra.mxu0 0
  %368 = vmatprep.subr.bf16.mxu0 0
  %369 = vmatpush1.bf16.msra.mxu0 0
  %370 = vmatprep.mubr.bf16.mxu0 0
  %371 = vmatmul.mubr.bf16.gmra.mrb[0].mxu0 %v288
  %v372 = vpop.f32.mrb[0].mxu0
  %v373 = vadd.f32 0.0, %v372
  %v374 = vpop.f32.mrb[0].mxu0
  %v375 = vpop.f32.mrb[0].mxu0
  %v376 = vadd.f32 0.0, %v375
  %v377 = vpop.f32.mrb[0].mxu0
  %378 = vdwg.mxu0
  %v379 = vadd.f32 %v254, %v373
  %v380 = vadd.f32 %v257, %v376
  %v381 = vld [vmem:[%s0 + $0x8] sm:$0x7]
  %s382 = scalar_lea.vmem %s1, 192
  %v383 = vld [vmem:[%s382] sm:$0xf]
  %v384 = vld [vmem:[%s382 + $0x4] sm:$0xf]
  %v385 = vld [vmem:[%s382 + $0x8] sm:$0xf]
  %v386 = vld [vmem:[%s382 + $0xc] sm:$0xf]
  %v387 = vld [vmem:[%s382 + $0x10] sm:$0xf]
  %v388 = vld [vmem:[%s382 + $0x14] sm:$0xf]
  %v389 = vld [vmem:[%s382 + $0x18] sm:$0xf]
  %v390 = vld [vmem:[%s382 + $0x1c] sm:$0xf]
  %v391 = vld [vmem:[%s382 + $0x20] sm:$0xf]
  %v392 = vld [vmem:[%s382 + $0x24] sm:$0xf]
  %v393 = vld [vmem:[%s382 + $0x28] sm:$0xf]
  %v394 = vld [vmem:[%s382 + $0x2c] sm:$0xf]
  %v395 = vld [vmem:[%s382 + $0x30] sm:$0xf]
  %v396 = vld [vmem:[%s382 + $0x34] sm:$0xf]
  %v397 = vld [vmem:[%s382 + $0x38] sm:$0xf]
  %v398 = vld [vmem:[%s382 + $0x3c] sm:$0xf]
  %v400 = vunpack.c.l.b16 %v381
  %v401 = vpack.c.b16 %v400, %v400
  %vm402 = vsmask.f32 5376
  %v404 = vshrl.u32 %v283, 16
  %v406 = vrot.slane %v404, 2
  %v407 = vshll.u32 %v283, 16
  %v409 = vrot.slane %v407, 3
  %v410 = vor.u32 %v406, %v409
  %v412 = vshrl.u32 %v401, 16
  %v414 = vrot.slane %v412, 2
  %v415 = vshll.u32 %v401, 16
  %v417 = vrot.slane %v415, 3
  %v418 = vor.u32 %v414, %v417
  %v419 = vsel %vm402, %v410, %v418
  %v437 = vunpack.c.l.b16 %v383
  %v438 = vunpack.c.l.b16 %v384
  %v439 = vunpack.c.l.b16 %v385
  %v440 = vunpack.c.l.b16 %v386
  %v441 = vunpack.c.l.b16 %v387
  %v442 = vunpack.c.l.b16 %v388
  %v443 = vunpack.c.l.b16 %v389
  %v444 = vunpack.c.l.b16 %v390
  %v445 = vunpack.c.l.b16 %v391
  %v446 = vunpack.c.l.b16 %v392
  %v447 = vunpack.c.l.b16 %v393
  %v448 = vunpack.c.l.b16 %v394
  %v449 = vunpack.c.l.b16 %v395
  %v450 = vunpack.c.l.b16 %v396
  %v451 = vunpack.c.l.b16 %v397
  %v452 = vunpack.c.l.b16 %v398
  %v453 = vpack.c.b16 %v438, %v437
  %v454 = vpack.c.b16 %v440, %v439
  %v455 = vpack.c.b16 %v442, %v441
  %v456 = vpack.c.b16 %v444, %v443
  %v457 = vpack.c.b16 %v446, %v445
  %v458 = vpack.c.b16 %v448, %v447
  %v459 = vpack.c.b16 %v450, %v449
  %v460 = vpack.c.b16 %v452, %v451
  %469 = vmatprep.subr.bf16.mxu0 0
  %470 = vmatpush1.bf16.msra.mxu0 %v453
  %471 = vmatprep.subr.bf16.mxu0 0
  %472 = vmatpush1.bf16.msra.mxu0 %v454
  %473 = vmatprep.subr.bf16.mxu0 0
  %474 = vmatpush1.bf16.msra.mxu0 %v455
  %475 = vmatprep.subr.bf16.mxu0 0
  %476 = vmatpush1.bf16.msra.mxu0 %v456
  %477 = vmatprep.subr.bf16.mxu0 0
  %478 = vmatpush1.bf16.msra.mxu0 %v457
  %479 = vmatprep.subr.bf16.mxu0 0
  %480 = vmatpush1.bf16.msra.mxu0 %v458
  %481 = vmatprep.subr.bf16.mxu0 0
  %482 = vmatpush1.bf16.msra.mxu0 %v459
  %483 = vmatprep.subr.bf16.mxu0 0
  %484 = vmatpush1.bf16.msra.mxu0 %v460
  %485 = vmatprep.subr.bf16.mxu0 0
  %486 = vmatpush1.bf16.msra.mxu0 0
  %487 = vmatprep.subr.bf16.mxu0 0
  %488 = vmatpush1.bf16.msra.mxu0 0
  %489 = vmatprep.subr.bf16.mxu0 0
  %490 = vmatpush1.bf16.msra.mxu0 0
  %491 = vmatprep.subr.bf16.mxu0 0
  %492 = vmatpush1.bf16.msra.mxu0 0
  %493 = vmatprep.subr.bf16.mxu0 0
  %494 = vmatpush1.bf16.msra.mxu0 0
  %495 = vmatprep.subr.bf16.mxu0 0
  %496 = vmatpush1.bf16.msra.mxu0 0
  %497 = vmatprep.subr.bf16.mxu0 0
  %498 = vmatpush1.bf16.msra.mxu0 0
  %499 = vmatprep.subr.bf16.mxu0 0
  %500 = vmatpush1.bf16.msra.mxu0 0
  %501 = vmatprep.mubr.bf16.mxu0 0
  %502 = vmatmul.mubr.bf16.gmra.mrb[0].mxu0 %v419
  %v503 = vpop.f32.mrb[0].mxu0
  %v504 = vadd.f32 0.0, %v503
  %v505 = vpop.f32.mrb[0].mxu0
  %v506 = vpop.f32.mrb[0].mxu0
  %v507 = vadd.f32 0.0, %v506
  %v508 = vpop.f32.mrb[0].mxu0
  %509 = vdwg.mxu0
  %v510 = vadd.f32 %v379, %v504
  %v511 = vadd.f32 %v380, %v507
  %v513 = vlaneseq
  %v514 = vshrl.u32 %v513, 7
  %v515 = vsub.s32 0, %v514
  %v516 = vrot.slane %v21, %v515
  %v518 = vadd.f32 %v510, %v516
  %v519 = vadd.f32 %v511, %v516
  %v520 = vmax.f32 %v518, 0.0
  %v521 = vmax.f32 %v519, 0.0
  %v522 = vpack.c.bf16 %v521, %v520
  %vm523 = vcmask 523264
  %524 = vst.msk [vmem:[#allocation2] sm:$0xff] %vm523, %v522
  %v525 = vld [vmem:[#allocation2] sm:$0x3]
  %v526 = vld [vmem:[%s3] sm:$0xf]
  %v527 = vld [vmem:[%s3 + $0x4] sm:$0xf]
  %v528 = vld [vmem:[%s3 + $0x8] sm:$0xf]
  %v529 = vld [vmem:[%s3 + $0xc] sm:$0xf]
  %v530 = vld [vmem:[%s3 + $0x10] sm:$0xf]
  %v531 = vld [vmem:[%s3 + $0x14] sm:$0xf]
  %v532 = vld [vmem:[%s3 + $0x18] sm:$0xf]
  %v533 = vld [vmem:[%s3 + $0x1c] sm:$0xf]
  %v534 = vld [vmem:[#allocation2] sm:$0x7]
  %s535 = scalar_lea.vmem %s3, 32
  %v536 = vld [vmem:[%s535] sm:$0xf]
  %v537 = vld [vmem:[%s535 + $0x4] sm:$0xf]
  %v538 = vld [vmem:[%s535 + $0x8] sm:$0xf]
  %v539 = vld [vmem:[%s535 + $0xc] sm:$0xf]
  %v540 = vld [vmem:[%s535 + $0x10] sm:$0xf]
  %v541 = vld [vmem:[%s535 + $0x14] sm:$0xf]
  %v542 = vld [vmem:[%s535 + $0x18] sm:$0xf]
  %v543 = vld [vmem:[%s535 + $0x1c] sm:$0xf]
  %v545 = vshrl.u32 %v534, 16
  %v547 = vshll.u32 %v534, 16
  %v549 = vrot.slane %v547, 1
  %v550 = vor.u32 %v545, %v549
  %v559 = vunpack.c.l.b16 %v536
  %v560 = vunpack.c.l.b16 %v537
  %v561 = vunpack.c.l.b16 %v538
  %v562 = vunpack.c.l.b16 %v539
  %v563 = vunpack.c.l.b16 %v540
  %v564 = vunpack.c.l.b16 %v541
  %v565 = vunpack.c.l.b16 %v542
  %v566 = vunpack.c.l.b16 %v543
  %v567 = vpack.c.b16 %v560, %v559
  %v568 = vpack.c.b16 %v562, %v561
  %v569 = vpack.c.b16 %v564, %v563
  %v570 = vpack.c.b16 %v566, %v565
  %v576 = vsel %vm523, %v550, 0
  %578 = vmatprep.subr.bf16.mxu0 0
  %579 = vmatpush1.bf16.msra.mxu0 %v567
  %580 = vmatprep.subr.bf16.mxu0 0
  %581 = vmatpush1.bf16.msra.mxu0 %v568
  %582 = vmatprep.subr.bf16.mxu0 0
  %583 = vmatpush1.bf16.msra.mxu0 %v569
  %584 = vmatprep.subr.bf16.mxu0 0
  %585 = vmatpush1.bf16.msra.mxu0 %v570
  %586 = vmatprep.subr.bf16.mxu0 0
  %587 = vmatpush1.bf16.msra.mxu0 0
  %588 = vmatprep.subr.bf16.mxu0 0
  %589 = vmatpush1.bf16.msra.mxu0 0
  %590 = vmatprep.subr.bf16.mxu0 0
  %591 = vmatpush1.bf16.msra.mxu0 0
  %592 = vmatprep.subr.bf16.mxu0 0
  %593 = vmatpush1.bf16.msra.mxu0 0
  %594 = vmatprep.subr.bf16.mxu0 0
  %595 = vmatpush1.bf16.msra.mxu0 0
  %596 = vmatprep.subr.bf16.mxu0 0
  %597 = vmatpush1.bf16.msra.mxu0 0
  %598 = vmatprep.subr.bf16.mxu0 0
  %599 = vmatpush1.bf16.msra.mxu0 0
  %600 = vmatprep.subr.bf16.mxu0 0
  %601 = vmatpush1.bf16.msra.mxu0 0
  %602 = vmatprep.subr.bf16.mxu0 0
  %603 = vmatpush1.bf16.msra.mxu0 0
  %604 = vmatprep.subr.bf16.mxu0 0
  %605 = vmatpush1.bf16.msra.mxu0 0
  %606 = vmatprep.subr.bf16.mxu0 0
  %607 = vmatpush1.bf16.msra.mxu0 0
  %608 = vmatprep.subr.bf16.mxu0 0
  %609 = vmatpush1.bf16.msra.mxu0 0
  %610 = vmatprep.mubr.bf16.mxu0 0
  %611 = vmatmul.mubr.bf16.gmra.mrb[0].mxu0 %v576
  %v612 = vpop.f32.mrb[0].mxu0
  %v613 = vadd.f32 0.0, %v612
  %v614 = vpop.f32.mrb[0].mxu0
  %v615 = vpop.f32.mrb[0].mxu0
  %v616 = vpop.f32.mrb[0].mxu0
  %617 = vdwg.mxu0
  %v626 = vunpack.c.l.b16 %v526
  %v627 = vunpack.c.l.b16 %v527
  %v628 = vunpack.c.l.b16 %v528
  %v629 = vunpack.c.l.b16 %v529
  %v630 = vunpack.c.l.b16 %v530
  %v631 = vunpack.c.l.b16 %v531
  %v632 = vunpack.c.l.b16 %v532
  %v633 = vunpack.c.l.b16 %v533
  %v634 = vpack.c.b16 %v627, %v626
  %v635 = vpack.c.b16 %v629, %v628
  %v636 = vpack.c.b16 %v631, %v630
  %v637 = vpack.c.b16 %v633, %v632
  %v643 = vsel %vm523, %v525, 0
  %645 = vmatprep.subr.bf16.mxu0 0
  %646 = vmatpush1.bf16.msra.mxu0 %v634
  %647 = vmatprep.subr.bf16.mxu0 0
  %648 = vmatpush1.bf16.msra.mxu0 %v635
  %649 = vmatprep.subr.bf16.mxu0 0
  %650 = vmatpush1.bf16.msra.mxu0 %v636
  %651 = vmatprep.subr.bf16.mxu0 0
  %652 = vmatpush1.bf16.msra.mxu0 %v637
  %653 = vmatprep.subr.bf16.mxu0 0
  %654 = vmatpush1.bf16.msra.mxu0 0
  %655 = vmatprep.subr.bf16.mxu0 0
  %656 = vmatpush1.bf16.msra.mxu0 0
  %657 = vmatprep.subr.bf16.mxu0 0
  %658 = vmatpush1.bf16.msra.mxu0 0
  %659 = vmatprep.subr.bf16.mxu0 0
  %660 = vmatpush1.bf16.msra.mxu0 0
  %661 = vmatprep.subr.bf16.mxu0 0
  %662 = vmatpush1.bf16.msra.mxu0 0
  %663 = vmatprep.subr.bf16.mxu0 0
  %664 = vmatpush1.bf16.msra.mxu0 0
  %665 = vmatprep.subr.bf16.mxu0 0
  %666 = vmatpush1.bf16.msra.mxu0 0
  %667 = vmatprep.subr.bf16.mxu0 0
  %668 = vmatpush1.bf16.msra.mxu0 0
  %669 = vmatprep.subr.bf16.mxu0 0
  %670 = vmatpush1.bf16.msra.mxu0 0
  %671 = vmatprep.subr.bf16.mxu0 0
  %672 = vmatpush1.bf16.msra.mxu0 0
  %673 = vmatprep.subr.bf16.mxu0 0
  %674 = vmatpush1.bf16.msra.mxu0 0
  %675 = vmatprep.subr.bf16.mxu0 0
  %676 = vmatpush1.bf16.msra.mxu0 0
  %677 = vmatprep.mubr.bf16.mxu0 0
  %678 = vmatmul.mubr.bf16.gmra.mrb[0].mxu0 %v643
  %v679 = vpop.f32.mrb[0].mxu0
  %v680 = vadd.f32 %v613, %v679
  %v681 = vpop.f32.mrb[0].mxu0
  %v682 = vpop.f32.mrb[0].mxu0
  %v683 = vpop.f32.mrb[0].mxu0
  %684 = vdwg.mxu0
  %v685 = vld [vmem:[#allocation2] sm:$0x6]
  %s686 = scalar_lea.vmem %s3, 64
  %v687 = vld [vmem:[%s686] sm:$0xf]
  %v688 = vld [vmem:[%s686 + $0x4] sm:$0xf]
  %v689 = vld [vmem:[%s686 + $0x8] sm:$0xf]
  %v690 = vld [vmem:[%s686 + $0xc] sm:$0xf]
  %v691 = vld [vmem:[%s686 + $0x10] sm:$0xf]
  %v692 = vld [vmem:[%s686 + $0x14] sm:$0xf]
  %v693 = vld [vmem:[%s686 + $0x18] sm:$0xf]
  %v694 = vld [vmem:[%s686 + $0x1c] sm:$0xf]
  %v696 = vrot.slane %v685, 1
  %v705 = vunpack.c.l.b16 %v687
  %v706 = vunpack.c.l.b16 %v688
  %v707 = vunpack.c.l.b16 %v689
  %v708 = vunpack.c.l.b16 %v690
  %v709 = vunpack.c.l.b16 %v691
  %v710 = vunpack.c.l.b16 %v692
  %v711 = vunpack.c.l.b16 %v693
  %v712 = vunpack.c.l.b16 %v694
  %v713 = vpack.c.b16 %v706, %v705
  %v714 = vpack.c.b16 %v708, %v707
  %v715 = vpack.c.b16 %v710, %v709
  %v716 = vpack.c.b16 %v712, %v711
  %v722 = vsel %vm523, %v696, 0
  %724 = vmatprep.subr.bf16.mxu0 0
  %725 = vmatpush1.bf16.msra.mxu0 %v713
  %726 = vmatprep.subr.bf16.mxu0 0
  %727 = vmatpush1.bf16.msra.mxu0 %v714
  %728 = vmatprep.subr.bf16.mxu0 0
  %729 = vmatpush1.bf16.msra.mxu0 %v715
  %730 = vmatprep.subr.bf16.mxu0 0
  %731 = vmatpush1.bf16.msra.mxu0 %v716
  %732 = vmatprep.subr.bf16.mxu0 0
  %733 = vmatpush1.bf16.msra.mxu0 0
  %734 = vmatprep.subr.bf16.mxu0 0
  %735 = vmatpush1.bf16.msra.mxu0 0
  %736 = vmatprep.subr.bf16.mxu0 0
  %737 = vmatpush1.bf16.msra.mxu0 0
  %738 = vmatprep.subr.bf16.mxu0 0
  %739 = vmatpush1.bf16.msra.mxu0 0
  %740 = vmatprep.subr.bf16.mxu0 0
  %741 = vmatpush1.bf16.msra.mxu0 0
  %742 = vmatprep.subr.bf16.mxu0 0
  %743 = vmatpush1.bf16.msra.mxu0 0
  %744 = vmatprep.subr.bf16.mxu0 0
  %745 = vmatpush1.bf16.msra.mxu0 0
  %746 = vmatprep.subr.bf16.mxu0 0
  %747 = vmatpush1.bf16.msra.mxu0 0
  %748 = vmatprep.subr.bf16.mxu0 0
  %749 = vmatpush1.bf16.msra.mxu0 0
  %750 = vmatprep.subr.bf16.mxu0 0
  %751 = vmatpush1.bf16.msra.mxu0 0
  %752 = vmatprep.subr.bf16.mxu0 0
  %753 = vmatpush1.bf16.msra.mxu0 0
  %754 = vmatprep.subr.bf16.mxu0 0
  %755 = vmatpush1.bf16.msra.mxu0 0
  %756 = vmatprep.mubr.bf16.mxu0 0
  %757 = vmatmul.mubr.bf16.gmra.mrb[0].mxu0 %v722
  %v758 = vpop.f32.mrb[0].mxu0
  %v759 = vadd.f32 0.0, %v758
  %v760 = vpop.f32.mrb[0].mxu0
  %v761 = vpop.f32.mrb[0].mxu0
  %v762 = vpop.f32.mrb[0].mxu0
  %763 = vdwg.mxu0
  %v764 = vadd.f32 %v680, %v759
  %v765 = vld [vmem:[#allocation2] sm:$0xc]
  %s766 = scalar_lea.vmem %s3, 96
  %v767 = vld [vmem:[%s766] sm:$0xf]
  %v768 = vld [vmem:[%s766 + $0x4] sm:$0xf]
  %v769 = vld [vmem:[%s766 + $0x8] sm:$0xf]
  %v770 = vld [vmem:[%s766 + $0xc] sm:$0xf]
  %v771 = vld [vmem:[%s766 + $0x10] sm:$0xf]
  %v772 = vld [vmem:[%s766 + $0x14] sm:$0xf]
  %v773 = vld [vmem:[%s766 + $0x18] sm:$0xf]
  %v774 = vld [vmem:[%s766 + $0x1c] sm:$0xf]
  %v776 = vrot.slane %v765, 2
  %v785 = vunpack.c.l.b16 %v767
  %v786 = vunpack.c.l.b16 %v768
  %v787 = vunpack.c.l.b16 %v769
  %v788 = vunpack.c.l.b16 %v770
  %v789 = vunpack.c.l.b16 %v771
  %v790 = vunpack.c.l.b16 %v772
  %v791 = vunpack.c.l.b16 %v773
  %v792 = vunpack.c.l.b16 %v774
  %v793 = vpack.c.b16 %v786, %v785
  %v794 = vpack.c.b16 %v788, %v787
  %v795 = vpack.c.b16 %v790, %v789
  %v796 = vpack.c.b16 %v792, %v791
  %v802 = vsel %vm523, %v776, 0
  %804 = vmatprep.subr.bf16.mxu0 0
  %805 = vmatpush1.bf16.msra.mxu0 %v793
  %806 = vmatprep.subr.bf16.mxu0 0
  %807 = vmatpush1.bf16.msra.mxu0 %v794
  %808 = vmatprep.subr.bf16.mxu0 0
  %809 = vmatpush1.bf16.msra.mxu0 %v795
  %810 = vmatprep.subr.bf16.mxu0 0
  %811 = vmatpush1.bf16.msra.mxu0 %v796
  %812 = vmatprep.subr.bf16.mxu0 0
  %813 = vmatpush1.bf16.msra.mxu0 0
  %814 = vmatprep.subr.bf16.mxu0 0
  %815 = vmatpush1.bf16.msra.mxu0 0
  %816 = vmatprep.subr.bf16.mxu0 0
  %817 = vmatpush1.bf16.msra.mxu0 0
  %818 = vmatprep.subr.bf16.mxu0 0
  %819 = vmatpush1.bf16.msra.mxu0 0
  %820 = vmatprep.subr.bf16.mxu0 0
  %821 = vmatpush1.bf16.msra.mxu0 0
  %822 = vmatprep.subr.bf16.mxu0 0
  %823 = vmatpush1.bf16.msra.mxu0 0
  %824 = vmatprep.subr.bf16.mxu0 0
  %825 = vmatpush1.bf16.msra.mxu0 0
  %826 = vmatprep.subr.bf16.mxu0 0
  %827 = vmatpush1.bf16.msra.mxu0 0
  %828 = vmatprep.subr.bf16.mxu0 0
  %829 = vmatpush1.bf16.msra.mxu0 0
  %830 = vmatprep.subr.bf16.mxu0 0
  %831 = vmatpush1.bf16.msra.mxu0 0
  %832 = vmatprep.subr.bf16.mxu0 0
  %833 = vmatpush1.bf16.msra.mxu0 0
  %834 = vmatprep.subr.bf16.mxu0 0
  %835 = vmatpush1.bf16.msra.mxu0 0
  %836 = vmatprep.mubr.bf16.mxu0 0
  %837 = vmatmul.mubr.bf16.gmra.mrb[0].mxu0 %v802
  %v838 = vpop.f32.mrb[0].mxu0
  %v839 = vadd.f32 0.0, %v838
  %v840 = vpop.f32.mrb[0].mxu0
  %v841 = vpop.f32.mrb[0].mxu0
  %v842 = vpop.f32.mrb[0].mxu0
  %843 = vdwg.mxu0
  %v844 = vadd.f32 %v764, %v839
  %v845 = vld [vmem:[#allocation2] sm:$0x1c]
  %s846 = scalar_lea.vmem %s3, 128
  %v847 = vld [vmem:[%s846] sm:$0xf]
  %v848 = vld [vmem:[%s846 + $0x4] sm:$0xf]
  %v849 = vld [vmem:[%s846 + $0x8] sm:$0xf]
  %v850 = vld [vmem:[%s846 + $0xc] sm:$0xf]
  %v851 = vld [vmem:[%s846 + $0x10] sm:$0xf]
  %v852 = vld [vmem:[%s846 + $0x14] sm:$0xf]
  %v853 = vld [vmem:[%s846 + $0x18] sm:$0xf]
  %v854 = vld [vmem:[%s846 + $0x1c] sm:$0xf]
  %v856 = vshrl.u32 %v845, 16
  %v858 = vrot.slane %v856, 2
  %v859 = vshll.u32 %v845, 16
  %v861 = vrot.slane %v859, 3
  %v862 = vor.u32 %v858, %v861
  %v871 = vunpack.c.l.b16 %v847
  %v872 = vunpack.c.l.b16 %v848
  %v873 = vunpack.c.l.b16 %v849
  %v874 = vunpack.c.l.b16 %v850
  %v875 = vunpack.c.l.b16 %v851
  %v876 = vunpack.c.l.b16 %v852
  %v877 = vunpack.c.l.b16 %v853
  %v878 = vunpack.c.l.b16 %v854
  %v879 = vpack.c.b16 %v872, %v871
  %v880 = vpack.c.b16 %v874, %v873
  %v881 = vpack.c.b16 %v876, %v875
  %v882 = vpack.c.b16 %v878, %v877
  %v888 = vsel %vm523, %v862, 0
  %890 = vmatprep.subr.bf16.mxu0 0
  %891 = vmatpush1.bf16.msra.mxu0 %v879
  %892 = vmatprep.subr.bf16.mxu0 0
  %893 = vmatpush1.bf16.msra.mxu0 %v880
  %894 = vmatprep.subr.bf16.mxu0 0
  %895 = vmatpush1.bf16.msra.mxu0 %v881
  %896 = vmatprep.subr.bf16.mxu0 0
  %897 = vmatpush1.bf16.msra.mxu0 %v882
  %898 = vmatprep.subr.bf16.mxu0 0
  %899 = vmatpush1.bf16.msra.mxu0 0
  %900 = vmatprep.subr.bf16.mxu0 0
  %901 = vmatpush1.bf16.msra.mxu0 0
  %902 = vmatprep.subr.bf16.mxu0 0
  %903 = vmatpush1.bf16.msra.mxu0 0
  %904 = vmatprep.subr.bf16.mxu0 0
  %905 = vmatpush1.bf16.msra.mxu0 0
  %906 = vmatprep.subr.bf16.mxu0 0
  %907 = vmatpush1.bf16.msra.mxu0 0
  %908 = vmatprep.subr.bf16.mxu0 0
  %909 = vmatpush1.bf16.msra.mxu0 0
  %910 = vmatprep.subr.bf16.mxu0 0
  %911 = vmatpush1.bf16.msra.mxu0 0
  %912 = vmatprep.subr.bf16.mxu0 0
  %913 = vmatpush1.bf16.msra.mxu0 0
  %914 = vmatprep.subr.bf16.mxu0 0
  %915 = vmatpush1.bf16.msra.mxu0 0
  %916 = vmatprep.subr.bf16.mxu0 0
  %917 = vmatpush1.bf16.msra.mxu0 0
  %918 = vmatprep.subr.bf16.mxu0 0
  %919 = vmatpush1.bf16.msra.mxu0 0
  %920 = vmatprep.subr.bf16.mxu0 0
  %921 = vmatpush1.bf16.msra.mxu0 0
  %922 = vmatprep.mubr.bf16.mxu0 0
  %923 = vmatmul.mubr.bf16.gmra.mrb[0].mxu0 %v888
  %v924 = vpop.f32.mrb[0].mxu0
  %v925 = vadd.f32 0.0, %v924
  %v926 = vpop.f32.mrb[0].mxu0
  %v927 = vpop.f32.mrb[0].mxu0
  %v928 = vpop.f32.mrb[0].mxu0
  %929 = vdwg.mxu0
  %v930 = vadd.f32 %v844, %v925
  %v931 = vld [vmem:[#allocation2] sm:$0x18]
  %s932 = scalar_lea.vmem %s3, 160
  %v933 = vld [vmem:[%s932] sm:$0xf]
  %v934 = vld [vmem:[%s932 + $0x4] sm:$0xf]
  %v935 = vld [vmem:[%s932 + $0x8] sm:$0xf]
  %v936 = vld [vmem:[%s932 + $0xc] sm:$0xf]
  %v937 = vld [vmem:[%s932 + $0x10] sm:$0xf]
  %v938 = vld [vmem:[%s932 + $0x14] sm:$0xf]
  %v939 = vld [vmem:[%s932 + $0x18] sm:$0xf]
  %v940 = vld [vmem:[%s932 + $0x1c] sm:$0xf]
  %v942 = vrot.slane %v931, 3
  %v951 = vunpack.c.l.b16 %v933
  %v952 = vunpack.c.l.b16 %v934
  %v953 = vunpack.c.l.b16 %v935
  %v954 = vunpack.c.l.b16 %v936
  %v955 = vunpack.c.l.b16 %v937
  %v956 = vunpack.c.l.b16 %v938
  %v957 = vunpack.c.l.b16 %v939
  %v958 = vunpack.c.l.b16 %v940
  %v959 = vpack.c.b16 %v952, %v951
  %v960 = vpack.c.b16 %v954, %v953
  %v961 = vpack.c.b16 %v956, %v955
  %v962 = vpack.c.b16 %v958, %v957
  %v968 = vsel %vm523, %v942, 0
  %970 = vmatprep.subr.bf16.mxu0 0
  %971 = vmatpush1.bf16.msra.mxu0 %v959
  %972 = vmatprep.subr.bf16.mxu0 0
  %973 = vmatpush1.bf16.msra.mxu0 %v960
  %974 = vmatprep.subr.bf16.mxu0 0
  %975 = vmatpush1.bf16.msra.mxu0 %v961
  %976 = vmatprep.subr.bf16.mxu0 0
  %977 = vmatpush1.bf16.msra.mxu0 %v962
  %978 = vmatprep.subr.bf16.mxu0 0
  %979 = vmatpush1.bf16.msra.mxu0 0
  %980 = vmatprep.subr.bf16.mxu0 0
  %981 = vmatpush1.bf16.msra.mxu0 0
  %982 = vmatprep.subr.bf16.mxu0 0
  %983 = vmatpush1.bf16.msra.mxu0 0
  %984 = vmatprep.subr.bf16.mxu0 0
  %985 = vmatpush1.bf16.msra.mxu0 0
  %986 = vmatprep.subr.bf16.mxu0 0
  %987 = vmatpush1.bf16.msra.mxu0 0
  %988 = vmatprep.subr.bf16.mxu0 0
  %989 = vmatpush1.bf16.msra.mxu0 0
  %990 = vmatprep.subr.bf16.mxu0 0
  %991 = vmatpush1.bf16.msra.mxu0 0
  %992 = vmatprep.subr.bf16.mxu0 0
  %993 = vmatpush1.bf16.msra.mxu0 0
  %994 = vmatprep.subr.bf16.mxu0 0
  %995 = vmatpush1.bf16.msra.mxu0 0
  %996 = vmatprep.subr.bf16.mxu0 0
  %997 = vmatpush1.bf16.msra.mxu0 0
  %998 = vmatprep.subr.bf16.mxu0 0
  %999 = vmatpush1.bf16.msra.mxu0 0
  %1000 = vmatprep.subr.bf16.mxu0 0
  %1001 = vmatpush1.bf16.msra.mxu0 0
  %1002 = vmatprep.mubr.bf16.mxu0 0
  %1003 = vmatmul.mubr.bf16.gmra.mrb[0].mxu0 %v968
  %v1004 = vpop.f32.mrb[0].mxu0
  %v1005 = vadd.f32 0.0, %v1004
  %v1006 = vpop.f32.mrb[0].mxu0
  %v1007 = vpop.f32.mrb[0].mxu0
  %v1008 = vpop.f32.mrb[0].mxu0
  %1009 = vdwg.mxu0
  %v1010 = vadd.f32 %v930, %v1005
  %v1011 = vld [vmem:[#allocation2] sm:$0x30]
  %s1012 = scalar_lea.vmem %s3, 192
  %v1013 = vld [vmem:[%s1012] sm:$0xf]
  %v1014 = vld [vmem:[%s1012 + $0x4] sm:$0xf]
  %v1015 = vld [vmem:[%s1012 + $0x8] sm:$0xf]
  %v1016 = vld [vmem:[%s1012 + $0xc] sm:$0xf]
  %v1017 = vld [vmem:[%s1012 + $0x10] sm:$0xf]
  %v1018 = vld [vmem:[%s1012 + $0x14] sm:$0xf]
  %v1019 = vld [vmem:[%s1012 + $0x18] sm:$0xf]
  %v1020 = vld [vmem:[%s1012 + $0x1c] sm:$0xf]
  %v1022 = vrot.slane %v1011, 4
  %v1031 = vunpack.c.l.b16 %v1013
  %v1032 = vunpack.c.l.b16 %v1014
  %v1033 = vunpack.c.l.b16 %v1015
  %v1034 = vunpack.c.l.b16 %v1016
  %v1035 = vunpack.c.l.b16 %v1017
  %v1036 = vunpack.c.l.b16 %v1018
  %v1037 = vunpack.c.l.b16 %v1019
  %v1038 = vunpack.c.l.b16 %v1020
  %v1039 = vpack.c.b16 %v1032, %v1031
  %v1040 = vpack.c.b16 %v1034, %v1033
  %v1041 = vpack.c.b16 %v1036, %v1035
  %v1042 = vpack.c.b16 %v1038, %v1037
  %v1048 = vsel %vm523, %v1022, 0
  %1050 = vmatprep.subr.bf16.mxu0 0
  %1051 = vmatpush1.bf16.msra.mxu0 %v1039
  %1052 = vmatprep.subr.bf16.mxu0 0
  %1053 = vmatpush1.bf16.msra.mxu0 %v1040
  %1054 = vmatprep.subr.bf16.mxu0 0
  %1055 = vmatpush1.bf16.msra.mxu0 %v1041
  %1056 = vmatprep.subr.bf16.mxu0 0
  %1057 = vmatpush1.bf16.msra.mxu0 %v1042
  %1058 = vmatprep.subr.bf16.mxu0 0
  %1059 = vmatpush1.bf16.msra.mxu0 0
  %1060 = vmatprep.subr.bf16.mxu0 0
  %1061 = vmatpush1.bf16.msra.mxu0 0
  %1062 = vmatprep.subr.bf16.mxu0 0
  %1063 = vmatpush1.bf16.msra.mxu0 0
  %1064 = vmatprep.subr.bf16.mxu0 0
  %1065 = vmatpush1.bf16.msra.mxu0 0
  %1066 = vmatprep.subr.bf16.mxu0 0
  %1067 = vmatpush1.bf16.msra.mxu0 0
  %1068 = vmatprep.subr.bf16.mxu0 0
  %1069 = vmatpush1.bf16.msra.mxu0 0
  %1070 = vmatprep.subr.bf16.mxu0 0
  %1071 = vmatpush1.bf16.msra.mxu0 0
  %1072 = vmatprep.subr.bf16.mxu0 0
  %1073 = vmatpush1.bf16.msra.mxu0 0
  %1074 = vmatprep.subr.bf16.mxu0 0
  %1075 = vmatpush1.bf16.msra.mxu0 0
  %1076 = vmatprep.subr.bf16.mxu0 0
  %1077 = vmatpush1.bf16.msra.mxu0 0
  %1078 = vmatprep.subr.bf16.mxu0 0
  %1079 = vmatpush1.bf16.msra.mxu0 0
  %1080 = vmatprep.subr.bf16.mxu0 0
  %1081 = vmatpush1.bf16.msra.mxu0 0
  %1082 = vmatprep.mubr.bf16.mxu0 0
  %1083 = vmatmul.mubr.bf16.gmra.mrb[0].mxu0 %v1048
  %v1084 = vpop.f32.mrb[0].mxu0
  %v1085 = vadd.f32 0.0, %v1084
  %v1086 = vpop.f32.mrb[0].mxu0
  %v1087 = vpop.f32.mrb[0].mxu0
  %v1088 = vpop.f32.mrb[0].mxu0
  %1089 = vdwg.mxu0
  %v1090 = vadd.f32 %v1010, %v1085
  %v1091 = vld [vmem:[#allocation2] sm:$0x70]
  %s1092 = scalar_lea.vmem %s3, 224
  %v1093 = vld [vmem:[%s1092] sm:$0xf]
  %v1094 = vld [vmem:[%s1092 + $0x4] sm:$0xf]
  %v1095 = vld [vmem:[%s1092 + $0x8] sm:$0xf]
  %v1096 = vld [vmem:[%s1092 + $0xc] sm:$0xf]
  %v1097 = vld [vmem:[%s1092 + $0x10] sm:$0xf]
  %v1098 = vld [vmem:[%s1092 + $0x14] sm:$0xf]
  %v1099 = vld [vmem:[%s1092 + $0x18] sm:$0xf]
  %v1100 = vld [vmem:[%s1092 + $0x1c] sm:$0xf]
  %v1102 = vshrl.u32 %v1091, 16
  %v1104 = vrot.slane %v1102, 4
  %v1105 = vshll.u32 %v1091, 16
  %v1107 = vrot.slane %v1105, 5
  %v1108 = vor.u32 %v1104, %v1107
  %v1117 = vunpack.c.l.b16 %v1093
  %v1118 = vunpack.c.l.b16 %v1094
  %v1119 = vunpack.c.l.b16 %v1095
  %v1120 = vunpack.c.l.b16 %v1096
  %v1121 = vunpack.c.l.b16 %v1097
  %v1122 = vunpack.c.l.b16 %v1098
  %v1123 = vunpack.c.l.b16 %v1099
  %v1124 = vunpack.c.l.b16 %v1100
  %v1125 = vpack.c.b16 %v1118, %v1117
  %v1126 = vpack.c.b16 %v1120, %v1119
  %v1127 = vpack.c.b16 %v1122, %v1121
  %v1128 = vpack.c.b16 %v1124, %v1123
  %v1134 = vsel %vm523, %v1108, 0
  %1136 = vmatprep.subr.bf16.mxu0 0
  %1137 = vmatpush1.bf16.msra.mxu0 %v1125
  %1138 = vmatprep.subr.bf16.mxu0 0
  %1139 = vmatpush1.bf16.msra.mxu0 %v1126
  %1140 = vmatprep.subr.bf16.mxu0 0
  %1141 = vmatpush1.bf16.msra.mxu0 %v1127
  %1142 = vmatprep.subr.bf16.mxu0 0
  %1143 = vmatpush1.bf16.msra.mxu0 %v1128
  %1144 = vmatprep.subr.bf16.mxu0 0
  %1145 = vmatpush1.bf16.msra.mxu0 0
  %1146 = vmatprep.subr.bf16.mxu0 0
  %1147 = vmatpush1.bf16.msra.mxu0 0
  %1148 = vmatprep.subr.bf16.mxu0 0
  %1149 = vmatpush1.bf16.msra.mxu0 0
  %1150 = vmatprep.subr.bf16.mxu0 0
  %1151 = vmatpush1.bf16.msra.mxu0 0
  %1152 = vmatprep.subr.bf16.mxu0 0
  %1153 = vmatpush1.bf16.msra.mxu0 0
  %1154 = vmatprep.subr.bf16.mxu0 0
  %1155 = vmatpush1.bf16.msra.mxu0 0
  %1156 = vmatprep.subr.bf16.mxu0 0
  %1157 = vmatpush1.bf16.msra.mxu0 0
  %1158 = vmatprep.subr.bf16.mxu0 0
  %1159 = vmatpush1.bf16.msra.mxu0 0
  %1160 = vmatprep.subr.bf16.mxu0 0
  %1161 = vmatpush1.bf16.msra.mxu0 0
  %1162 = vmatprep.subr.bf16.mxu0 0
  %1163 = vmatpush1.bf16.msra.mxu0 0
  %1164 = vmatprep.subr.bf16.mxu0 0
  %1165 = vmatpush1.bf16.msra.mxu0 0
  %1166 = vmatprep.subr.bf16.mxu0 0
  %1167 = vmatpush1.bf16.msra.mxu0 0
  %1168 = vmatprep.mubr.bf16.mxu0 0
  %1169 = vmatmul.mubr.bf16.gmra.mrb[0].mxu0 %v1134
  %v1170 = vpop.f32.mrb[0].mxu0
  %v1171 = vadd.f32 0.0, %v1170
  %v1172 = vpop.f32.mrb[0].mxu0
  %v1173 = vpop.f32.mrb[0].mxu0
  %v1174 = vpop.f32.mrb[0].mxu0
  %1175 = vdwg.mxu0
  %v1176 = vadd.f32 %v1090, %v1171
  %v1177 = vld [vmem:[#allocation2] sm:$0x60]
  %s1178 = scalar_lea.vmem %s3, 256
  %v1179 = vld [vmem:[%s1178] sm:$0xf]
  %v1180 = vld [vmem:[%s1178 + $0x4] sm:$0xf]
  %v1181 = vld [vmem:[%s1178 + $0x8] sm:$0xf]
  %v1182 = vld [vmem:[%s1178 + $0xc] sm:$0xf]
  %v1183 = vld [vmem:[%s1178 + $0x10] sm:$0xf]
  %v1184 = vld [vmem:[%s1178 + $0x14] sm:$0xf]
  %v1185 = vld [vmem:[%s1178 + $0x18] sm:$0xf]
  %v1186 = vld [vmem:[%s1178 + $0x1c] sm:$0xf]
  %v1188 = vrot.slane %v1177, 5
  %v1197 = vunpack.c.l.b16 %v1179
  %v1198 = vunpack.c.l.b16 %v1180
  %v1199 = vunpack.c.l.b16 %v1181
  %v1200 = vunpack.c.l.b16 %v1182
  %v1201 = vunpack.c.l.b16 %v1183
  %v1202 = vunpack.c.l.b16 %v1184
  %v1203 = vunpack.c.l.b16 %v1185
  %v1204 = vunpack.c.l.b16 %v1186
  %v1205 = vpack.c.b16 %v1198, %v1197
  %v1206 = vpack.c.b16 %v1200, %v1199
  %v1207 = vpack.c.b16 %v1202, %v1201
  %v1208 = vpack.c.b16 %v1204, %v1203
  %v1214 = vsel %vm523, %v1188, 0
  %1216 = vmatprep.subr.bf16.mxu0 0
  %1217 = vmatpush1.bf16.msra.mxu0 %v1205
  %1218 = vmatprep.subr.bf16.mxu0 0
  %1219 = vmatpush1.bf16.msra.mxu0 %v1206
  %1220 = vmatprep.subr.bf16.mxu0 0
  %1221 = vmatpush1.bf16.msra.mxu0 %v1207
  %1222 = vmatprep.subr.bf16.mxu0 0
  %1223 = vmatpush1.bf16.msra.mxu0 %v1208
  %1224 = vmatprep.subr.bf16.mxu0 0
  %1225 = vmatpush1.bf16.msra.mxu0 0
  %1226 = vmatprep.subr.bf16.mxu0 0
  %1227 = vmatpush1.bf16.msra.mxu0 0
  %1228 = vmatprep.subr.bf16.mxu0 0
  %1229 = vmatpush1.bf16.msra.mxu0 0
  %1230 = vmatprep.subr.bf16.mxu0 0
  %1231 = vmatpush1.bf16.msra.mxu0 0
  %1232 = vmatprep.subr.bf16.mxu0 0
  %1233 = vmatpush1.bf16.msra.mxu0 0
  %1234 = vmatprep.subr.bf16.mxu0 0
  %1235 = vmatpush1.bf16.msra.mxu0 0
  %1236 = vmatprep.subr.bf16.mxu0 0
  %1237 = vmatpush1.bf16.msra.mxu0 0
  %1238 = vmatprep.subr.bf16.mxu0 0
  %1239 = vmatpush1.bf16.msra.mxu0 0
  %1240 = vmatprep.subr.bf16.mxu0 0
  %1241 = vmatpush1.bf16.msra.mxu0 0
  %1242 = vmatprep.subr.bf16.mxu0 0
  %1243 = vmatpush1.bf16.msra.mxu0 0
  %1244 = vmatprep.subr.bf16.mxu0 0
  %1245 = vmatpush1.bf16.msra.mxu0 0
  %1246 = vmatprep.subr.bf16.mxu0 0
  %1247 = vmatpush1.bf16.msra.mxu0 0
  %1248 = vmatprep.mubr.bf16.mxu0 0
  %1249 = vmatmul.mubr.bf16.gmra.mrb[0].mxu0 %v1214
  %v1250 = vpop.f32.mrb[0].mxu0
  %v1251 = vadd.f32 0.0, %v1250
  %v1252 = vpop.f32.mrb[0].mxu0
  %v1253 = vpop.f32.mrb[0].mxu0
  %v1254 = vpop.f32.mrb[0].mxu0
  %1255 = vdwg.mxu0
  %v1256 = vadd.f32 %v1176, %v1251
  %v1258 = vlaneseq
  %v1259 = vshrl.u32 %v1258, 7
  %v1260 = vsub.s32 0, %v1259
  %v1261 = vrot.slane %v22, %v1260
  %v1263 = vadd.f32 %v1256, %v1261
  %v1264 = vmax.f32 %v1263, 0.0
  %v1265 = vpack.c.bf16 %v1264, %v1264
  %vm1266 = vcmask 517120
  %1267 = vst.msk [vmem:[%s5] sm:$0x3] %vm1266, %v1265
  %s1268 = scalar_lea.vmem %s0, 12
  %v1269 = vld [vmem:[%s1268] sm:$0xf]
  %v1270 = vld [vmem:[%s1268 + $0x4] sm:$0xf]
  %v1271 = vld [vmem:[%s1] sm:$0xf]
  %v1272 = vld [vmem:[%s1 + $0x4] sm:$0xf]
  %v1273 = vld [vmem:[%s1 + $0x8] sm:$0xf]
  %v1274 = vld [vmem:[%s1 + $0xc] sm:$0xf]
  %v1275 = vld [vmem:[%s1 + $0x10] sm:$0xf]
  %v1276 = vld [vmem:[%s1 + $0x14] sm:$0xf]
  %v1277 = vld [vmem:[%s1 + $0x18] sm:$0xf]
  %v1278 = vld [vmem:[%s1 + $0x1c] sm:$0xf]
  %v1279 = vld [vmem:[%s1 + $0x20] sm:$0xf]
  %v1280 = vld [vmem:[%s1 + $0x24] sm:$0xf]
  %v1281 = vld [vmem:[%s1 + $0x28] sm:$0xf]
  %v1282 = vld [vmem:[%s1 + $0x2c] sm:$0xf]
  %v1283 = vld [vmem:[%s1 + $0x30] sm:$0xf]
  %v1284 = vld [vmem:[%s1 + $0x34] sm:$0xf]
  %v1285 = vld [vmem:[%s1 + $0x38] sm:$0xf]
  %v1286 = vld [vmem:[%s1 + $0x3c] sm:$0xf]
  %v1287 = vld [vmem:[%s1268 + $0x8] sm:$0x1]
  %v1288 = vld [vmem:[%s42] sm:$0xf]
  %v1289 = vld [vmem:[%s42 + $0x4] sm:$0xf]
  %v1290 = vld [vmem:[%s42 + $0x8] sm:$0xf]
  %v1291 = vld [vmem:[%s42 + $0xc] sm:$0xf]
  %v1292 = vld [vmem:[%s42 + $0x10] sm:$0xf]
  %v1293 = vld [vmem:[%s42 + $0x14] sm:$0xf]
  %v1294 = vld [vmem:[%s42 + $0x18] sm:$0xf]
  %v1295 = vld [vmem:[%s42 + $0x1c] sm:$0xf]
  %v1296 = vld [vmem:[%s42 + $0x20] sm:$0xf]
  %v1297 = vld [vmem:[%s42 + $0x24] sm:$0xf]
  %v1298 = vld [vmem:[%s42 + $0x28] sm:$0xf]
  %v1299 = vld [vmem:[%s42 + $0x2c] sm:$0xf]
  %v1300 = vld [vmem:[%s42 + $0x30] sm:$0xf]
  %v1301 = vld [vmem:[%s42 + $0x34] sm:$0xf]
  %v1302 = vld [vmem:[%s42 + $0x38] sm:$0xf]
  %v1303 = vld [vmem:[%s42 + $0x3c] sm:$0xf]
  %v1307 = vunpack.c.l.b16 %v1269
  %v1308 = vunpack.c.l.b16 %v1270
  %v1309 = vunpack.c.l.b16 %v1287
  %v1310 = vpack.c.b16 %v1308, %v1307
  %v1311 = vpack.c.b16 %v1309, %v1309
  %v1313 = vshrl.u32 %v1310, 16
  %v1315 = vshll.u32 %v1310, 16
  %v1317 = vrot.slane %v1315, 1
  %v1318 = vor.u32 %v1313, %v1317
  %v1320 = vshll.u32 %v1311, 16
  %v1322 = vrot.slane %v1320, 1
  %v1323 = vsel %vm67, %v1318, %v1322
  %v1341 = vunpack.c.l.b16 %v1288
  %v1342 = vunpack.c.l.b16 %v1289
  %v1343 = vunpack.c.l.b16 %v1290
  %v1344 = vunpack.c.l.b16 %v1291
  %v1345 = vunpack.c.l.b16 %v1292
  %v1346 = vunpack.c.l.b16 %v1293
  %v1347 = vunpack.c.l.b16 %v1294
  %v1348 = vunpack.c.l.b16 %v1295
  %v1349 = vunpack.c.l.b16 %v1296
  %v1350 = vunpack.c.l.b16 %v1297
  %v1351 = vunpack.c.l.b16 %v1298
  %v1352 = vunpack.c.l.b16 %v1299
  %v1353 = vunpack.c.l.b16 %v1300
  %v1354 = vunpack.c.l.b16 %v1301
  %v1355 = vunpack.c.l.b16 %v1302
  %v1356 = vunpack.c.l.b16 %v1303
  %v1357 = vpack.c.b16 %v1342, %v1341
  %v1358 = vpack.c.b16 %v1344, %v1343
  %v1359 = vpack.c.b16 %v1346, %v1345
  %v1360 = vpack.c.b16 %v1348, %v1347
  %v1361 = vpack.c.b16 %v1350, %v1349
  %v1362 = vpack.c.b16 %v1352, %v1351
  %v1363 = vpack.c.b16 %v1354, %v1353
  %v1364 = vpack.c.b16 %v1356, %v1355
  %1373 = vmatprep.subr.bf16.mxu0 0
  %1374 = vmatpush1.bf16.msra.mxu0 %v1357
  %1375 = vmatprep.subr.bf16.mxu0 0
  %1376 = vmatpush1.bf16.msra.mxu0 %v1358
  %1377 = vmatprep.subr.bf16.mxu0 0
  %1378 = vmatpush1.bf16.msra.mxu0 %v1359
  %1379 = vmatprep.subr.bf16.mxu0 0
  %1380 = vmatpush1.bf16.msra.mxu0 %v1360
  %1381 = vmatprep.subr.bf16.mxu0 0
  %1382 = vmatpush1.bf16.msra.mxu0 %v1361
  %1383 = vmatprep.subr.bf16.mxu0 0
  %1384 = vmatpush1.bf16.msra.mxu0 %v1362
  %1385 = vmatprep.subr.bf16.mxu0 0
  %1386 = vmatpush1.bf16.msra.mxu0 %v1363
  %1387 = vmatprep.subr.bf16.mxu0 0
  %1388 = vmatpush1.bf16.msra.mxu0 %v1364
  %1389 = vmatprep.subr.bf16.mxu0 0
  %1390 = vmatpush1.bf16.msra.mxu0 0
  %1391 = vmatprep.subr.bf16.mxu0 0
  %1392 = vmatpush1.bf16.msra.mxu0 0
  %1393 = vmatprep.subr.bf16.mxu0 0
  %1394 = vmatpush1.bf16.msra.mxu0 0
  %1395 = vmatprep.subr.bf16.mxu0 0
  %1396 = vmatpush1.bf16.msra.mxu0 0
  %1397 = vmatprep.subr.bf16.mxu0 0
  %1398 = vmatpush1.bf16.msra.mxu0 0
  %1399 = vmatprep.subr.bf16.mxu0 0
  %1400 = vmatpush1.bf16.msra.mxu0 0
  %1401 = vmatprep.subr.bf16.mxu0 0
  %1402 = vmatpush1.bf16.msra.mxu0 0
  %1403 = vmatprep.subr.bf16.mxu0 0
  %1404 = vmatpush1.bf16.msra.mxu0 0
  %1405 = vmatprep.mubr.bf16.mxu0 0
  %1406 = vmatmul.mubr.bf16.gmra.mrb[0].mxu0 %v1323
  %v1407 = vpop.f32.mrb[0].mxu0
  %v1408 = vadd.f32 0.0, %v1407
  %v1409 = vpop.f32.mrb[0].mxu0
  %v1410 = vpop.f32.mrb[0].mxu0
  %v1411 = vadd.f32 0.0, %v1410
  %v1412 = vpop.f32.mrb[0].mxu0
  %1413 = vdwg.mxu0
  %v1431 = vunpack.c.l.b16 %v1271
  %v1432 = vunpack.c.l.b16 %v1272
  %v1433 = vunpack.c.l.b16 %v1273
  %v1434 = vunpack.c.l.b16 %v1274
  %v1435 = vunpack.c.l.b16 %v1275
  %v1436 = vunpack.c.l.b16 %v1276
  %v1437 = vunpack.c.l.b16 %v1277
  %v1438 = vunpack.c.l.b16 %v1278
  %v1439 = vunpack.c.l.b16 %v1279
  %v1440 = vunpack.c.l.b16 %v1280
  %v1441 = vunpack.c.l.b16 %v1281
  %v1442 = vunpack.c.l.b16 %v1282
  %v1443 = vunpack.c.l.b16 %v1283
  %v1444 = vunpack.c.l.b16 %v1284
  %v1445 = vunpack.c.l.b16 %v1285
  %v1446 = vunpack.c.l.b16 %v1286
  %v1447 = vpack.c.b16 %v1432, %v1431
  %v1448 = vpack.c.b16 %v1434, %v1433
  %v1449 = vpack.c.b16 %v1436, %v1435
  %v1450 = vpack.c.b16 %v1438, %v1437
  %v1451 = vpack.c.b16 %v1440, %v1439
  %v1452 = vpack.c.b16 %v1442, %v1441
  %v1453 = vpack.c.b16 %v1444, %v1443
  %v1454 = vpack.c.b16 %v1446, %v1445
  %1463 = vmatprep.subr.bf16.mxu0 0
  %1464 = vmatpush1.bf16.msra.mxu0 %v1447
  %1465 = vmatprep.subr.bf16.mxu0 0
  %1466 = vmatpush1.bf16.msra.mxu0 %v1448
  %1467 = vmatprep.subr.bf16.mxu0 0
  %1468 = vmatpush1.bf16.msra.mxu0 %v1449
  %1469 = vmatprep.subr.bf16.mxu0 0
  %1470 = vmatpush1.bf16.msra.mxu0 %v1450
  %1471 = vmatprep.subr.bf16.mxu0 0
  %1472 = vmatpush1.bf16.msra.mxu0 %v1451
  %1473 = vmatprep.subr.bf16.mxu0 0
  %1474 = vmatpush1.bf16.msra.mxu0 %v1452
  %1475 = vmatprep.subr.bf16.mxu0 0
  %1476 = vmatpush1.bf16.msra.mxu0 %v1453
  %1477 = vmatprep.subr.bf16.mxu0 0
  %1478 = vmatpush1.bf16.msra.mxu0 %v1454
  %1479 = vmatprep.subr.bf16.mxu0 0
  %1480 = vmatpush1.bf16.msra.mxu0 0
  %1481 = vmatprep.subr.bf16.mxu0 0
  %1482 = vmatpush1.bf16.msra.mxu0 0
  %1483 = vmatprep.subr.bf16.mxu0 0
  %1484 = vmatpush1.bf16.msra.mxu0 0
  %1485 = vmatprep.subr.bf16.mxu0 0
  %1486 = vmatpush1.bf16.msra.mxu0 0
  %1487 = vmatprep.subr.bf16.mxu0 0
  %1488 = vmatpush1.bf16.msra.mxu0 0
  %1489 = vmatprep.subr.bf16.mxu0 0
  %1490 = vmatpush1.bf16.msra.mxu0 0
  %1491 = vmatprep.subr.bf16.mxu0 0
  %1492 = vmatpush1.bf16.msra.mxu0 0
  %1493 = vmatprep.subr.bf16.mxu0 0
  %1494 = vmatpush1.bf16.msra.mxu0 0
  %1495 = vmatprep.mubr.bf16.mxu0 0
  %1496 = vmatmul.mubr.bf16.gmra.mrb[0].mxu0 %v1310
  %v1497 = vpop.f32.mrb[0].mxu0
  %v1498 = vadd.f32 %v1408, %v1497
  %v1499 = vpop.f32.mrb[0].mxu0
  %v1500 = vpop.f32.mrb[0].mxu0
  %v1501 = vadd.f32 %v1411, %v1500
  %v1502 = vpop.f32.mrb[0].mxu0
  %1503 = vdwg.mxu0
  %v1504 = vld [vmem:[%s1268] sm:$0xc]
  %v1505 = vld [vmem:[%s1268 + $0x8] sm:$0x3]
  %v1506 = vld [vmem:[%s262] sm:$0xf]
  %v1507 = vld [vmem:[%s262 + $0x4] sm:$0xf]
  %v1508 = vld [vmem:[%s262 + $0x8] sm:$0xf]
  %v1509 = vld [vmem:[%s262 + $0xc] sm:$0xf]
  %v1510 = vld [vmem:[%s262 + $0x10] sm:$0xf]
  %v1511 = vld [vmem:[%s262 + $0x14] sm:$0xf]
  %v1512 = vld [vmem:[%s262 + $0x18] sm:$0xf]
  %v1513 = vld [vmem:[%s262 + $0x1c] sm:$0xf]
  %v1514 = vld [vmem:[%s262 + $0x20] sm:$0xf]
  %v1515 = vld [vmem:[%s262 + $0x24] sm:$0xf]
  %v1516 = vld [vmem:[%s262 + $0x28] sm:$0xf]
  %v1517 = vld [vmem:[%s262 + $0x2c] sm:$0xf]
  %v1518 = vld [vmem:[%s262 + $0x30] sm:$0xf]
  %v1519 = vld [vmem:[%s262 + $0x34] sm:$0xf]
  %v1520 = vld [vmem:[%s262 + $0x38] sm:$0xf]
  %v1521 = vld [vmem:[%s262 + $0x3c] sm:$0xf]
  %v1524 = vunpack.c.l.b16 %v1504
  %v1525 = vunpack.c.l.b16 %v1505
  %v1526 = vpack.c.b16 %v1308, %v1524
  %v1527 = vpack.c.b16 %v1525, %v1525
  %v1528 = vrot.slane %v1526, 2
  %v1529 = vrot.slane %v1527, 2
  %v1530 = vsel %vm285, %v1528, %v1529
  %v1548 = vunpack.c.l.b16 %v1506
  %v1549 = vunpack.c.l.b16 %v1507
  %v1550 = vunpack.c.l.b16 %v1508
  %v1551 = vunpack.c.l.b16 %v1509
  %v1552 = vunpack.c.l.b16 %v1510
  %v1553 = vunpack.c.l.b16 %v1511
  %v1554 = vunpack.c.l.b16 %v1512
  %v1555 = vunpack.c.l.b16 %v1513
  %v1556 = vunpack.c.l.b16 %v1514
  %v1557 = vunpack.c.l.b16 %v1515
  %v1558 = vunpack.c.l.b16 %v1516
  %v1559 = vunpack.c.l.b16 %v1517
  %v1560 = vunpack.c.l.b16 %v1518
  %v1561 = vunpack.c.l.b16 %v1519
  %v1562 = vunpack.c.l.b16 %v1520
  %v1563 = vunpack.c.l.b16 %v1521
  %v1564 = vpack.c.b16 %v1549, %v1548
  %v1565 = vpack.c.b16 %v1551, %v1550
  %v1566 = vpack.c.b16 %v1553, %v1552
  %v1567 = vpack.c.b16 %v1555, %v1554
  %v1568 = vpack.c.b16 %v1557, %v1556
  %v1569 = vpack.c.b16 %v1559, %v1558
  %v1570 = vpack.c.b16 %v1561, %v1560
  %v1571 = vpack.c.b16 %v1563, %v1562
  %1580 = vmatprep.subr.bf16.mxu0 0
  %1581 = vmatpush1.bf16.msra.mxu0 %v1564
  %1582 = vmatprep.subr.bf16.mxu0 0
  %1583 = vmatpush1.bf16.msra.mxu0 %v1565
  %1584 = vmatprep.subr.bf16.mxu0 0
  %1585 = vmatpush1.bf16.msra.mxu0 %v1566
  %1586 = vmatprep.subr.bf16.mxu0 0
  %1587 = vmatpush1.bf16.msra.mxu0 %v1567
  %1588 = vmatprep.subr.bf16.mxu0 0
  %1589 = vmatpush1.bf16.msra.mxu0 %v1568
  %1590 = vmatprep.subr.bf16.mxu0 0
  %1591 = vmatpush1.bf16.msra.mxu0 %v1569
  %1592 = vmatprep.subr.bf16.mxu0 0
  %1593 = vmatpush1.bf16.msra.mxu0 %v1570
  %1594 = vmatprep.subr.bf16.mxu0 0
  %1595 = vmatpush1.bf16.msra.mxu0 %v1571
  %1596 = vmatprep.subr.bf16.mxu0 0
  %1597 = vmatpush1.bf16.msra.mxu0 0
  %1598 = vmatprep.subr.bf16.mxu0 0
  %1599 = vmatpush1.bf16.msra.mxu0 0
  %1600 = vmatprep.subr.bf16.mxu0 0
  %1601 = vmatpush1.bf16.msra.mxu0 0
  %1602 = vmatprep.subr.bf16.mxu0 0
  %1603 = vmatpush1.bf16.msra.mxu0 0
  %1604 = vmatprep.subr.bf16.mxu0 0
  %1605 = vmatpush1.bf16.msra.mxu0 0
  %1606 = vmatprep.subr.bf16.mxu0 0
  %1607 = vmatpush1.bf16.msra.mxu0 0
  %1608 = vmatprep.subr.bf16.mxu0 0
  %1609 = vmatpush1.bf16.msra.mxu0 0
  %1610 = vmatprep.subr.bf16.mxu0 0
  %1611 = vmatpush1.bf16.msra.mxu0 0
  %1612 = vmatprep.mubr.bf16.mxu0 0
  %1613 = vmatmul.mubr.bf16.gmra.mrb[0].mxu0 %v1530
  %v1614 = vpop.f32.mrb[0].mxu0
  %v1615 = vadd.f32 0.0, %v1614
  %v1616 = vpop.f32.mrb[0].mxu0
  %v1617 = vpop.f32.mrb[0].mxu0
  %v1618 = vadd.f32 0.0, %v1617
  %v1619 = vpop.f32.mrb[0].mxu0
  %1620 = vdwg.mxu0
  %v1621 = vadd.f32 %v1498, %v1615
  %v1622 = vadd.f32 %v1501, %v1618
  %v1623 = vld [vmem:[%s1268 + $0x8] sm:$0x7]
  %v1624 = vld [vmem:[%s382] sm:$0xf]
  %v1625 = vld [vmem:[%s382 + $0x4] sm:$0xf]
  %v1626 = vld [vmem:[%s382 + $0x8] sm:$0xf]
  %v1627 = vld [vmem:[%s382 + $0xc] sm:$0xf]
  %v1628 = vld [vmem:[%s382 + $0x10] sm:$0xf]
  %v1629 = vld [vmem:[%s382 + $0x14] sm:$0xf]
  %v1630 = vld [vmem:[%s382 + $0x18] sm:$0xf]
  %v1631 = vld [vmem:[%s382 + $0x1c] sm:$0xf]
  %v1632 = vld [vmem:[%s382 + $0x20] sm:$0xf]
  %v1633 = vld [vmem:[%s382 + $0x24] sm:$0xf]
  %v1634 = vld [vmem:[%s382 + $0x28] sm:$0xf]
  %v1635 = vld [vmem:[%s382 + $0x2c] sm:$0xf]
  %v1636 = vld [vmem:[%s382 + $0x30] sm:$0xf]
  %v1637 = vld [vmem:[%s382 + $0x34] sm:$0xf]
  %v1638 = vld [vmem:[%s382 + $0x38] sm:$0xf]
  %v1639 = vld [vmem:[%s382 + $0x3c] sm:$0xf]
  %v1641 = vunpack.c.l.b16 %v1623
  %v1642 = vpack.c.b16 %v1641, %v1641
  %v1644 = vshrl.u32 %v1526, 16
  %v1646 = vrot.slane %v1644, 2
  %v1647 = vshll.u32 %v1526, 16
  %v1649 = vrot.slane %v1647, 3
  %v1650 = vor.u32 %v1646, %v1649
  %v1652 = vshrl.u32 %v1642, 16
  %v1654 = vrot.slane %v1652, 2
  %v1655 = vshll.u32 %v1642, 16
  %v1657 = vrot.slane %v1655, 3
  %v1658 = vor.u32 %v1654, %v1657
  %v1659 = vsel %vm402, %v1650, %v1658
  %v1677 = vunpack.c.l.b16 %v1624
  %v1678 = vunpack.c.l.b16 %v1625
  %v1679 = vunpack.c.l.b16 %v1626
  %v1680 = vunpack.c.l.b16 %v1627
  %v1681 = vunpack.c.l.b16 %v1628
  %v1682 = vunpack.c.l.b16 %v1629
  %v1683 = vunpack.c.l.b16 %v1630
  %v1684 = vunpack.c.l.b16 %v1631
  %v1685 = vunpack.c.l.b16 %v1632
  %v1686 = vunpack.c.l.b16 %v1633
  %v1687 = vunpack.c.l.b16 %v1634
  %v1688 = vunpack.c.l.b16 %v1635
  %v1689 = vunpack.c.l.b16 %v1636
  %v1690 = vunpack.c.l.b16 %v1637
  %v1691 = vunpack.c.l.b16 %v1638
  %v1692 = vunpack.c.l.b16 %v1639
  %v1693 = vpack.c.b16 %v1678, %v1677
  %v1694 = vpack.c.b16 %v1680, %v1679
  %v1695 = vpack.c.b16 %v1682, %v1681
  %v1696 = vpack.c.b16 %v1684, %v1683
  %v1697 = vpack.c.b16 %v1686, %v1685
  %v1698 = vpack.c.b16 %v1688, %v1687
  %v1699 = vpack.c.b16 %v1690, %v1689
  %v1700 = vpack.c.b16 %v1692, %v1691
  %1709 = vmatprep.subr.bf16.mxu0 0
  %1710 = vmatpush1.bf16.msra.mxu0 %v1693
  %1711 = vmatprep.subr.bf16.mxu0 0
  %1712 = vmatpush1.bf16.msra.mxu0 %v1694
  %1713 = vmatprep.subr.bf16.mxu0 0
  %1714 = vmatpush1.bf16.msra.mxu0 %v1695
  %1715 = vmatprep.subr.bf16.mxu0 0
  %1716 = vmatpush1.bf16.msra.mxu0 %v1696
  %1717 = vmatprep.subr.bf16.mxu0 0
  %1718 = vmatpush1.bf16.msra.mxu0 %v1697
  %1719 = vmatprep.subr.bf16.mxu0 0
  %1720 = vmatpush1.bf16.msra.mxu0 %v1698
  %1721 = vmatprep.subr.bf16.mxu0 0
  %1722 = vmatpush1.bf16.msra.mxu0 %v1699
  %1723 = vmatprep.subr.bf16.mxu0 0
  %1724 = vmatpush1.bf16.msra.mxu0 %v1700
  %1725 = vmatprep.subr.bf16.mxu0 0
  %1726 = vmatpush1.bf16.msra.mxu0 0
  %1727 = vmatprep.subr.bf16.mxu0 0
  %1728 = vmatpush1.bf16.msra.mxu0 0
  %1729 = vmatprep.subr.bf16.mxu0 0
  %1730 = vmatpush1.bf16.msra.mxu0 0
  %1731 = vmatprep.subr.bf16.mxu0 0
  %1732 = vmatpush1.bf16.msra.mxu0 0
  %1733 = vmatprep.subr.bf16.mxu0 0
  %1734 = vmatpush1.bf16.msra.mxu0 0
  %1735 = vmatprep.subr.bf16.mxu0 0
  %1736 = vmatpush1.bf16.msra.mxu0 0
  %1737 = vmatprep.subr.bf16.mxu0 0
  %1738 = vmatpush1.bf16.msra.mxu0 0
  %1739 = vmatprep.subr.bf16.mxu0 0
  %1740 = vmatpush1.bf16.msra.mxu0 0
  %1741 = vmatprep.mubr.bf16.mxu0 0
  %1742 = vmatmul.mubr.bf16.gmra.mrb[0].mxu0 %v1659
  %v1743 = vpop.f32.mrb[0].mxu0
  %v1744 = vadd.f32 0.0, %v1743
  %v1745 = vpop.f32.mrb[0].mxu0
  %v1746 = vpop.f32.mrb[0].mxu0
  %v1747 = vadd.f32 0.0, %v1746
  %v1748 = vpop.f32.mrb[0].mxu0
  %1749 = vdwg.mxu0
  %v1750 = vadd.f32 %v1621, %v1744
  %v1751 = vadd.f32 %v1622, %v1747
  %v1752 = vadd.f32 %v1750, %v516
  %v1753 = vadd.f32 %v1751, %v516
  %v1754 = vmax.f32 %v1752, 0.0
  %v1755 = vmax.f32 %v1753, 0.0
  %v1756 = vpack.c.bf16 %v1755, %v1754
  %1757 = vst.msk [vmem:[#allocation2] sm:$0xff] %vm523, %v1756
  %v1758 = vld [vmem:[#allocation2] sm:$0x3]
  %v1759 = vld [vmem:[%s3] sm:$0xf]
  %v1760 = vld [vmem:[%s3 + $0x4] sm:$0xf]
  %v1761 = vld [vmem:[%s3 + $0x8] sm:$0xf]
  %v1762 = vld [vmem:[%s3 + $0xc] sm:$0xf]
  %v1763 = vld [vmem:[%s3 + $0x10] sm:$0xf]
  %v1764 = vld [vmem:[%s3 + $0x14] sm:$0xf]
  %v1765 = vld [vmem:[%s3 + $0x18] sm:$0xf]
  %v1766 = vld [vmem:[%s3 + $0x1c] sm:$0xf]
  %v1767 = vld [vmem:[#allocation2] sm:$0x7]
  %v1768 = vld [vmem:[%s535] sm:$0xf]
  %v1769 = vld [vmem:[%s535 + $0x4] sm:$0xf]
  %v1770 = vld [vmem:[%s535 + $0x8] sm:$0xf]
  %v1771 = vld [vmem:[%s535 + $0xc] sm:$0xf]
  %v1772 = vld [vmem:[%s535 + $0x10] sm:$0xf]
  %v1773 = vld [vmem:[%s535 + $0x14] sm:$0xf]
  %v1774 = vld [vmem:[%s535 + $0x18] sm:$0xf]
  %v1775 = vld [vmem:[%s535 + $0x1c] sm:$0xf]
  %v1777 = vshrl.u32 %v1767, 16
  %v1779 = vshll.u32 %v1767, 16
  %v1781 = vrot.slane %v1779, 1
  %v1782 = vor.u32 %v1777, %v1781
  %v1791 = vunpack.c.l.b16 %v1768
  %v1792 = vunpack.c.l.b16 %v1769
  %v1793 = vunpack.c.l.b16 %v1770
  %v1794 = vunpack.c.l.b16 %v1771
  %v1795 = vunpack.c.l.b16 %v1772
  %v1796 = vunpack.c.l.b16 %v1773
  %v1797 = vunpack.c.l.b16 %v1774
  %v1798 = vunpack.c.l.b16 %v1775
  %v1799 = vpack.c.b16 %v1792, %v1791
  %v1800 = vpack.c.b16 %v1794, %v1793
  %v1801 = vpack.c.b16 %v1796, %v1795
  %v1802 = vpack.c.b16 %v1798, %v1797
  %v1808 = vsel %vm523, %v1782, 0
  %1810 = vmatprep.subr.bf16.mxu0 0
  %1811 = vmatpush1.bf16.msra.mxu0 %v1799
  %1812 = vmatprep.subr.bf16.mxu0 0
  %1813 = vmatpush1.bf16.msra.mxu0 %v1800
  %1814 = vmatprep.subr.bf16.mxu0 0
  %1815 = vmatpush1.bf16.msra.mxu0 %v1801
  %1816 = vmatprep.subr.bf16.mxu0 0
  %1817 = vmatpush1.bf16.msra.mxu0 %v1802
  %1818 = vmatprep.subr.bf16.mxu0 0
  %1819 = vmatpush1.bf16.msra.mxu0 0
  %1820 = vmatprep.subr.bf16.mxu0 0
  %1821 = vmatpush1.bf16.msra.mxu0 0
  %1822 = vmatprep.subr.bf16.mxu0 0
  %1823 = vmatpush1.bf16.msra.mxu0 0
  %1824 = vmatprep.subr.bf16.mxu0 0
  %1825 = vmatpush1.bf16.msra.mxu0 0
  %1826 = vmatprep.subr.bf16.mxu0 0
  %1827 = vmatpush1.bf16.msra.mxu0 0
  %1828 = vmatprep.subr.bf16.mxu0 0
  %1829 = vmatpush1.bf16.msra.mxu0 0
  %1830 = vmatprep.subr.bf16.mxu0 0
  %1831 = vmatpush1.bf16.msra.mxu0 0
  %1832 = vmatprep.subr.bf16.mxu0 0
  %1833 = vmatpush1.bf16.msra.mxu0 0
  %1834 = vmatprep.subr.bf16.mxu0 0
  %1835 = vmatpush1.bf16.msra.mxu0 0
  %1836 = vmatprep.subr.bf16.mxu0 0
  %1837 = vmatpush1.bf16.msra.mxu0 0
  %1838 = vmatprep.subr.bf16.mxu0 0
  %1839 = vmatpush1.bf16.msra.mxu0 0
  %1840 = vmatprep.subr.bf16.mxu0 0
  %1841 = vmatpush1.bf16.msra.mxu0 0
  %1842 = vmatprep.mubr.bf16.mxu0 0
  %1843 = vmatmul.mubr.bf16.gmra.mrb[0].mxu0 %v1808
  %v1844 = vpop.f32.mrb[0].mxu0
  %v1845 = vadd.f32 0.0, %v1844
  %v1846 = vpop.f32.mrb[0].mxu0
  %v1847 = vpop.f32.mrb[0].mxu0
  %v1848 = vpop.f32.mrb[0].mxu0
  %1849 = vdwg.mxu0
  %v1858 = vunpack.c.l.b16 %v1759
  %v1859 = vunpack.c.l.b16 %v1760
  %v1860 = vunpack.c.l.b16 %v1761
  %v1861 = vunpack.c.l.b16 %v1762
  %v1862 = vunpack.c.l.b16 %v1763
  %v1863 = vunpack.c.l.b16 %v1764
  %v1864 = vunpack.c.l.b16 %v1765
  %v1865 = vunpack.c.l.b16 %v1766
  %v1866 = vpack.c.b16 %v1859, %v1858
  %v1867 = vpack.c.b16 %v1861, %v1860
  %v1868 = vpack.c.b16 %v1863, %v1862
  %v1869 = vpack.c.b16 %v1865, %v1864
  %v1875 = vsel %vm523, %v1758, 0
  %1877 = vmatprep.subr.bf16.mxu0 0
  %1878 = vmatpush1.bf16.msra.mxu0 %v1866
  %1879 = vmatprep.subr.bf16.mxu0 0
  %1880 = vmatpush1.bf16.msra.mxu0 %v1867
  %1881 = vmatprep.subr.bf16.mxu0 0
  %1882 = vmatpush1.bf16.msra.mxu0 %v1868
  %1883 = vmatprep.subr.bf16.mxu0 0
  %1884 = vmatpush1.bf16.msra.mxu0 %v1869
  %1885 = vmatprep.subr.bf16.mxu0 0
  %1886 = vmatpush1.bf16.msra.mxu0 0
  %1887 = vmatprep.subr.bf16.mxu0 0
  %1888 = vmatpush1.bf16.msra.mxu0 0
  %1889 = vmatprep.subr.bf16.mxu0 0
  %1890 = vmatpush1.bf16.msra.mxu0 0
  %1891 = vmatprep.subr.bf16.mxu0 0
  %1892 = vmatpush1.bf16.msra.mxu0 0
  %1893 = vmatprep.subr.bf16.mxu0 0
  %1894 = vmatpush1.bf16.msra.mxu0 0
  %1895 = vmatprep.subr.bf16.mxu0 0
  %1896 = vmatpush1.bf16.msra.mxu0 0
  %1897 = vmatprep.subr.bf16.mxu0 0
  %1898 = vmatpush1.bf16.msra.mxu0 0
  %1899 = vmatprep.subr.bf16.mxu0 0
  %1900 = vmatpush1.bf16.msra.mxu0 0
  %1901 = vmatprep.subr.bf16.mxu0 0
  %1902 = vmatpush1.bf16.msra.mxu0 0
  %1903 = vmatprep.subr.bf16.mxu0 0
  %1904 = vmatpush1.bf16.msra.mxu0 0
  %1905 = vmatprep.subr.bf16.mxu0 0
  %1906 = vmatpush1.bf16.msra.mxu0 0
  %1907 = vmatprep.subr.bf16.mxu0 0
  %1908 = vmatpush1.bf16.msra.mxu0 0
  %1909 = vmatprep.mubr.bf16.mxu0 0
  %1910 = vmatmul.mubr.bf16.gmra.mrb[0].mxu0 %v1875
  %v1911 = vpop.f32.mrb[0].mxu0
  %v1912 = vadd.f32 %v1845, %v1911
  %v1913 = vpop.f32.mrb[0].mxu0
  %v1914 = vpop.f32.mrb[0].mxu0
  %v1915 = vpop.f32.mrb[0].mxu0
  %1916 = vdwg.mxu0
  %v1917 = vld [vmem:[#allocation2] sm:$0x6]
  %v1918 = vld [vmem:[%s686] sm:$0xf]
  %v1919 = vld [vmem:[%s686 + $0x4] sm:$0xf]
  %v1920 = vld [vmem:[%s686 + $0x8] sm:$0xf]
  %v1921 = vld [vmem:[%s686 + $0xc] sm:$0xf]
  %v1922 = vld [vmem:[%s686 + $0x10] sm:$0xf]
  %v1923 = vld [vmem:[%s686 + $0x14] sm:$0xf]
  %v1924 = vld [vmem:[%s686 + $0x18] sm:$0xf]
  %v1925 = vld [vmem:[%s686 + $0x1c] sm:$0xf]
  %v1927 = vrot.slane %v1917, 1
  %v1936 = vunpack.c.l.b16 %v1918
  %v1937 = vunpack.c.l.b16 %v1919
  %v1938 = vunpack.c.l.b16 %v1920
  %v1939 = vunpack.c.l.b16 %v1921
  %v1940 = vunpack.c.l.b16 %v1922
  %v1941 = vunpack.c.l.b16 %v1923
  %v1942 = vunpack.c.l.b16 %v1924
  %v1943 = vunpack.c.l.b16 %v1925
  %v1944 = vpack.c.b16 %v1937, %v1936
  %v1945 = vpack.c.b16 %v1939, %v1938
  %v1946 = vpack.c.b16 %v1941, %v1940
  %v1947 = vpack.c.b16 %v1943, %v1942
  %v1953 = vsel %vm523, %v1927, 0
  %1955 = vmatprep.subr.bf16.mxu0 0
  %1956 = vmatpush1.bf16.msra.mxu0 %v1944
  %1957 = vmatprep.subr.bf16.mxu0 0
  %1958 = vmatpush1.bf16.msra.mxu0 %v1945
  %1959 = vmatprep.subr.bf16.mxu0 0
  %1960 = vmatpush1.bf16.msra.mxu0 %v1946
  %1961 = vmatprep.subr.bf16.mxu0 0
  %1962 = vmatpush1.bf16.msra.mxu0 %v1947
  %1963 = vmatprep.subr.bf16.mxu0 0
  %1964 = vmatpush1.bf16.msra.mxu0 0
  %1965 = vmatprep.subr.bf16.mxu0 0
  %1966 = vmatpush1.bf16.msra.mxu0 0
  %1967 = vmatprep.subr.bf16.mxu0 0
  %1968 = vmatpush1.bf16.msra.mxu0 0
  %1969 = vmatprep.subr.bf16.mxu0 0
  %1970 = vmatpush1.bf16.msra.mxu0 0
  %1971 = vmatprep.subr.bf16.mxu0 0
  %1972 = vmatpush1.bf16.msra.mxu0 0
  %1973 = vmatprep.subr.bf16.mxu0 0
  %1974 = vmatpush1.bf16.msra.mxu0 0
  %1975 = vmatprep.subr.bf16.mxu0 0
  %1976 = vmatpush1.bf16.msra.mxu0 0
  %1977 = vmatprep.subr.bf16.mxu0 0
  %1978 = vmatpush1.bf16.msra.mxu0 0
  %1979 = vmatprep.subr.bf16.mxu0 0
  %1980 = vmatpush1.bf16.msra.mxu0 0
  %1981 = vmatprep.subr.bf16.mxu0 0
  %1982 = vmatpush1.bf16.msra.mxu0 0
  %1983 = vmatprep.subr.bf16.mxu0 0
  %1984 = vmatpush1.bf16.msra.mxu0 0
  %1985 = vmatprep.subr.bf16.mxu0 0
  %1986 = vmatpush1.bf16.msra.mxu0 0
  %1987 = vmatprep.mubr.bf16.mxu0 0
  %1988 = vmatmul.mubr.bf16.gmra.mrb[0].mxu0 %v1953
  %v1989 = vpop.f32.mrb[0].mxu0
  %v1990 = vadd.f32 0.0, %v1989
  %v1991 = vpop.f32.mrb[0].mxu0
  %v1992 = vpop.f32.mrb[0].mxu0
  %v1993 = vpop.f32.mrb[0].mxu0
  %1994 = vdwg.mxu0
  %v1995 = vadd.f32 %v1912, %v1990
  %v1996 = vld [vmem:[#allocation2] sm:$0xc]
  %v1997 = vld [vmem:[%s766] sm:$0xf]
  %v1998 = vld [vmem:[%s766 + $0x4] sm:$0xf]
  %v1999 = vld [vmem:[%s766 + $0x8] sm:$0xf]
  %v2000 = vld [vmem:[%s766 + $0xc] sm:$0xf]
  %v2001 = vld [vmem:[%s766 + $0x10] sm:$0xf]
  %v2002 = vld [vmem:[%s766 + $0x14] sm:$0xf]
  %v2003 = vld [vmem:[%s766 + $0x18] sm:$0xf]
  %v2004 = vld [vmem:[%s766 + $0x1c] sm:$0xf]
  %v2006 = vrot.slane %v1996, 2
  %v2015 = vunpack.c.l.b16 %v1997
  %v2016 = vunpack.c.l.b16 %v1998
  %v2017 = vunpack.c.l.b16 %v1999
  %v2018 = vunpack.c.l.b16 %v2000
  %v2019 = vunpack.c.l.b16 %v2001
  %v2020 = vunpack.c.l.b16 %v2002
  %v2021 = vunpack.c.l.b16 %v2003
  %v2022 = vunpack.c.l.b16 %v2004
  %v2023 = vpack.c.b16 %v2016, %v2015
  %v2024 = vpack.c.b16 %v2018, %v2017
  %v2025 = vpack.c.b16 %v2020, %v2019
  %v2026 = vpack.c.b16 %v2022, %v2021
  %v2032 = vsel %vm523, %v2006, 0
  %2034 = vmatprep.subr.bf16.mxu0 0
  %2035 = vmatpush1.bf16.msra.mxu0 %v2023
  %2036 = vmatprep.subr.bf16.mxu0 0
  %2037 = vmatpush1.bf16.msra.mxu0 %v2024
  %2038 = vmatprep.subr.bf16.mxu0 0
  %2039 = vmatpush1.bf16.msra.mxu0 %v2025
  %2040 = vmatprep.subr.bf16.mxu0 0
  %2041 = vmatpush1.bf16.msra.mxu0 %v2026
  %2042 = vmatprep.subr.bf16.mxu0 0
  %2043 = vmatpush1.bf16.msra.mxu0 0
  %2044 = vmatprep.subr.bf16.mxu0 0
  %2045 = vmatpush1.bf16.msra.mxu0 0
  %2046 = vmatprep.subr.bf16.mxu0 0
  %2047 = vmatpush1.bf16.msra.mxu0 0
  %2048 = vmatprep.subr.bf16.mxu0 0
  %2049 = vmatpush1.bf16.msra.mxu0 0
  %2050 = vmatprep.subr.bf16.mxu0 0
  %2051 = vmatpush1.bf16.msra.mxu0 0
  %2052 = vmatprep.subr.bf16.mxu0 0
  %2053 = vmatpush1.bf16.msra.mxu0 0
  %2054 = vmatprep.subr.bf16.mxu0 0
  %2055 = vmatpush1.bf16.msra.mxu0 0
  %2056 = vmatprep.subr.bf16.mxu0 0
  %2057 = vmatpush1.bf16.msra.mxu0 0
  %2058 = vmatprep.subr.bf16.mxu0 0
  %2059 = vmatpush1.bf16.msra.mxu0 0
  %2060 = vmatprep.subr.bf16.mxu0 0
  %2061 = vmatpush1.bf16.msra.mxu0 0
  %2062 = vmatprep.subr.bf16.mxu0 0
  %2063 = vmatpush1.bf16.msra.mxu0 0
  %2064 = vmatprep.subr.bf16.mxu0 0
  %2065 = vmatpush1.bf16.msra.mxu0 0
  %2066 = vmatprep.mubr.bf16.mxu0 0
  %2067 = vmatmul.mubr.bf16.gmra.mrb[0].mxu0 %v2032
  %v2068 = vpop.f32.mrb[0].mxu0
  %v2069 = vadd.f32 0.0, %v2068
  %v2070 = vpop.f32.mrb[0].mxu0
  %v2071 = vpop.f32.mrb[0].mxu0
  %v2072 = vpop.f32.mrb[0].mxu0
  %2073 = vdwg.mxu0
  %v2074 = vadd.f32 %v1995, %v2069
  %v2075 = vld [vmem:[#allocation2] sm:$0x1c]
  %v2076 = vld [vmem:[%s846] sm:$0xf]
  %v2077 = vld [vmem:[%s846 + $0x4] sm:$0xf]
  %v2078 = vld [vmem:[%s846 + $0x8] sm:$0xf]
  %v2079 = vld [vmem:[%s846 + $0xc] sm:$0xf]
  %v2080 = vld [vmem:[%s846 + $0x10] sm:$0xf]
  %v2081 = vld [vmem:[%s846 + $0x14] sm:$0xf]
  %v2082 = vld [vmem:[%s846 + $0x18] sm:$0xf]
  %v2083 = vld [vmem:[%s846 + $0x1c] sm:$0xf]
  %v2085 = vshrl.u32 %v2075, 16
  %v2087 = vrot.slane %v2085, 2
  %v2088 = vshll.u32 %v2075, 16
  %v2090 = vrot.slane %v2088, 3
  %v2091 = vor.u32 %v2087, %v2090
  %v2100 = vunpack.c.l.b16 %v2076
  %v2101 = vunpack.c.l.b16 %v2077
  %v2102 = vunpack.c.l.b16 %v2078
  %v2103 = vunpack.c.l.b16 %v2079
  %v2104 = vunpack.c.l.b16 %v2080
  %v2105 = vunpack.c.l.b16 %v2081
  %v2106 = vunpack.c.l.b16 %v2082
  %v2107 = vunpack.c.l.b16 %v2083
  %v2108 = vpack.c.b16 %v2101, %v2100
  %v2109 = vpack.c.b16 %v2103, %v2102
  %v2110 = vpack.c.b16 %v2105, %v2104
  %v2111 = vpack.c.b16 %v2107, %v2106
  %v2117 = vsel %vm523, %v2091, 0
  %2119 = vmatprep.subr.bf16.mxu0 0
  %2120 = vmatpush1.bf16.msra.mxu0 %v2108
  %2121 = vmatprep.subr.bf16.mxu0 0
  %2122 = vmatpush1.bf16.msra.mxu0 %v2109
  %2123 = vmatprep.subr.bf16.mxu0 0
  %2124 = vmatpush1.bf16.msra.mxu0 %v2110
  %2125 = vmatprep.subr.bf16.mxu0 0
  %2126 = vmatpush1.bf16.msra.mxu0 %v2111
  %2127 = vmatprep.subr.bf16.mxu0 0
  %2128 = vmatpush1.bf16.msra.mxu0 0
  %2129 = vmatprep.subr.bf16.mxu0 0
  %2130 = vmatpush1.bf16.msra.mxu0 0
  %2131 = vmatprep.subr.bf16.mxu0 0
  %2132 = vmatpush1.bf16.msra.mxu0 0
  %2133 = vmatprep.subr.bf16.mxu0 0
  %2134 = vmatpush1.bf16.msra.mxu0 0
  %2135 = vmatprep.subr.bf16.mxu0 0
  %2136 = vmatpush1.bf16.msra.mxu0 0
  %2137 = vmatprep.subr.bf16.mxu0 0
  %2138 = vmatpush1.bf16.msra.mxu0 0
  %2139 = vmatprep.subr.bf16.mxu0 0
  %2140 = vmatpush1.bf16.msra.mxu0 0
  %2141 = vmatprep.subr.bf16.mxu0 0
  %2142 = vmatpush1.bf16.msra.mxu0 0
  %2143 = vmatprep.subr.bf16.mxu0 0
  %2144 = vmatpush1.bf16.msra.mxu0 0
  %2145 = vmatprep.subr.bf16.mxu0 0
  %2146 = vmatpush1.bf16.msra.mxu0 0
  %2147 = vmatprep.subr.bf16.mxu0 0
  %2148 = vmatpush1.bf16.msra.mxu0 0
  %2149 = vmatprep.subr.bf16.mxu0 0
  %2150 = vmatpush1.bf16.msra.mxu0 0
  %2151 = vmatprep.mubr.bf16.mxu0 0
  %2152 = vmatmul.mubr.bf16.gmra.mrb[0].mxu0 %v2117
  %v2153 = vpop.f32.mrb[0].mxu0
  %v2154 = vadd.f32 0.0, %v2153
  %v2155 = vpop.f32.mrb[0].mxu0
  %v2156 = vpop.f32.mrb[0].mxu0
  %v2157 = vpop.f32.mrb[0].mxu0
  %2158 = vdwg.mxu0
  %v2159 = vadd.f32 %v2074, %v2154
  %v2160 = vld [vmem:[#allocation2] sm:$0x18]
  %v2161 = vld [vmem:[%s932] sm:$0xf]
  %v2162 = vld [vmem:[%s932 + $0x4] sm:$0xf]
  %v2163 = vld [vmem:[%s932 + $0x8] sm:$0xf]
  %v2164 = vld [vmem:[%s932 + $0xc] sm:$0xf]
  %v2165 = vld [vmem:[%s932 + $0x10] sm:$0xf]
  %v2166 = vld [vmem:[%s932 + $0x14] sm:$0xf]
  %v2167 = vld [vmem:[%s932 + $0x18] sm:$0xf]
  %v2168 = vld [vmem:[%s932 + $0x1c] sm:$0xf]
  %v2170 = vrot.slane %v2160, 3
  %v2179 = vunpack.c.l.b16 %v2161
  %v2180 = vunpack.c.l.b16 %v2162
  %v2181 = vunpack.c.l.b16 %v2163
  %v2182 = vunpack.c.l.b16 %v2164
  %v2183 = vunpack.c.l.b16 %v2165
  %v2184 = vunpack.c.l.b16 %v2166
  %v2185 = vunpack.c.l.b16 %v2167
  %v2186 = vunpack.c.l.b16 %v2168
  %v2187 = vpack.c.b16 %v2180, %v2179
  %v2188 = vpack.c.b16 %v2182, %v2181
  %v2189 = vpack.c.b16 %v2184, %v2183
  %v2190 = vpack.c.b16 %v2186, %v2185
  %v2196 = vsel %vm523, %v2170, 0
  %2198 = vmatprep.subr.bf16.mxu0 0
  %2199 = vmatpush1.bf16.msra.mxu0 %v2187
  %2200 = vmatprep.subr.bf16.mxu0 0
  %2201 = vmatpush1.bf16.msra.mxu0 %v2188
  %2202 = vmatprep.subr.bf16.mxu0 0
  %2203 = vmatpush1.bf16.msra.mxu0 %v2189
  %2204 = vmatprep.subr.bf16.mxu0 0
  %2205 = vmatpush1.bf16.msra.mxu0 %v2190
  %2206 = vmatprep.subr.bf16.mxu0 0
  %2207 = vmatpush1.bf16.msra.mxu0 0
  %2208 = vmatprep.subr.bf16.mxu0 0
  %2209 = vmatpush1.bf16.msra.mxu0 0
  %2210 = vmatprep.subr.bf16.mxu0 0
  %2211 = vmatpush1.bf16.msra.mxu0 0
  %2212 = vmatprep.subr.bf16.mxu0 0
  %2213 = vmatpush1.bf16.msra.mxu0 0
  %2214 = vmatprep.subr.bf16.mxu0 0
  %2215 = vmatpush1.bf16.msra.mxu0 0
  %2216 = vmatprep.subr.bf16.mxu0 0
  %2217 = vmatpush1.bf16.msra.mxu0 0
  %2218 = vmatprep.subr.bf16.mxu0 0
  %2219 = vmatpush1.bf16.msra.mxu0 0
  %2220 = vmatprep.subr.bf16.mxu0 0
  %2221 = vmatpush1.bf16.msra.mxu0 0
  %2222 = vmatprep.subr.bf16.mxu0 0
  %2223 = vmatpush1.bf16.msra.mxu0 0
  %2224 = vmatprep.subr.bf16.mxu0 0
  %2225 = vmatpush1.bf16.msra.mxu0 0
  %2226 = vmatprep.subr.bf16.mxu0 0
  %2227 = vmatpush1.bf16.msra.mxu0 0
  %2228 = vmatprep.subr.bf16.mxu0 0
  %2229 = vmatpush1.bf16.msra.mxu0 0
  %2230 = vmatprep.mubr.bf16.mxu0 0
  %2231 = vmatmul.mubr.bf16.gmra.mrb[0].mxu0 %v2196
  %v2232 = vpop.f32.mrb[0].mxu0
  %v2233 = vadd.f32 0.0, %v2232
  %v2234 = vpop.f32.mrb[0].mxu0
  %v2235 = vpop.f32.mrb[0].mxu0
  %v2236 = vpop.f32.mrb[0].mxu0
  %2237 = vdwg.mxu0
  %v2238 = vadd.f32 %v2159, %v2233
  %v2239 = vld [vmem:[#allocation2] sm:$0x30]
  %v2240 = vld [vmem:[%s1012] sm:$0xf]
  %v2241 = vld [vmem:[%s1012 + $0x4] sm:$0xf]
  %v2242 = vld [vmem:[%s1012 + $0x8] sm:$0xf]
  %v2243 = vld [vmem:[%s1012 + $0xc] sm:$0xf]
  %v2244 = vld [vmem:[%s1012 + $0x10] sm:$0xf]
  %v2245 = vld [vmem:[%s1012 + $0x14] sm:$0xf]
  %v2246 = vld [vmem:[%s1012 + $0x18] sm:$0xf]
  %v2247 = vld [vmem:[%s1012 + $0x1c] sm:$0xf]
  %v2249 = vrot.slane %v2239, 4
  %v2258 = vunpack.c.l.b16 %v2240
  %v2259 = vunpack.c.l.b16 %v2241
  %v2260 = vunpack.c.l.b16 %v2242
  %v2261 = vunpack.c.l.b16 %v2243
  %v2262 = vunpack.c.l.b16 %v2244
  %v2263 = vunpack.c.l.b16 %v2245
  %v2264 = vunpack.c.l.b16 %v2246
  %v2265 = vunpack.c.l.b16 %v2247
  %v2266 = vpack.c.b16 %v2259, %v2258
  %v2267 = vpack.c.b16 %v2261, %v2260
  %v2268 = vpack.c.b16 %v2263, %v2262
  %v2269 = vpack.c.b16 %v2265, %v2264
  %v2275 = vsel %vm523, %v2249, 0
  %2277 = vmatprep.subr.bf16.mxu0 0
  %2278 = vmatpush1.bf16.msra.mxu0 %v2266
  %2279 = vmatprep.subr.bf16.mxu0 0
  %2280 = vmatpush1.bf16.msra.mxu0 %v2267
  %2281 = vmatprep.subr.bf16.mxu0 0
  %2282 = vmatpush1.bf16.msra.mxu0 %v2268
  %2283 = vmatprep.subr.bf16.mxu0 0
  %2284 = vmatpush1.bf16.msra.mxu0 %v2269
  %2285 = vmatprep.subr.bf16.mxu0 0
  %2286 = vmatpush1.bf16.msra.mxu0 0
  %2287 = vmatprep.subr.bf16.mxu0 0
  %2288 = vmatpush1.bf16.msra.mxu0 0
  %2289 = vmatprep.subr.bf16.mxu0 0
  %2290 = vmatpush1.bf16.msra.mxu0 0
  %2291 = vmatprep.subr.bf16.mxu0 0
  %2292 = vmatpush1.bf16.msra.mxu0 0
  %2293 = vmatprep.subr.bf16.mxu0 0
  %2294 = vmatpush1.bf16.msra.mxu0 0
  %2295 = vmatprep.subr.bf16.mxu0 0
  %2296 = vmatpush1.bf16.msra.mxu0 0
  %2297 = vmatprep.subr.bf16.mxu0 0
  %2298 = vmatpush1.bf16.msra.mxu0 0
  %2299 = vmatprep.subr.bf16.mxu0 0
  %2300 = vmatpush1.bf16.msra.mxu0 0
  %2301 = vmatprep.subr.bf16.mxu0 0
  %2302 = vmatpush1.bf16.msra.mxu0 0
  %2303 = vmatprep.subr.bf16.mxu0 0
  %2304 = vmatpush1.bf16.msra.mxu0 0
  %2305 = vmatprep.subr.bf16.mxu0 0
  %2306 = vmatpush1.bf16.msra.mxu0 0
  %2307 = vmatprep.subr.bf16.mxu0 0
  %2308 = vmatpush1.bf16.msra.mxu0 0
  %2309 = vmatprep.mubr.bf16.mxu0 0
  %2310 = vmatmul.mubr.bf16.gmra.mrb[0].mxu0 %v2275
  %v2311 = vpop.f32.mrb[0].mxu0
  %v2312 = vadd.f32 0.0, %v2311
  %v2313 = vpop.f32.mrb[0].mxu0
  %v2314 = vpop.f32.mrb[0].mxu0
  %v2315 = vpop.f32.mrb[0].mxu0
  %2316 = vdwg.mxu0
  %v2317 = vadd.f32 %v2238, %v2312
  %v2318 = vld [vmem:[#allocation2] sm:$0x70]
  %v2319 = vld [vmem:[%s1092] sm:$0xf]
  %v2320 = vld [vmem:[%s1092 + $0x4] sm:$0xf]
  %v2321 = vld [vmem:[%s1092 + $0x8] sm:$0xf]
  %v2322 = vld [vmem:[%s1092 + $0xc] sm:$0xf]
  %v2323 = vld [vmem:[%s1092 + $0x10] sm:$0xf]
  %v2324 = vld [vmem:[%s1092 + $0x14] sm:$0xf]
  %v2325 = vld [vmem:[%s1092 + $0x18] sm:$0xf]
  %v2326 = vld [vmem:[%s1092 + $0x1c] sm:$0xf]
  %v2328 = vshrl.u32 %v2318, 16
  %v2330 = vrot.slane %v2328, 4
  %v2331 = vshll.u32 %v2318, 16
  %v2333 = vrot.slane %v2331, 5
  %v2334 = vor.u32 %v2330, %v2333
  %v2343 = vunpack.c.l.b16 %v2319
  %v2344 = vunpack.c.l.b16 %v2320
  %v2345 = vunpack.c.l.b16 %v2321
  %v2346 = vunpack.c.l.b16 %v2322
  %v2347 = vunpack.c.l.b16 %v2323
  %v2348 = vunpack.c.l.b16 %v2324
  %v2349 = vunpack.c.l.b16 %v2325
  %v2350 = vunpack.c.l.b16 %v2326
  %v2351 = vpack.c.b16 %v2344, %v2343
  %v2352 = vpack.c.b16 %v2346, %v2345
  %v2353 = vpack.c.b16 %v2348, %v2347
  %v2354 = vpack.c.b16 %v2350, %v2349
  %v2360 = vsel %vm523, %v2334, 0
  %2362 = vmatprep.subr.bf16.mxu0 0
  %2363 = vmatpush1.bf16.msra.mxu0 %v2351
  %2364 = vmatprep.subr.bf16.mxu0 0
  %2365 = vmatpush1.bf16.msra.mxu0 %v2352
  %2366 = vmatprep.subr.bf16.mxu0 0
  %2367 = vmatpush1.bf16.msra.mxu0 %v2353
  %2368 = vmatprep.subr.bf16.mxu0 0
  %2369 = vmatpush1.bf16.msra.mxu0 %v2354
  %2370 = vmatprep.subr.bf16.mxu0 0
  %2371 = vmatpush1.bf16.msra.mxu0 0
  %2372 = vmatprep.subr.bf16.mxu0 0
  %2373 = vmatpush1.bf16.msra.mxu0 0
  %2374 = vmatprep.subr.bf16.mxu0 0
  %2375 = vmatpush1.bf16.msra.mxu0 0
  %2376 = vmatprep.subr.bf16.mxu0 0
  %2377 = vmatpush1.bf16.msra.mxu0 0
  %2378 = vmatprep.subr.bf16.mxu0 0
  %2379 = vmatpush1.bf16.msra.mxu0 0
  %2380 = vmatprep.subr.bf16.mxu0 0
  %2381 = vmatpush1.bf16.msra.mxu0 0
  %2382 = vmatprep.subr.bf16.mxu0 0
  %2383 = vmatpush1.bf16.msra.mxu0 0
  %2384 = vmatprep.subr.bf16.mxu0 0
  %2385 = vmatpush1.bf16.msra.mxu0 0
  %2386 = vmatprep.subr.bf16.mxu0 0
  %2387 = vmatpush1.bf16.msra.mxu0 0
  %2388 = vmatprep.subr.bf16.mxu0 0
  %2389 = vmatpush1.bf16.msra.mxu0 0
  %2390 = vmatprep.subr.bf16.mxu0 0
  %2391 = vmatpush1.bf16.msra.mxu0 0
  %2392 = vmatprep.subr.bf16.mxu0 0
  %2393 = vmatpush1.bf16.msra.mxu0 0
  %2394 = vmatprep.mubr.bf16.mxu0 0
  %2395 = vmatmul.mubr.bf16.gmra.mrb[0].mxu0 %v2360
  %v2396 = vpop.f32.mrb[0].mxu0
  %v2397 = vadd.f32 0.0, %v2396
  %v2398 = vpop.f32.mrb[0].mxu0
  %v2399 = vpop.f32.mrb[0].mxu0
  %v2400 = vpop.f32.mrb[0].mxu0
  %2401 = vdwg.mxu0
  %v2402 = vadd.f32 %v2317, %v2397
  %v2403 = vld [vmem:[#allocation2] sm:$0x60]
  %v2404 = vld [vmem:[%s1178] sm:$0xf]
  %v2405 = vld [vmem:[%s1178 + $0x4] sm:$0xf]
  %v2406 = vld [vmem:[%s1178 + $0x8] sm:$0xf]
  %v2407 = vld [vmem:[%s1178 + $0xc] sm:$0xf]
  %v2408 = vld [vmem:[%s1178 + $0x10] sm:$0xf]
  %v2409 = vld [vmem:[%s1178 + $0x14] sm:$0xf]
  %v2410 = vld [vmem:[%s1178 + $0x18] sm:$0xf]
  %v2411 = vld [vmem:[%s1178 + $0x1c] sm:$0xf]
  %v2413 = vrot.slane %v2403, 5
  %v2422 = vunpack.c.l.b16 %v2404
  %v2423 = vunpack.c.l.b16 %v2405
  %v2424 = vunpack.c.l.b16 %v2406
  %v2425 = vunpack.c.l.b16 %v2407
  %v2426 = vunpack.c.l.b16 %v2408
  %v2427 = vunpack.c.l.b16 %v2409
  %v2428 = vunpack.c.l.b16 %v2410
  %v2429 = vunpack.c.l.b16 %v2411
  %v2430 = vpack.c.b16 %v2423, %v2422
  %v2431 = vpack.c.b16 %v2425, %v2424
  %v2432 = vpack.c.b16 %v2427, %v2426
  %v2433 = vpack.c.b16 %v2429, %v2428
  %v2439 = vsel %vm523, %v2413, 0
  %2441 = vmatprep.subr.bf16.mxu0 0
  %2442 = vmatpush1.bf16.msra.mxu0 %v2430
  %2443 = vmatprep.subr.bf16.mxu0 0
  %2444 = vmatpush1.bf16.msra.mxu0 %v2431
  %2445 = vmatprep.subr.bf16.mxu0 0
  %2446 = vmatpush1.bf16.msra.mxu0 %v2432
  %2447 = vmatprep.subr.bf16.mxu0 0
  %2448 = vmatpush1.bf16.msra.mxu0 %v2433
  %2449 = vmatprep.subr.bf16.mxu0 0
  %2450 = vmatpush1.bf16.msra.mxu0 0
  %2451 = vmatprep.subr.bf16.mxu0 0
  %2452 = vmatpush1.bf16.msra.mxu0 0
  %2453 = vmatprep.subr.bf16.mxu0 0
  %2454 = vmatpush1.bf16.msra.mxu0 0
  %2455 = vmatprep.subr.bf16.mxu0 0
  %2456 = vmatpush1.bf16.msra.mxu0 0
  %2457 = vmatprep.subr.bf16.mxu0 0
  %2458 = vmatpush1.bf16.msra.mxu0 0
  %2459 = vmatprep.subr.bf16.mxu0 0
  %2460 = vmatpush1.bf16.msra.mxu0 0
  %2461 = vmatprep.subr.bf16.mxu0 0
  %2462 = vmatpush1.bf16.msra.mxu0 0
  %2463 = vmatprep.subr.bf16.mxu0 0
  %2464 = vmatpush1.bf16.msra.mxu0 0
  %2465 = vmatprep.subr.bf16.mxu0 0
  %2466 = vmatpush1.bf16.msra.mxu0 0
  %2467 = vmatprep.subr.bf16.mxu0 0
  %2468 = vmatpush1.bf16.msra.mxu0 0
  %2469 = vmatprep.subr.bf16.mxu0 0
  %2470 = vmatpush1.bf16.msra.mxu0 0
  %2471 = vmatprep.subr.bf16.mxu0 0
  %2472 = vmatpush1.bf16.msra.mxu0 0
  %2473 = vmatprep.mubr.bf16.mxu0 0
  %2474 = vmatmul.mubr.bf16.gmra.mrb[0].mxu0 %v2439
  %v2475 = vpop.f32.mrb[0].mxu0
  %v2476 = vadd.f32 0.0, %v2475
  %v2477 = vpop.f32.mrb[0].mxu0
  %v2478 = vpop.f32.mrb[0].mxu0
  %v2479 = vpop.f32.mrb[0].mxu0
  %2480 = vdwg.mxu0
  %v2481 = vadd.f32 %v2402, %v2476
  %v2482 = vadd.f32 %v2481, %v1261
  %v2483 = vmax.f32 %v2482, 0.0
  %v2484 = vpack.c.bf16 %v2483, %v2483
  %s2485 = scalar_lea.vmem %s5, 2
  %2486 = vst.msk [vmem:[%s2485] sm:$0x3] %vm1266, %v2484
  // Predicated region
  $region22: #{_lambda_.4} parent=0 // pred_check
    _
  $region23: #{_lambda_.4} parent=0 // pred_check_branch
    %2488 = sbr.rel (0) target = $region25
  $region24: #{_lambda_.4} parent=0 // pred_region
    _
  $region25: #{_lambda_.4} parent=0 // pred_fallthru
    _
  // Predicated region
  $region26: #{_lambda_.4} parent=0 // pred_check
    _
  $region27: #{_lambda_.4} parent=0 // pred_check_branch
    %2490 = sbr.rel (0) target = $region29
  $region28: #{_lambda_.4} parent=0 // pred_region
    _
  $region29: #{_lambda_.4} parent=0 // pred_fallthru
    _

</llo_original>
